<compile_context>
chip_gen: v7x
topology: tpu7x:2x2x1
jax: 0.10.0
libtpu: 0.0.40
codegen_flags: <defaults>
</compile_context>

<pallas_src>
import jax
import jax.numpy as jnp
from jax.experimental import pallas as pl
from jax.experimental.pallas import tpu as pltpu


_VEC_ROWS = 512      # vec-kernel block = (512, 128) f32 = 256 KiB per array
_DIAG_TM = 512       # diag-fill tile rows
_DIAG_TN = 2048      # diag-fill tile cols (lane-dense output writes)
_VEC_ALIGN = 2048    # pad the O(L) neuron vectors to a multiple of this


def _round_up(x, m):
    return ((x + m - 1) // m) * m


# --------------------------------------------------------------------------- #
# Kernel 1: per-neuron math on packed (rows, 128) blocks.
# --------------------------------------------------------------------------- #
def _spu_vec_kernel(l_ref, u_ref, lam_ref,
                    low_ref, up_ref, mlo_ref, mup_ref, clo_ref, cup_ref):
    l = l_ref[...]          # (rows, 128) f32
    u = u_ref[...]
    lam = lam_ref[...]

    sig = jax.nn.sigmoid
    sig_neg_l = sig(-l)
    sig_neg_u = sig(-u)
    sl = sig(lam)
    one_m_sl = 1.0 - sl

    # shared sub-expressions (CSE'd).  Exact reciprocal on purpose: approx=True
    # would lose precision on tight intervals (review correctness concern) for
    # a negligible win in this O(L) kernel.
    inv_denom = pl.reciprocal(u - l)                      # reused by 3 formulas
    a = sig_neg_l * (1.0 - sig_neg_l)                     # m_up_1 and disc
    g = sig_neg_l * (1.0 + l - l * sig_neg_l)             # c_up_1 and disc

    # ---------------- case 1: u <= 0 ----------------
    m_lo_1 = (sig_neg_u - sig_neg_l) * inv_denom
    c_lo_1 = (sig_neg_l * u - sig_neg_u * l) * inv_denom - 1.0
    # heuristic 'a1'
    m_up_1 = -a
    c_up_1 = g - 1.0

    # ---------------- case 2: l >= 0 ----------------
    t2 = sl * u + one_m_sl * l
    m_lo_2 = 2.0 * t2
    c_lo_2 = -0.5 - t2 * t2
    m_up_2 = u + l
    c_up_2 = -l * u - 0.5

    # ---------------- case 3: l < 0 < u ----------------
    disc = a * a + 4.0 * (g - 0.5)
    u_thresh = 0.5 * (jnp.sqrt(disc) - a)                 # NaN when disc < 0 (as torch)
    ll = (sig_neg_l - 0.5) * (0.5 * pl.reciprocal(l))     # == (sig(-l)-0.5)/(2*l)
    t3 = sl * u + one_m_sl * ll
    m_lo_3 = 2.0 * t3
    c_lo_3 = -0.5 - t3 * t3
    u2 = u * u
    m_up_3a = (u2 - sig_neg_l + 0.5) * inv_denom
    c_up_3a = u2 - m_up_3a * u - 0.5
    use_a = u > u_thresh                                  # NaN compare -> False (as torch)
    m_up_3 = jnp.where(use_a, m_up_3a, m_up_1)
    c_up_3 = jnp.where(use_a, c_up_3a, c_up_1)

    # ---------------- case select ----------------
    case1 = u <= 0.0
    case2 = l >= 0.0
    m_lo = jnp.where(case1, m_lo_1, jnp.where(case2, m_lo_2, m_lo_3))
    c_lo = jnp.where(case1, c_lo_1, jnp.where(case2, c_lo_2, c_lo_3))
    m_up = jnp.where(case1, m_up_1, jnp.where(case2, m_up_2, m_up_3))
    c_up = jnp.where(case1, c_up_1, jnp.where(case2, c_up_2, c_up_3))

    low_ref[...] = jnp.minimum(m_lo * l, m_lo * u) + c_lo
    up_ref[...] = jnp.maximum(m_up * l, m_up * u) + c_up
    mlo_ref[...] = m_lo
    mup_ref[...] = m_up
    clo_ref[...] = c_lo
    cup_ref[...] = c_up


def _run_vec_kernel(l2, u2, lam2):
    r = l2.shape[0]                          # multiple of 16 by construction
    rows = min(_VEC_ROWS, r)                 # small-L case: one exact block
    spec = pl.BlockSpec((rows, 128), lambda i: (i, 0))
    out_shapes = tuple(jax.ShapeDtypeStruct((r, 128), jnp.float32) for _ in range(6))
    lpad = r * 128
    return pl.pallas_call(
        _spu_vec_kernel,
        out_shape=out_shapes,
        grid=(pl.cdiv(r, rows),),
        in_specs=[spec, spec, spec],
        out_specs=tuple(spec for _ in range(6)),
        compiler_params=pltpu.CompilerParams(dimension_semantics=("parallel",)),
        cost_estimate=pl.CostEstimate(flops=60 * lpad, transcendentals=6 * lpad,
                                      bytes_accessed=9 * lpad * 4),
    )(l2, u2, lam2)


# --------------------------------------------------------------------------- #
# Kernel 2: tiled fill of the dense diag(m_lower) / diag(m_upper) matrices.
#
# Rectangular, lane-dense tiles (tm, tn).  m_lower / m_upper are fed
# column-indexed (block (1, tn) at column-block j): on the diagonal the global
# row equals the global column, so m[row] == m[col] and a plain sublane
# broadcast of the (1, tn) row suffices (no in-kernel transpose).
# Off-diagonal tiles are a pure zero store.
# --------------------------------------------------------------------------- #
def _spu_diag_kernel(mlo_ref, mup_ref, xl_ref, xu_ref):
    tm, tn = xl_ref.shape
    i = pl.program_id(0)
    j = pl.program_id(1)
    row0 = i * tm
    col0 = j * tn
    # does the global diagonal pass through this (tm, tn) tile?
    on_diag = jnp.logical_and(row0 < col0 + tn, col0 < row0 + tm)

    @pl.when(jnp.logical_not(on_diag))
    def _off_diag():
        xl_ref[...] = jnp.zeros((tm, tn), xl_ref.dtype)
        xu_ref[...] = jnp.zeros((tm, tn), xu_ref.dtype)

    @pl.when(on_diag)
    def _has_diag():
        row = jax.lax.broadcasted_iota(jnp.int32, (tm, tn), 0) + row0
        col = jax.lax.broadcasted_iota(jnp.int32, (tm, tn), 1) + col0
        eye = row == col
        xl_ref[...] = jnp.where(eye, jnp.broadcast_to(mlo_ref[...], (tm, tn)), 0.0)
        xu_ref[...] = jnp.where(eye, jnp.broadcast_to(mup_ref[...], (tm, tn)), 0.0)


def _run_diag_kernel(mlo_row, mup_row, L):
    # clamp tiles for small layers, keep (8, 128) divisibility
    tm = min(_DIAG_TM, _round_up(L, 8))
    tn = min(_DIAG_TN, _round_up(L, 128))
    vec_spec = pl.BlockSpec((1, tn), lambda i, j: (0, j))       # column-indexed
    mat_spec = pl.BlockSpec((tm, tn), lambda i, j: (i, j))
    out_shapes = (jax.ShapeDtypeStruct((L, L), jnp.float32),
                  jax.ShapeDtypeStruct((L, L), jnp.float32))
    bytes_accessed = 2 * L * L * 4 + 2 * mlo_row.shape[1] * 4
    return pl.pallas_call(
        _spu_diag_kernel,
        out_shape=out_shapes,
        grid=(pl.cdiv(L, tm), pl.cdiv(L, tn)),
        in_specs=[vec_spec, vec_spec],
        out_specs=(mat_spec, mat_spec),
        compiler_params=pltpu.CompilerParams(
            dimension_semantics=("parallel", "parallel"),
            # 2 outputs x 2 bufs x (512*2048*4 B) = 16 MiB > v5e's 16 MiB
            # default scoped VMEM; 32 MiB is the default on v6e/v7x anyway.
            vmem_limit_bytes=32 * 1024 * 1024),
        cost_estimate=pl.CostEstimate(flops=0, transcendentals=0,
                                      bytes_accessed=bytes_accessed),
    )(mlo_row, mup_row)


# --------------------------------------------------------------------------- #
# Whole forward under one jit: pad/pack, run both kernels, unpack.
# --------------------------------------------------------------------------- #
@jax.jit
def _forward_arrays(lowers, uppers, lam):
    l = lowers.reshape(-1).astype(jnp.float32)
    u = uppers.reshape(-1).astype(jnp.float32)
    lam = lam.reshape(-1).astype(jnp.float32)
    L = l.shape[0]

    # Only the O(L) vectors get padded (to a multiple of 2048, which covers
    # both the (r, 128) packing and the widest diag column tile).  The (L, L)
    # matrices are produced at their exact size -- no pad, no slice copy.
    lpad = _round_up(L, _VEC_ALIGN)
    pad = lpad - L
    # pad with a benign l<0<u interval so padded lanes never produce inf/NaN
    l_p = jnp.pad(l, (0, pad), constant_values=-1.0)
    u_p = jnp.pad(u, (0, pad), constant_values=1.0)
    lam_p = jnp.pad(lam, (0, pad), constant_values=1.0)

    r = lpad // 128
    low, up, m_lo, m_up, c_lo, c_up = _run_vec_kernel(
        l_p.reshape(r, 128), u_p.reshape(r, 128), lam_p.reshape(r, 128))

    xl, xu = _run_diag_kernel(m_lo.reshape(1, lpad), m_up.reshape(1, lpad), L)

    return (low.reshape(lpad)[:L].reshape(L, 1),
            up.reshape(lpad)[:L].reshape(L, 1),
            xl, xu,
            c_lo.reshape(lpad)[:L].reshape(L, 1),
            c_up.reshape(lpad)[:L].reshape(L, 1))


def abstract_spu_forward(layer, lam):
    """Pallas equivalent of AbstractSPU.forward (default heuristics path)."""
    low, up, xl, xu, clo, cup = _forward_arrays(
        jnp.asarray(layer["lowers"]), jnp.asarray(layer["uppers"]), jnp.asarray(lam))
    return {
        "lowers": low,
        "uppers": up,
        "x_lowers": xl,
        "x_uppers": xu,
        "x_lowers_intercepts": clo,
        "x_uppers_intercepts": cup,
    }


# --------------------------------------------------------------------------- #
# Pure-JAX reference (mirrors the torch module) for a correctness spot-check.
# --------------------------------------------------------------------------- #
def _reference_forward(lowers, uppers, lam):
    l = lowers.reshape(-1).astype(jnp.float32)
    u = uppers.reshape(-1).astype(jnp.float32)
    lam = lam.reshape(-1).astype(jnp.float32)
    sig = jax.nn.sigmoid
    snl, snu, sl = sig(-l), sig(-u), sig(lam)
    denom = u - l

    m_lo_1 = (snu - snl) / denom
    c_lo_1 = (snl * u - snu * l) / denom - 1.0
    m_up_1 = -snl * (1.0 - snl)
    c_up_1 = snl * (1.0 + l - l * snl) - 1.0

    t2 = sl * u + (1.0 - sl) * l
    m_lo_2, c_lo_2 = 2.0 * t2, -0.5 - t2 * t2
    m_up_2, c_up_2 = u + l, -l * u - 0.5

    a = snl * (1.0 - snl)
    u_thresh = (-a + jnp.sqrt(a * a + 4.0 * (snl * (1.0 + l - l * snl) - 0.5))) / 2.0
    ll = (snl - 0.5) / (2.0 * l)
    t3 = sl * u + (1.0 - sl) * ll
    m_lo_3, c_lo_3 = 2.0 * t3, -0.5 - t3 * t3
    m_up_3a = (u * u - snl + 0.5) / denom
    c_up_3a = u * u - m_up_3a * u - 0.5
    use_a = u > u_thresh
    m_up_3 = jnp.where(use_a, m_up_3a, m_up_1)
    c_up_3 = jnp.where(use_a, c_up_3a, c_up_1)

    case1, case2 = u <= 0.0, l >= 0.0
    m_lo = jnp.where(case1, m_lo_1, jnp.where(case2, m_lo_2, m_lo_3))
    c_lo = jnp.where(case1, c_lo_1, jnp.where(case2, c_lo_2, c_lo_3))
    m_up = jnp.where(case1, m_up_1, jnp.where(case2, m_up_2, m_up_3))
    c_up = jnp.where(case1, c_up_1, jnp.where(case2, c_up_2, c_up_3))

    L = l.shape[0]
    return {
        "lowers": (jnp.minimum(m_lo * l, m_lo * u) + c_lo).reshape(L, 1),
        "uppers": (jnp.maximum(m_up * l, m_up * u) + c_up).reshape(L, 1),
        "x_lowers": jnp.diag(m_lo),
        "x_uppers": jnp.diag(m_up),
        "x_lowers_intercepts": c_lo.reshape(L, 1),
        "x_uppers_intercepts": c_up.reshape(L, 1),
    }


if __name__ == "__main__":
    L = 700       # layer_size (multiple diag row-blocks + edge clipping exercised)
    L_prev = 32   # previous layer size (x_lowers/x_uppers inputs unused by forward math)

    key = jax.random.PRNGKey(0)
    k1, k2, k3, k4 = jax.random.split(key, 4)

    # bounds covering all three cases (u<=0, l>=0, l<0<u)
    lowers = jax.random.normal(k1, (L, 1), jnp.float32) * 2.0
    widths = jnp.abs(jax.random.normal(k2, (L, 1), jnp.float32)) * 2.0
    uppers = lowers + widths

    layer = {
        "lowers": lowers,
        "uppers": uppers,
        "x_lowers": jax.random.normal(k3, (L, L_prev), jnp.float32),
        "x_uppers": jax.random.normal(k4, (L, L_prev), jnp.float32),
        "x_lowers_intercepts": jnp.zeros((L, 1), jnp.float32),
        "x_uppers_intercepts": jnp.zeros((L, 1), jnp.float32),
    }

    # parameter init per module __init__: lam = ones(layer_size) * 1.0
    lam = jnp.ones((L,), jnp.float32)

    out = abstract_spu_forward(layer, lam)
    jax.tree_util.tree_map(jax.block_until_ready, out)

    # shape contract (mirrors the commented asserts in the reference)
    assert out["lowers"].shape == layer["lowers"].shape
    assert out["uppers"].shape == layer["uppers"].shape
    assert out["x_lowers"].shape == (L, L)
    assert out["x_uppers"].shape == (L, L)
    assert out["x_lowers_intercepts"].shape == layer["x_lowers_intercepts"].shape
    assert out["x_uppers_intercepts"].shape == layer["x_uppers_intercepts"].shape

    # numerical spot-check against a pure-JAX reference
    ref = _reference_forward(lowers, uppers, lam)
    for name in ("lowers", "uppers", "x_lowers", "x_uppers",
                 "x_lowers_intercepts", "x_uppers_intercepts"):
        assert jnp.allclose(out[name], ref[name], rtol=1e-3, atol=1e-3), name

    print("KERNEL_OK")
</pallas_src>

<mosaic_0001>
module attributes {stable_mosaic.version = 11 : i64} {
  func.func @_spu_vec_kernel(%arg0: i32, %arg1: memref<16x128xf32, #tpu.memory_space<vmem>>, %arg2: memref<16x128xf32, #tpu.memory_space<vmem>>, %arg3: memref<16x128xf32, #tpu.memory_space<vmem>>, %arg4: memref<16x128xf32, #tpu.memory_space<vmem>>, %arg5: memref<16x128xf32, #tpu.memory_space<vmem>>, %arg6: memref<16x128xf32, #tpu.memory_space<vmem>>, %arg7: memref<16x128xf32, #tpu.memory_space<vmem>>, %arg8: memref<16x128xf32, #tpu.memory_space<vmem>>, %arg9: memref<16x128xf32, #tpu.memory_space<vmem>>) attributes {dimension_semantics = [#tpu.dimension_semantics<parallel>], iteration_bounds = array<i64: 1>, scalar_prefetch = 0 : i64, scratch_operands = 0 : i64, tpu.core_type = #tpu.core_type<tc>, window_params = [{transform_indices = @transform_0, window_bounds = array<i64: 16, 128>}, {transform_indices = @transform_1, window_bounds = array<i64: 16, 128>}, {transform_indices = @transform_2, window_bounds = array<i64: 16, 128>}, {transform_indices = @transform_3, window_bounds = array<i64: 16, 128>}, {transform_indices = @transform_4, window_bounds = array<i64: 16, 128>}, {transform_indices = @transform_5, window_bounds = array<i64: 16, 128>}, {transform_indices = @transform_6, window_bounds = array<i64: 16, 128>}, {transform_indices = @transform_7, window_bounds = array<i64: 16, 128>}, {transform_indices = @transform_8, window_bounds = array<i64: 16, 128>}]} {
    %c0 = arith.constant 0 : index
    %c0_0 = arith.constant 0 : index
    %0 = vector.load %arg1[%c0, %c0_0] : memref<16x128xf32, #tpu.memory_space<vmem>>, vector<16x128xf32>
    %c0_1 = arith.constant 0 : index
    %c0_2 = arith.constant 0 : index
    %1 = vector.load %arg2[%c0_1, %c0_2] : memref<16x128xf32, #tpu.memory_space<vmem>>, vector<16x128xf32>
    %c0_3 = arith.constant 0 : index
    %c0_4 = arith.constant 0 : index
    %2 = vector.load %arg3[%c0_3, %c0_4] : memref<16x128xf32, #tpu.memory_space<vmem>>, vector<16x128xf32>
    %cst = arith.constant 0.000000e+00 : f32
    %3 = vector.broadcast %cst : f32 to vector<16x128xf32>
    %4 = arith.subf %3, %0 : vector<16x128xf32>
    %5 = arith.negf %4 : vector<16x128xf32>
    %6 = math.exp %5 : vector<16x128xf32>
    %cst_5 = arith.constant 1.000000e+00 : f32
    %7 = vector.broadcast %cst_5 : f32 to vector<16x128xf32>
    %8 = arith.addf %7, %6 : vector<16x128xf32>
    %9 = arith.divf %7, %8 : vector<16x128xf32>
    %cst_6 = arith.constant 0.000000e+00 : f32
    %10 = vector.broadcast %cst_6 : f32 to vector<16x128xf32>
    %11 = arith.subf %10, %1 : vector<16x128xf32>
    %12 = arith.negf %11 : vector<16x128xf32>
    %13 = math.exp %12 : vector<16x128xf32>
    %cst_7 = arith.constant 1.000000e+00 : f32
    %14 = vector.broadcast %cst_7 : f32 to vector<16x128xf32>
    %15 = arith.addf %14, %13 : vector<16x128xf32>
    %16 = arith.divf %14, %15 : vector<16x128xf32>
    %17 = arith.negf %2 : vector<16x128xf32>
    %18 = math.exp %17 : vector<16x128xf32>
    %cst_8 = arith.constant 1.000000e+00 : f32
    %19 = vector.broadcast %cst_8 : f32 to vector<16x128xf32>
    %20 = arith.addf %19, %18 : vector<16x128xf32>
    %21 = arith.divf %19, %20 : vector<16x128xf32>
    %cst_9 = arith.constant 1.000000e+00 : f32
    %22 = vector.broadcast %cst_9 : f32 to vector<16x128xf32>
    %23 = arith.subf %22, %21 : vector<16x128xf32>
    %24 = arith.subf %1, %0 : vector<16x128xf32>
    %25 = tpu.reciprocal %24 : vector<16x128xf32> -> vector<16x128xf32>
    %cst_10 = arith.constant 1.000000e+00 : f32
    %26 = vector.broadcast %cst_10 : f32 to vector<16x128xf32>
    %27 = arith.subf %26, %9 : vector<16x128xf32>
    %28 = arith.mulf %9, %27 : vector<16x128xf32>
    %cst_11 = arith.constant 1.000000e+00 : f32
    %29 = vector.broadcast %cst_11 : f32 to vector<16x128xf32>
    %30 = arith.addf %29, %0 : vector<16x128xf32>
    %31 = arith.mulf %0, %9 : vector<16x128xf32>
    %32 = arith.subf %30, %31 : vector<16x128xf32>
    %33 = arith.mulf %9, %32 : vector<16x128xf32>
    %34 = arith.subf %16, %9 : vector<16x128xf32>
    %35 = arith.mulf %34, %25 : vector<16x128xf32>
    %36 = arith.mulf %9, %1 : vector<16x128xf32>
    %37 = arith.mulf %16, %0 : vector<16x128xf32>
    %38 = arith.subf %36, %37 : vector<16x128xf32>
    %39 = arith.mulf %38, %25 : vector<16x128xf32>
    %cst_12 = arith.constant 1.000000e+00 : f32
    %40 = vector.broadcast %cst_12 : f32 to vector<16x128xf32>
    %41 = arith.subf %39, %40 : vector<16x128xf32>
    %cst_13 = arith.constant 0.000000e+00 : f32
    %42 = vector.broadcast %cst_13 : f32 to vector<16x128xf32>
    %43 = arith.subf %42, %28 : vector<16x128xf32>
    %cst_14 = arith.constant 1.000000e+00 : f32
    %44 = vector.broadcast %cst_14 : f32 to vector<16x128xf32>
    %45 = arith.subf %33, %44 : vector<16x128xf32>
    %46 = arith.mulf %21, %1 : vector<16x128xf32>
    %47 = arith.mulf %23, %0 : vector<16x128xf32>
    %48 = arith.addf %46, %47 : vector<16x128xf32>
    %cst_15 = arith.constant 2.000000e+00 : f32
    %49 = vector.broadcast %cst_15 : f32 to vector<16x128xf32>
    %50 = arith.mulf %49, %48 : vector<16x128xf32>
    %51 = arith.mulf %48, %48 : vector<16x128xf32>
    %cst_16 = arith.constant -5.000000e-01 : f32
    %52 = vector.broadcast %cst_16 : f32 to vector<16x128xf32>
    %53 = arith.subf %52, %51 : vector<16x128xf32>
    %54 = arith.addf %1, %0 : vector<16x128xf32>
    %cst_17 = arith.constant 0.000000e+00 : f32
    %55 = vector.broadcast %cst_17 : f32 to vector<16x128xf32>
    %56 = arith.subf %55, %0 : vector<16x128xf32>
    %57 = arith.mulf %56, %1 : vector<16x128xf32>
    %cst_18 = arith.constant 5.000000e-01 : f32
    %58 = vector.broadcast %cst_18 : f32 to vector<16x128xf32>
    %59 = arith.subf %57, %58 : vector<16x128xf32>
    %60 = arith.mulf %28, %28 : vector<16x128xf32>
    %cst_19 = arith.constant 5.000000e-01 : f32
    %61 = vector.broadcast %cst_19 : f32 to vector<16x128xf32>
    %62 = arith.subf %33, %61 : vector<16x128xf32>
    %cst_20 = arith.constant 4.000000e+00 : f32
    %63 = vector.broadcast %cst_20 : f32 to vector<16x128xf32>
    %64 = arith.mulf %63, %62 : vector<16x128xf32>
    %65 = arith.addf %60, %64 : vector<16x128xf32>
    %66 = math.sqrt %65 : vector<16x128xf32>
    %67 = arith.subf %66, %28 : vector<16x128xf32>
    %cst_21 = arith.constant 5.000000e-01 : f32
    %68 = vector.broadcast %cst_21 : f32 to vector<16x128xf32>
    %69 = arith.mulf %68, %67 : vector<16x128xf32>
    %cst_22 = arith.constant 5.000000e-01 : f32
    %70 = vector.broadcast %cst_22 : f32 to vector<16x128xf32>
    %71 = arith.subf %9, %70 : vector<16x128xf32>
    %72 = tpu.reciprocal %0 : vector<16x128xf32> -> vector<16x128xf32>
    %cst_23 = arith.constant 5.000000e-01 : f32
    %73 = vector.broadcast %cst_23 : f32 to vector<16x128xf32>
    %74 = arith.mulf %73, %72 : vector<16x128xf32>
    %75 = arith.mulf %71, %74 : vector<16x128xf32>
    %76 = arith.mulf %21, %1 : vector<16x128xf32>
    %77 = arith.mulf %23, %75 : vector<16x128xf32>
    %78 = arith.addf %76, %77 : vector<16x128xf32>
    %cst_24 = arith.constant 2.000000e+00 : f32
    %79 = vector.broadcast %cst_24 : f32 to vector<16x128xf32>
    %80 = arith.mulf %79, %78 : vector<16x128xf32>
    %81 = arith.mulf %78, %78 : vector<16x128xf32>
    %cst_25 = arith.constant -5.000000e-01 : f32
    %82 = vector.broadcast %cst_25 : f32 to vector<16x128xf32>
    %83 = arith.subf %82, %81 : vector<16x128xf32>
    %84 = arith.mulf %1, %1 : vector<16x128xf32>
    %85 = arith.subf %84, %9 : vector<16x128xf32>
    %cst_26 = arith.constant 5.000000e-01 : f32
    %86 = vector.broadcast %cst_26 : f32 to vector<16x128xf32>
    %87 = arith.addf %85, %86 : vector<16x128xf32>
    %88 = arith.mulf %87, %25 : vector<16x128xf32>
    %89 = arith.mulf %88, %1 : vector<16x128xf32>
    %90 = arith.subf %84, %89 : vector<16x128xf32>
    %cst_27 = arith.constant 5.000000e-01 : f32
    %91 = vector.broadcast %cst_27 : f32 to vector<16x128xf32>
    %92 = arith.subf %90, %91 : vector<16x128xf32>
    %93 = arith.cmpf ogt, %1, %69 : vector<16x128xf32>
    %94 = arith.select %93, %88, %43 : vector<16x128xi1>, vector<16x128xf32>
    %95 = arith.select %93, %92, %45 : vector<16x128xi1>, vector<16x128xf32>
    %cst_28 = arith.constant 0.000000e+00 : f32
    %96 = vector.broadcast %cst_28 : f32 to vector<16x128xf32>
    %97 = arith.cmpf ole, %1, %96 : vector<16x128xf32>
    %cst_29 = arith.constant 0.000000e+00 : f32
    %98 = vector.broadcast %cst_29 : f32 to vector<16x128xf32>
    %99 = arith.cmpf oge, %0, %98 : vector<16x128xf32>
    %100 = arith.select %99, %50, %80 : vector<16x128xi1>, vector<16x128xf32>
    %101 = arith.select %97, %35, %100 : vector<16x128xi1>, vector<16x128xf32>
    %102 = arith.select %99, %53, %83 : vector<16x128xi1>, vector<16x128xf32>
    %103 = arith.select %97, %41, %102 : vector<16x128xi1>, vector<16x128xf32>
    %104 = arith.select %99, %54, %94 : vector<16x128xi1>, vector<16x128xf32>
    %105 = arith.select %97, %43, %104 : vector<16x128xi1>, vector<16x128xf32>
    %106 = arith.select %99, %59, %95 : vector<16x128xi1>, vector<16x128xf32>
    %107 = arith.select %97, %45, %106 : vector<16x128xi1>, vector<16x128xf32>
    %108 = arith.mulf %101, %0 : vector<16x128xf32>
    %109 = arith.mulf %101, %1 : vector<16x128xf32>
    %110 = arith.minimumf %108, %109 : vector<16x128xf32>
    %111 = arith.addf %110, %103 : vector<16x128xf32>
    %c0_30 = arith.constant 0 : index
    %c0_31 = arith.constant 0 : index
    %112 = vector.load %arg4[%c0_30, %c0_31] : memref<16x128xf32, #tpu.memory_space<vmem>>, vector<16x128xf32>
    tpu.vector_store %arg4[%c0_30, %c0_31], %111 {strides = array<i32>} : memref<16x128xf32, #tpu.memory_space<vmem>>, vector<16x128xf32>,
    %113 = arith.mulf %105, %0 : vector<16x128xf32>
    %114 = arith.mulf %105, %1 : vector<16x128xf32>
    %115 = arith.maximumf %113, %114 : vector<16x128xf32>
    %116 = arith.addf %115, %107 : vector<16x128xf32>
    %c0_32 = arith.constant 0 : index
    %c0_33 = arith.constant 0 : index
    %117 = vector.load %arg5[%c0_32, %c0_33] : memref<16x128xf32, #tpu.memory_space<vmem>>, vector<16x128xf32>
    tpu.vector_store %arg5[%c0_32, %c0_33], %116 {strides = array<i32>} : memref<16x128xf32, #tpu.memory_space<vmem>>, vector<16x128xf32>,
    %c0_34 = arith.constant 0 : index
    %c0_35 = arith.constant 0 : index
    %118 = vector.load %arg6[%c0_34, %c0_35] : memref<16x128xf32, #tpu.memory_space<vmem>>, vector<16x128xf32>
    tpu.vector_store %arg6[%c0_34, %c0_35], %101 {strides = array<i32>} : memref<16x128xf32, #tpu.memory_space<vmem>>, vector<16x128xf32>,
    %c0_36 = arith.constant 0 : index
    %c0_37 = arith.constant 0 : index
    %119 = vector.load %arg7[%c0_36, %c0_37] : memref<16x128xf32, #tpu.memory_space<vmem>>, vector<16x128xf32>
    tpu.vector_store %arg7[%c0_36, %c0_37], %105 {strides = array<i32>} : memref<16x128xf32, #tpu.memory_space<vmem>>, vector<16x128xf32>,
    %c0_38 = arith.constant 0 : index
    %c0_39 = arith.constant 0 : index
    %120 = vector.load %arg8[%c0_38, %c0_39] : memref<16x128xf32, #tpu.memory_space<vmem>>, vector<16x128xf32>
    tpu.vector_store %arg8[%c0_38, %c0_39], %103 {strides = array<i32>} : memref<16x128xf32, #tpu.memory_space<vmem>>, vector<16x128xf32>,
    %c0_40 = arith.constant 0 : index
    %c0_41 = arith.constant 0 : index
    %121 = vector.load %arg9[%c0_40, %c0_41] : memref<16x128xf32, #tpu.memory_space<vmem>>, vector<16x128xf32>
    tpu.vector_store %arg9[%c0_40, %c0_41], %107 {strides = array<i32>} : memref<16x128xf32, #tpu.memory_space<vmem>>, vector<16x128xf32>,
    return
  }
  func.func @transform_0(%arg0: i32) -> (i32, i32) {
    %c0_i32 = arith.constant 0 : i32
    %c0_i32_0 = arith.constant 0 : i32
    return %arg0, %c0_i32 : i32, i32
  }
  func.func @transform_1(%arg0: i32) -> (i32, i32) {
    %c0_i32 = arith.constant 0 : i32
    %c0_i32_0 = arith.constant 0 : i32
    return %arg0, %c0_i32 : i32, i32
  }
  func.func @transform_2(%arg0: i32) -> (i32, i32) {
    %c0_i32 = arith.constant 0 : i32
    %c0_i32_0 = arith.constant 0 : i32
    return %arg0, %c0_i32 : i32, i32
  }
  func.func @transform_3(%arg0: i32) -> (i32, i32) {
    %c0_i32 = arith.constant 0 : i32
    %c0_i32_0 = arith.constant 0 : i32
    return %arg0, %c0_i32 : i32, i32
  }
  func.func @transform_4(%arg0: i32) -> (i32, i32) {
    %c0_i32 = arith.constant 0 : i32
    %c0_i32_0 = arith.constant 0 : i32
    return %arg0, %c0_i32 : i32, i32
  }
  func.func @transform_5(%arg0: i32) -> (i32, i32) {
    %c0_i32 = arith.constant 0 : i32
    %c0_i32_0 = arith.constant 0 : i32
    return %arg0, %c0_i32 : i32, i32
  }
  func.func @transform_6(%arg0: i32) -> (i32, i32) {
    %c0_i32 = arith.constant 0 : i32
    %c0_i32_0 = arith.constant 0 : i32
    return %arg0, %c0_i32 : i32, i32
  }
  func.func @transform_7(%arg0: i32) -> (i32, i32) {
    %c0_i32 = arith.constant 0 : i32
    %c0_i32_0 = arith.constant 0 : i32
    return %arg0, %c0_i32 : i32, i32
  }
  func.func @transform_8(%arg0: i32) -> (i32, i32) {
    %c0_i32 = arith.constant 0 : i32
    %c0_i32_0 = arith.constant 0 : i32
    return %arg0, %c0_i32 : i32, i32
  }
}

module attributes {stable_mosaic.version = 11 : i64} {
  func.func @_spu_diag_kernel(%arg0: i32, %arg1: i32, %arg2: memref<1x768xf32, #tpu.memory_space<vmem>>, %arg3: memref<1x768xf32, #tpu.memory_space<vmem>>, %arg4: memref<512x768xf32, #tpu.memory_space<vmem>>, %arg5: memref<512x768xf32, #tpu.memory_space<vmem>>) attributes {dimension_semantics = [#tpu.dimension_semantics<parallel>, #tpu.dimension_semantics<parallel>], iteration_bounds = array<i64: 2, 1>, scalar_prefetch = 0 : i64, scratch_operands = 0 : i64, tpu.core_type = #tpu.core_type<tc>, window_params = [{transform_indices = @transform_0, window_bounds = array<i64: 1, 768>}, {transform_indices = @transform_1, window_bounds = array<i64: 1, 768>}, {transform_indices = @transform_2, window_bounds = array<i64: 512, 768>}, {transform_indices = @transform_3, window_bounds = array<i64: 512, 768>}]} {
    %c512_i32 = arith.constant 512 : i32
    %0 = arith.muli %arg0, %c512_i32 : i32
    %c768_i32 = arith.constant 768 : i32
    %1 = arith.muli %arg1, %c768_i32 : i32
    %c768_i32_0 = arith.constant 768 : i32
    %2 = arith.addi %1, %c768_i32_0 : i32
    %3 = arith.cmpi slt, %0, %2 : i32
    %c512_i32_1 = arith.constant 512 : i32
    %4 = arith.addi %0, %c512_i32_1 : i32
    %5 = arith.cmpi slt, %1, %4 : i32
    %6 = arith.andi %3, %5 : i1
    %true = arith.constant true
    %7 = arith.xori %6, %true : i1
    %8 = arith.extui %7 : i1 to i32
    %c0_i32 = arith.constant 0 : i32
    %9 = arith.cmpi ne, %8, %c0_i32 : i32
    scf.if %9 {
      %cst = arith.constant 0.000000e+00 : f32
      %12 = vector.broadcast %cst : f32 to vector<512x768xf32>
      %c0 = arith.constant 0 : index
      %c0_3 = arith.constant 0 : index
      %13 = vector.load %arg4[%c0, %c0_3] : memref<512x768xf32, #tpu.memory_space<vmem>>, vector<512x768xf32>
      tpu.vector_store %arg4[%c0, %c0_3], %12 {strides = array<i32>} : memref<512x768xf32, #tpu.memory_space<vmem>>, vector<512x768xf32>,
      %cst_4 = arith.constant 0.000000e+00 : f32
      %14 = vector.broadcast %cst_4 : f32 to vector<512x768xf32>
      %c0_5 = arith.constant 0 : index
      %c0_6 = arith.constant 0 : index
      %15 = vector.load %arg5[%c0_5, %c0_6] : memref<512x768xf32, #tpu.memory_space<vmem>>, vector<512x768xf32>
      tpu.vector_store %arg5[%c0_5, %c0_6], %14 {strides = array<i32>} : memref<512x768xf32, #tpu.memory_space<vmem>>, vector<512x768xf32>,
    } else {
    }
    %10 = arith.extui %6 : i1 to i32
    %c0_i32_2 = arith.constant 0 : i32
    %11 = arith.cmpi ne, %10, %c0_i32_2 : i32
    scf.if %11 {
      %12 = tpu.iota {dimensions = array<i32: 0>} : vector<512x768xi32>
      %13 = vector.broadcast %0 : i32 to vector<512x768xi32>
      %14 = arith.addi %12, %13 : vector<512x768xi32>
      %15 = tpu.iota {dimensions = array<i32: 1>} : vector<512x768xi32>
      %16 = vector.broadcast %1 : i32 to vector<512x768xi32>
      %17 = arith.addi %15, %16 : vector<512x768xi32>
      %18 = arith.cmpi eq, %14, %17 : vector<512x768xi32>
      %c0 = arith.constant 0 : index
      %c0_3 = arith.constant 0 : index
      %19 = vector.load %arg2[%c0, %c0_3] : memref<1x768xf32, #tpu.memory_space<vmem>>, vector<1x768xf32>
      %20 = vector.shape_cast %19 : vector<1x768xf32> to vector<1x768xf32>
      %21 = vector.broadcast %20 : vector<1x768xf32> to vector<512x768xf32>
      %cst = arith.constant 0.000000e+00 : f32
      %22 = vector.broadcast %cst : f32 to vector<512x768xf32>
      %23 = arith.select %18, %21, %22 : vector<512x768xi1>, vector<512x768xf32>
      %c0_4 = arith.constant 0 : index
      %c0_5 = arith.constant 0 : index
      %24 = vector.load %arg4[%c0_4, %c0_5] : memref<512x768xf32, #tpu.memory_space<vmem>>, vector<512x768xf32>
      tpu.vector_store %arg4[%c0_4, %c0_5], %23 {strides = array<i32>} : memref<512x768xf32, #tpu.memory_space<vmem>>, vector<512x768xf32>,
      %c0_6 = arith.constant 0 : index
      %c0_7 = arith.constant 0 : index
      %25 = vector.load %arg3[%c0_6, %c0_7] : memref<1x768xf32, #tpu.memory_space<vmem>>, vector<1x768xf32>
      %26 = vector.shape_cast %25 : vector<1x768xf32> to vector<1x768xf32>
      %27 = vector.broadcast %26 : vector<1x768xf32> to vector<512x768xf32>
      %cst_8 = arith.constant 0.000000e+00 : f32
      %28 = vector.broadcast %cst_8 : f32 to vector<512x768xf32>
      %29 = arith.select %18, %27, %28 : vector<512x768xi1>, vector<512x768xf32>
      %c0_9 = arith.constant 0 : index
      %c0_10 = arith.constant 0 : index
      %30 = vector.load %arg5[%c0_9, %c0_10] : memref<512x768xf32, #tpu.memory_space<vmem>>, vector<512x768xf32>
      tpu.vector_store %arg5[%c0_9, %c0_10], %29 {strides = array<i32>} : memref<512x768xf32, #tpu.memory_space<vmem>>, vector<512x768xf32>,
    } else {
    }
    return
  }
  func.func @transform_0(%arg0: i32, %arg1: i32) -> (i32, i32) {
    %c0_i32 = arith.constant 0 : i32
    %c0_i32_0 = arith.constant 0 : i32
    return %c0_i32, %arg1 : i32, i32
  }
  func.func @transform_1(%arg0: i32, %arg1: i32) -> (i32, i32) {
    %c0_i32 = arith.constant 0 : i32
    %c0_i32_0 = arith.constant 0 : i32
    return %c0_i32, %arg1 : i32, i32
  }
  func.func @transform_2(%arg0: i32, %arg1: i32) -> (i32, i32) {
    %c0_i32 = arith.constant 0 : i32
    return %arg0, %arg1 : i32, i32
  }
  func.func @transform_3(%arg0: i32, %arg1: i32) -> (i32, i32) {
    %c0_i32 = arith.constant 0 : i32
    return %arg0, %arg1 : i32, i32
  }
}

</mosaic_0001>

<llo_original>
// kernel: _forward_arrays.2
$region0: #{_forward_arrays.2}
  #allocation0 [shape = 'u32[]', space=smem, size = 0x4, offset = 0x4, fixed_abs, tag = 'smem constant byte address 0x4 - core index']
  #allocation1 [shape = 'u32[144,128]{1,0:T(1,128)}', space=vmem, size = 0x12000, scoped, tag = 'internal scratch']
  %s0 = inlined_call_operand.vmem [shape: f32[16,128], index: 0, kind: input, shape index: {}]
  %s1 = inlined_call_operand.vmem [shape: f32[16,128], index: 1, kind: input, shape index: {}]
  %s2 = inlined_call_operand.vmem [shape: f32[16,128], index: 2, kind: input, shape index: {}]
  %s3 = inlined_call_operand.vmem [shape: f32[16,128], index: 3, kind: output, shape index: {0}]
  %s4 = inlined_call_operand.vmem [shape: f32[16,128], index: 4, kind: output, shape index: {1}]
  %s5 = inlined_call_operand.vmem [shape: f32[16,128], index: 5, kind: output, shape index: {2}]
  %s6 = inlined_call_operand.vmem [shape: f32[16,128], index: 6, kind: output, shape index: {3}]
  %s7 = inlined_call_operand.vmem [shape: f32[16,128], index: 7, kind: output, shape index: {4}]
  %s8 = inlined_call_operand.vmem [shape: f32[16,128], index: 8, kind: output, shape index: {5}]
  %9 = xla_tuple %s3, %s4, %s5, %s6, %s7, %s8
  %s10 = sld [smem:[#allocation0]]
  $region62: #{_forward_arrays.2} parent=0
    _
  %s12 = ssub.s32 1, %s10
  %s13 = scalar_select 0, %s12, %s10
  // Predicated region
  $region2: #{_forward_arrays.2} parent=0 // pred_check
    _
  $region3: #{_forward_arrays.2} parent=0 // pred_check_branch
    %15 = sbr.rel (0) target = $region5
  $region4: #{_forward_arrays.2} parent=0 // pred_region
    _
  $region5: #{_forward_arrays.2} parent=0 // pred_fallthru
    _
  // Predicated region
  $region6: #{_forward_arrays.2} parent=0 // pred_check
    _
  $region7: #{_forward_arrays.2} parent=0 // pred_check_branch
    %17 = sbr.rel (0) target = $region9
  $region8: #{_forward_arrays.2} parent=0 // pred_region
    _
  $region9: #{_forward_arrays.2} parent=0 // pred_fallthru
    _
  // Predicated region
  $region10: #{_forward_arrays.2} parent=0 // pred_check
    _
  $region11: #{_forward_arrays.2} parent=0 // pred_check_branch
    %19 = sbr.rel (0) target = $region13
  $region12: #{_forward_arrays.2} parent=0 // pred_region
    _
  $region13: #{_forward_arrays.2} parent=0 // pred_fallthru
    _
  %v20 = vld [vmem:[%s0] sm:$0xff]
  %v21 = vld [vmem:[%s0 + $0x8] sm:$0xff]
  %v22 = vld [vmem:[%s1] sm:$0xff]
  %v23 = vld [vmem:[%s1 + $0x8] sm:$0xff]
  %v24 = vld [vmem:[%s2] sm:$0xff]
  %v25 = vld [vmem:[%s2 + $0x8] sm:$0xff]
  %v26 = vsub.f32 0.0, %v20
  %v27 = vsub.f32 0.0, %v21
  %v28 = vxor.u32 %v26, 2147483648
  %v29 = vxor.u32 %v27, 2147483648
  %v30 = vmul.f32 %v28, 1.442695
  %v31 = vpow.pop %v30
  %v32 = vmul.f32 %v29, 1.442695
  %v33 = vpow.pop %v32
  %v34 = vadd.f32 %v31, 1.0
  %v35 = vadd.f32 %v33, 1.0
  %v36 = vrcp.pop %v34
  %v37 = vmul.f32 1.0, %v36
  %v38 = vrcp.pop %v35
  %v39 = vmul.f32 1.0, %v38
  %v40 = vsub.f32 0.0, %v22
  %v41 = vsub.f32 0.0, %v23
  %v42 = vxor.u32 %v40, 2147483648
  %v43 = vxor.u32 %v41, 2147483648
  %v44 = vmul.f32 %v42, 1.442695
  %v45 = vpow.pop %v44
  %v46 = vmul.f32 %v43, 1.442695
  %v47 = vpow.pop %v46
  %v48 = vadd.f32 %v45, 1.0
  %v49 = vadd.f32 %v47, 1.0
  %v50 = vrcp.pop %v48
  %v51 = vmul.f32 1.0, %v50
  %v52 = vrcp.pop %v49
  %v53 = vmul.f32 1.0, %v52
  %v54 = vxor.u32 %v24, 2147483648
  %v55 = vxor.u32 %v25, 2147483648
  %v56 = vmul.f32 %v54, 1.442695
  %v57 = vpow.pop %v56
  %v58 = vmul.f32 %v55, 1.442695
  %v59 = vpow.pop %v58
  %v60 = vadd.f32 %v57, 1.0
  %v61 = vadd.f32 %v59, 1.0
  %v62 = vrcp.pop %v60
  %v63 = vmul.f32 1.0, %v62
  %v64 = vrcp.pop %v61
  %v65 = vmul.f32 1.0, %v64
  %v66 = vsub.f32 1.0, %v63
  %v67 = vsub.f32 1.0, %v65
  %v68 = vsub.f32 %v22, %v20
  %v69 = vsub.f32 %v23, %v21
  %v70 = vrcp.pop %v68
  %v71 = vrcp.pop %v69
  %v72 = vsub.f32 1.0, %v37
  %v73 = vsub.f32 1.0, %v39
  %v74 = vmul.f32 %v37, %v72
  %v75 = vmul.f32 %v39, %v73
  %v76 = vadd.f32 %v20, 1.0
  %v77 = vadd.f32 %v21, 1.0
  %v78 = vmul.f32 %v20, %v37
  %v79 = vmul.f32 %v21, %v39
  %v80 = vsub.f32 %v76, %v78
  %v81 = vsub.f32 %v77, %v79
  %v82 = vmul.f32 %v37, %v80
  %v83 = vmul.f32 %v39, %v81
  %v84 = vsub.f32 %v51, %v37
  %v85 = vsub.f32 %v53, %v39
  %v86 = vmul.f32 %v84, %v70
  %v87 = vmul.f32 %v85, %v71
  %v88 = vmul.f32 %v37, %v22
  %v89 = vmul.f32 %v39, %v23
  %v90 = vmul.f32 %v51, %v20
  %v91 = vmul.f32 %v53, %v21
  %v92 = vsub.f32 %v88, %v90
  %v93 = vsub.f32 %v89, %v91
  %v94 = vmul.f32 %v92, %v70
  %v95 = vmul.f32 %v93, %v71
  %v96 = vsub.f32 %v94, 1.0
  %v97 = vsub.f32 %v95, 1.0
  %v98 = vsub.f32 0.0, %v74
  %v99 = vsub.f32 0.0, %v75
  %v100 = vsub.f32 %v82, 1.0
  %v101 = vsub.f32 %v83, 1.0
  %v102 = vmul.f32 %v63, %v22
  %v103 = vmul.f32 %v65, %v23
  %v104 = vmul.f32 %v66, %v20
  %v105 = vmul.f32 %v67, %v21
  %v106 = vadd.f32 %v102, %v104
  %v107 = vadd.f32 %v103, %v105
  %v108 = vmul.f32 %v106, 2.0
  %v109 = vmul.f32 %v107, 2.0
  %v110 = vmul.f32 %v106, %v106
  %v111 = vmul.f32 %v107, %v107
  %v112 = vsub.f32 -0.5, %v110
  %v113 = vsub.f32 -0.5, %v111
  %v114 = vadd.f32 %v22, %v20
  %v115 = vadd.f32 %v23, %v21
  %v116 = vmul.f32 %v26, %v22
  %v117 = vmul.f32 %v27, %v23
  %v118 = vsub.f32 %v116, 0.5
  %v119 = vsub.f32 %v117, 0.5
  %v120 = vmul.f32 %v74, %v74
  %v121 = vmul.f32 %v75, %v75
  %v122 = vsub.f32 %v82, 0.5
  %v123 = vsub.f32 %v83, 0.5
  %v124 = vmul.f32 %v122, 4.0
  %v125 = vmul.f32 %v123, 4.0
  %v126 = vadd.f32 %v120, %v124
  %v127 = vadd.f32 %v121, %v125
  %v128 = vrsqrt.pop %v126
  %v129 = vmul.f32 %v126, %v128
  %vm130 = vcmp.eq.f32.partialorder %v126, inf
  %v131 = vsel %vm130, %v126, %v129
  %vm132 = vcmp.eq.f32.partialorder %v126, 0.0
  %v133 = vand.u32 %v126, 2147483648
  %v134 = vsel %vm132, %v133, %v131
  %v135 = vrsqrt.pop %v127
  %v136 = vmul.f32 %v127, %v135
  %vm137 = vcmp.eq.f32.partialorder %v127, inf
  %v138 = vsel %vm137, %v127, %v136
  %vm139 = vcmp.eq.f32.partialorder %v127, 0.0
  %v140 = vand.u32 %v127, 2147483648
  %v141 = vsel %vm139, %v140, %v138
  %v142 = vsub.f32 %v134, %v74
  %v143 = vsub.f32 %v141, %v75
  %v144 = vmul.f32 %v142, 0.5
  %v145 = vmul.f32 %v143, 0.5
  %v146 = vsub.f32 %v37, 0.5
  %v147 = vsub.f32 %v39, 0.5
  %v148 = vrcp.pop %v20
  %v149 = vrcp.pop %v21
  %v150 = vmul.f32 %v148, 0.5
  %v151 = vmul.f32 %v149, 0.5
  %v152 = vmul.f32 %v146, %v150
  %v153 = vmul.f32 %v147, %v151
  %v154 = vmul.f32 %v66, %v152
  %v155 = vmul.f32 %v67, %v153
  %v156 = vadd.f32 %v102, %v154
  %v157 = vadd.f32 %v103, %v155
  %v158 = vmul.f32 %v156, 2.0
  %v159 = vmul.f32 %v157, 2.0
  %v160 = vmul.f32 %v156, %v156
  %v161 = vmul.f32 %v157, %v157
  %v162 = vsub.f32 -0.5, %v160
  %v163 = vsub.f32 -0.5, %v161
  %v164 = vmul.f32 %v22, %v22
  %v165 = vmul.f32 %v23, %v23
  %v166 = vsub.f32 %v164, %v37
  %v167 = vsub.f32 %v165, %v39
  %v168 = vadd.f32 %v166, 0.5
  %v169 = vadd.f32 %v167, 0.5
  %v170 = vmul.f32 %v168, %v70
  %v171 = vmul.f32 %v169, %v71
  %v172 = vmul.f32 %v170, %v22
  %v173 = vmul.f32 %v171, %v23
  %v174 = vsub.f32 %v164, %v172
  %v175 = vsub.f32 %v165, %v173
  %v176 = vsub.f32 %v174, 0.5
  %v177 = vsub.f32 %v175, 0.5
  %vm178 = vcmp.gt.f32.partialorder %v22, %v144
  %vm179 = vcmp.gt.f32.partialorder %v23, %v145
  %v180 = vsel %vm178, %v170, %v98
  %v181 = vsel %vm179, %v171, %v99
  %v182 = vsel %vm178, %v176, %v100
  %v183 = vsel %vm179, %v177, %v101
  %vm184 = vcmp.le.f32.partialorder %v22, 0.0
  %vm185 = vcmp.le.f32.partialorder %v23, 0.0
  %vm186 = vcmp.ge.f32.partialorder %v20, 0.0
  %vm187 = vcmp.ge.f32.partialorder %v21, 0.0
  %v188 = vsel %vm186, %v108, %v158
  %v189 = vsel %vm187, %v109, %v159
  %v190 = vsel %vm184, %v86, %v188
  %v191 = vsel %vm185, %v87, %v189
  %v192 = vsel %vm186, %v112, %v162
  %v193 = vsel %vm187, %v113, %v163
  %v194 = vsel %vm184, %v96, %v192
  %v195 = vsel %vm185, %v97, %v193
  %v196 = vsel %vm186, %v114, %v180
  %v197 = vsel %vm187, %v115, %v181
  %v198 = vsel %vm184, %v98, %v196
  %v199 = vsel %vm185, %v99, %v197
  %v200 = vsel %vm186, %v118, %v182
  %v201 = vsel %vm187, %v119, %v183
  %v202 = vsel %vm184, %v100, %v200
  %v203 = vsel %vm185, %v101, %v201
  %v204 = vmul.f32 %v190, %v20
  %v205 = vmul.f32 %v191, %v21
  %v206 = vmul.f32 %v190, %v22
  %v207 = vmul.f32 %v191, %v23
  %v208 = vmin.f32 %v204, %v206
  %v209 = vmin.f32 %v205, %v207
  %v210 = vadd.f32 %v208, %v194
  %v211 = vadd.f32 %v209, %v195
  %212 = vst [vmem:[%s3] sm:$0xff] %v210
  %213 = vst [vmem:[%s3 + $0x8] sm:$0xff] %v211
  %v214 = vmul.f32 %v198, %v20
  %v215 = vmul.f32 %v199, %v21
  %v216 = vmul.f32 %v198, %v22
  %v217 = vmul.f32 %v199, %v23
  %v218 = vmax.f32 %v214, %v216
  %v219 = vmax.f32 %v215, %v217
  %v220 = vadd.f32 %v218, %v202
  %v221 = vadd.f32 %v219, %v203
  %222 = vst [vmem:[%s4] sm:$0xff] %v220
  %223 = vst [vmem:[%s4 + $0x8] sm:$0xff] %v221
  %224 = vst [vmem:[%s5] sm:$0xff] %v190
  %225 = vst [vmem:[%s5 + $0x8] sm:$0xff] %v191
  %226 = vst [vmem:[%s6] sm:$0xff] %v198
  %227 = vst [vmem:[%s6 + $0x8] sm:$0xff] %v199
  %228 = vst [vmem:[%s7] sm:$0xff] %v194
  %229 = vst [vmem:[%s7 + $0x8] sm:$0xff] %v195
  %230 = vst [vmem:[%s8] sm:$0xff] %v202
  %231 = vst [vmem:[%s8 + $0x8] sm:$0xff] %v203
  // Predicated region
  $region14: #{_forward_arrays.2} parent=0 // pred_check
    _
  $region15: #{_forward_arrays.2} parent=0 // pred_check_branch
    %233 = sbr.rel (0) target = $region17
  $region16: #{_forward_arrays.2} parent=0 // pred_region
    _
  $region17: #{_forward_arrays.2} parent=0 // pred_fallthru
    _
  // Predicated region
  $region18: #{_forward_arrays.2} parent=0 // pred_check
    _
  $region19: #{_forward_arrays.2} parent=0 // pred_check_branch
    %235 = sbr.rel (0) target = $region21
  $region20: #{_forward_arrays.2} parent=0 // pred_region
    _
  $region21: #{_forward_arrays.2} parent=0 // pred_fallthru
    _
  // Predicated region
  $region22: #{_forward_arrays.2} parent=0 // pred_check
    _
  $region23: #{_forward_arrays.2} parent=0 // pred_check_branch
    %237 = sbr.rel (0) target = $region25
  $region24: #{_forward_arrays.2} parent=0 // pred_region
    _
  $region25: #{_forward_arrays.2} parent=0 // pred_fallthru
    _
  // Predicated region
  $region26: #{_forward_arrays.2} parent=0 // pred_check
    _
  $region27: #{_forward_arrays.2} parent=0 // pred_check_branch
    %239 = sbr.rel (0) target = $region29
  $region28: #{_forward_arrays.2} parent=0 // pred_region
    _
  $region29: #{_forward_arrays.2} parent=0 // pred_fallthru
    _
  // Predicated region
  $region30: #{_forward_arrays.2} parent=0 // pred_check
    _
  $region31: #{_forward_arrays.2} parent=0 // pred_check_branch
    %241 = sbr.rel (0) target = $region33
  $region32: #{_forward_arrays.2} parent=0 // pred_region
    _
  $region33: #{_forward_arrays.2} parent=0 // pred_fallthru
    _
  // Predicated region
  $region34: #{_forward_arrays.2} parent=0 // pred_check
    _
  $region35: #{_forward_arrays.2} parent=0 // pred_check_branch
    %243 = sbr.rel (0) target = $region37
  $region36: #{_forward_arrays.2} parent=0 // pred_region
    _
  $region37: #{_forward_arrays.2} parent=0 // pred_fallthru
    _
  // Predicated region
  $region38: #{_forward_arrays.2} parent=0 // pred_check
    _
  $region39: #{_forward_arrays.2} parent=0 // pred_check_branch
    %245 = sbr.rel (0) target = $region41
  $region40: #{_forward_arrays.2} parent=0 // pred_region
    _
  $region41: #{_forward_arrays.2} parent=0 // pred_fallthru
    _
  // Predicated region
  $region42: #{_forward_arrays.2} parent=0 // pred_check
    _
  $region43: #{_forward_arrays.2} parent=0 // pred_check_branch
    %247 = sbr.rel (0) target = $region45
  $region44: #{_forward_arrays.2} parent=0 // pred_region
    _
  $region45: #{_forward_arrays.2} parent=0 // pred_fallthru
    _
  // Predicated region
  $region46: #{_forward_arrays.2} parent=0 // pred_check
    _
  $region47: #{_forward_arrays.2} parent=0 // pred_check_branch
    %249 = sbr.rel (0) target = $region49
  $region48: #{_forward_arrays.2} parent=0 // pred_region
    _
  $region49: #{_forward_arrays.2} parent=0 // pred_fallthru
    _
  // Predicated region
  $region50: #{_forward_arrays.2} parent=0 // pred_check
    _
  $region51: #{_forward_arrays.2} parent=0 // pred_check_branch
    %251 = sbr.rel (0) target = $region53
  $region52: #{_forward_arrays.2} parent=0 // pred_region
    _
  $region53: #{_forward_arrays.2} parent=0 // pred_fallthru
    _
  // Predicated region
  $region54: #{_forward_arrays.2} parent=0 // pred_check
    _
  $region55: #{_forward_arrays.2} parent=0 // pred_check_branch
    %253 = sbr.rel (0) target = $region57
  $region56: #{_forward_arrays.2} parent=0 // pred_region
    _
  $region57: #{_forward_arrays.2} parent=0 // pred_fallthru
    _
  // Predicated region
  $region58: #{_forward_arrays.2} parent=0 // pred_check
    _
  $region59: #{_forward_arrays.2} parent=0 // pred_check_branch
    %255 = sbr.rel (0) target = $region61
  $region60: #{_forward_arrays.2} parent=0 // pred_region
    _
  $region61: #{_forward_arrays.2} parent=0 // pred_fallthru
    _

// kernel: _forward_arrays.3
$region0: #{_forward_arrays.3}
  #allocation0 [shape = 'u32[]', space=smem, size = 0x4, offset = 0x4, fixed_abs, tag = 'smem constant byte address 0x4 - core index']
  #allocation1 [shape = 'u32[144,128]{1,0:T(1,128)}', space=vmem, size = 0x12000, scoped, tag = 'internal scratch']
  %s0 = inlined_call_operand.vmem [shape: f32[1,2048], index: 0, kind: input, shape index: {}]
  %s1 = inlined_call_operand.vmem [shape: f32[1,2048], index: 1, kind: input, shape index: {}]
  %s2 = inlined_call_operand.hbm [shape: f32[700,700], index: 2, kind: output, shape index: {0}]
  %s3 = inlined_call_operand.hbm [shape: f32[700,700], index: 3, kind: output, shape index: {1}]
  %4 = xla_tuple %s2, %s3
  %s5 = sld [smem:[#allocation0]]
  $region57: #{_forward_arrays.3} parent=0
    _
  %s7 = ssub.s32 1, %s5
  %s8 = scalar_select 0, %s7, %s5
  $region1: #{_forward_arrays.3} parent=0
    #allocation2 [shape = 'u8[3145728]{0}', space=vmem, size = 0x300000, scoped, tag = 'output window, operand 0']
    #allocation3 [shape = 's32[2]{0}', space=sflag, size = 0x8, scoped, tag = 'scoped memory for _forward_arrays.3']
    #allocation4 [shape = 'u8[3145728]{0}', space=vmem, size = 0x300000, scoped, tag = 'output window, operand 1']
    #allocation5 [shape = 's32[2]{0}', space=sflag, size = 0x8, scoped, tag = 'scoped memory for _forward_arrays.3']
    %9 = vsyncpa [#allocation3], 0
    %s10 = scalar_lea.sflag [#allocation3], 1
    %11 = vsyncpa %s10, 0
    %12 = vsyncpa [#allocation5], 0
    %s13 = scalar_lea.sflag [#allocation5], 1
    %14 = vsyncpa %s13, 0
    loop: start=0, step=1, limit=4
    $region2: #{_forward_arrays.3} parent=1 // loop_pre_header
      _
    $region3: #{_forward_arrays.3} parent=1 // loop_header
      %s16 = sphi 0, %s20
      %p17 = scmp.ge.s32.totalorder %s16, 4
      %s23 = sphi 0, %s35
      %s24 = sphi 0, %s31
      %s25 = sphi 0, %s23
      %s26 = sphi 0, %s24
      %s27 = sphi 0, %s25
      %s28 = sphi 0, %s26
      %s38 = sphi 0, %s40
      %s41 = sphi 0, %s38
      %s42 = sphi 0, %s41
      %s58 = sphi 0, %s42
      %s64 = sphi 0, %s66
      %s67 = sphi 0, %s64
      %s68 = sphi 0, %s67
      %s84 = sphi 0, %s68
      %s92 = sphi 0, %s94
      %s95 = sphi 0, %s92
      %s96 = sphi 0, %s95
      %s112 = sphi 0, %s96
      %s120 = sphi 0, %s122
      %s123 = sphi 0, %s120
      %s124 = sphi 0, %s123
      %s140 = sphi 0, %s124
    $region4: #{_forward_arrays.3} parent=1 // loop_header_branch
      %19 = sbr.rel (%p17) target = $region8
    $region5: #{_forward_arrays.3} parent=1 // loop_body
      %s21 = ssub.s32 %s16, 1
      %s22 = ssub.s32 %s16, 2
      %s29 = sadd.s32 1, %s24
      %p30 = scmp.ge.s32.totalorder %s29, 1
      %s31 = scalar_select %p30, 0, %s29
      %s32 = sadd.s32 1, %s23
      %s33 = scalar_select %p30, %s32, %s23
      %p34 = scmp.ge.s32.totalorder %s33, 2
      %s35 = scalar_select %p34, 0, %s33
      %s36 = ssub.s32 %s24, %s31
      %p37 = scmp.eq.s32.totalorder %s36, 0
      %s39 = sadd.s32 %s38, 1
      %s40 = scalar_select %p37, %s38, %s39
      %p43 = pneg %p37
      %p44 = scmp.eq.s32.totalorder %s16, 1
      %p45 = por %p43, %p44
      %p46 = scmp.ne.s32.totalorder %s38, %s41
      %p47 = scmp.eq.s32.totalorder %s16, 0
      %p48 = por %p46, %p47
      %p49 = scmp.ne.s32.totalorder %s38, %s41
      %p50 = scmp.eq.s32.totalorder %s21, 1
      %p51 = por %p49, %p50
      %p52 = scmp.ne.s32.totalorder %s41, %s42
      %p53 = scmp.eq.s32.totalorder %s21, 0
      %p54 = por %p52, %p53
      %p55 = scmp.ne.s32.totalorder %s41, %s42
      %p56 = scmp.eq.s32.totalorder %s22, 1
      %p57 = por %p55, %p56
      %p59 = scmp.ne.s32.totalorder %s42, %s58
      %p60 = scmp.eq.s32.totalorder %s22, 0
      %p61 = por %p59, %p60
      %s62 = ssub.s32 %s24, %s31
      %p63 = scmp.eq.s32.totalorder %s62, 0
      %s65 = sadd.s32 %s64, 1
      %s66 = scalar_select %p63, %s64, %s65
      %p69 = pneg %p63
      %p70 = scmp.eq.s32.totalorder %s16, 1
      %p71 = por %p69, %p70
      %p72 = scmp.ne.s32.totalorder %s64, %s67
      %p73 = scmp.eq.s32.totalorder %s16, 0
      %p74 = por %p72, %p73
      %p75 = scmp.ne.s32.totalorder %s64, %s67
      %p76 = scmp.eq.s32.totalorder %s21, 1
      %p77 = por %p75, %p76
      %p78 = scmp.ne.s32.totalorder %s67, %s68
      %p79 = scmp.eq.s32.totalorder %s21, 0
      %p80 = por %p78, %p79
      %p81 = scmp.ne.s32.totalorder %s67, %s68
      %p82 = scmp.eq.s32.totalorder %s22, 1
      %p83 = por %p81, %p82
      %p85 = scmp.ne.s32.totalorder %s68, %s84
      %p86 = scmp.eq.s32.totalorder %s22, 0
      %p87 = por %p85, %p86
      %s88 = ssub.s32 %s23, %s35
      %s89 = ssub.s32 %s24, %s31
      %s90 = sor.u32 %s88, %s89
      %p91 = scmp.eq.s32.totalorder %s90, 0
      %s93 = sadd.s32 %s92, 1
      %s94 = scalar_select %p91, %s92, %s93
      %p97 = pneg %p91
      %p98 = scmp.eq.s32.totalorder %s16, 1
      %p99 = por %p97, %p98
      %p100 = scmp.ne.s32.totalorder %s92, %s95
      %p101 = scmp.eq.s32.totalorder %s16, 0
      %p102 = por %p100, %p101
      %p103 = scmp.ne.s32.totalorder %s92, %s95
      %p104 = scmp.eq.s32.totalorder %s21, 1
      %p105 = por %p103, %p104
      %p106 = scmp.ne.s32.totalorder %s95, %s96
      %p107 = scmp.eq.s32.totalorder %s21, 0
      %p108 = por %p106, %p107
      %p109 = scmp.ne.s32.totalorder %s95, %s96
      %p110 = scmp.eq.s32.totalorder %s22, 1
      %p111 = por %p109, %p110
      %p113 = scmp.ne.s32.totalorder %s96, %s112
      %p114 = scmp.eq.s32.totalorder %s22, 0
      %p115 = por %p113, %p114
      %s116 = ssub.s32 %s23, %s35
      %s117 = ssub.s32 %s24, %s31
      %s118 = sor.u32 %s116, %s117
      %p119 = scmp.eq.s32.totalorder %s118, 0
      %s121 = sadd.s32 %s120, 1
      %s122 = scalar_select %p119, %s120, %s121
      %p125 = pneg %p119
      %p126 = scmp.eq.s32.totalorder %s16, 1
      %p127 = por %p125, %p126
      %p128 = scmp.ne.s32.totalorder %s120, %s123
      %p129 = scmp.eq.s32.totalorder %s16, 0
      %p130 = por %p128, %p129
      %p131 = scmp.ne.s32.totalorder %s120, %s123
      %p132 = scmp.eq.s32.totalorder %s21, 1
      %p133 = por %p131, %p132
      %p134 = scmp.ne.s32.totalorder %s123, %s124
      %p135 = scmp.eq.s32.totalorder %s21, 0
      %p136 = por %p134, %p135
      %p137 = scmp.ne.s32.totalorder %s123, %s124
      %p138 = scmp.eq.s32.totalorder %s22, 1
      %p139 = por %p137, %p138
      %p141 = scmp.ne.s32.totalorder %s124, %s140
      %p142 = scmp.eq.s32.totalorder %s22, 0
      %p143 = por %p141, %p142
      %p144 = scmp.le.s32.totalorder 1, %s16
      %p145 = scmp.lt.s32.totalorder %s16, 3
      %p146 = pnand %p144, %p145
      %p147 = pneg %p146
      // Predicated region
      $region9: #{_forward_arrays.3} parent=5 // pred_check
        _
      $region10: #{_forward_arrays.3} parent=5 // pred_check_branch
        %149 = sbr.rel (%p146) target = $region12
      $region11: #{_forward_arrays.3} parent=5 // pred_region
        %s150 = ssub.s32 %s16, 1
        // Predicated region
        $region13: #{_forward_arrays.3} parent=11 // pred_check
          %p151 = pneg %p54
        $region14: #{_forward_arrays.3} parent=11 // pred_check_branch
          %153 = sbr.rel (%p151) target = $region16
        $region15: #{_forward_arrays.3} parent=11 // pred_region
          %s154 = smul.u32 6, %s26
          %s155 = ssub.s32 16, %s154
          %p156 = scmp.lt.s32.totalorder %s155, 6
          %s157 = scalar_select %p156, %s155, 6
          %s158 = smul.u32 16, %s157
          %p159 = scmp.lt.s32.totalorder %s154, 15
          %s160 = scalar_select %p159, %s154, 15
          %s161 = scalar_lea.vmem %s0, %s160
          %s162 = smul.u32 6, %s26
          %s163 = ssub.s32 16, %s162
          %p164 = scmp.lt.s32.totalorder %s163, 6
          %s165 = scalar_select %p164, %s163, 6
          %s166 = smul.u32 16, %s165
        $region16: #{_forward_arrays.3} parent=11 // pred_fallthru
          _
        // Predicated region
        $region17: #{_forward_arrays.3} parent=11 // pred_check
          %p167 = pneg %p80
        $region18: #{_forward_arrays.3} parent=11 // pred_check_branch
          %169 = sbr.rel (%p167) target = $region20
        $region19: #{_forward_arrays.3} parent=11 // pred_region
          %s170 = smul.u32 6, %s26
          %s171 = ssub.s32 16, %s170
          %p172 = scmp.lt.s32.totalorder %s171, 6
          %s173 = scalar_select %p172, %s171, 6
          %s174 = smul.u32 16, %s173
          %p175 = scmp.lt.s32.totalorder %s170, 15
          %s176 = scalar_select %p175, %s170, 15
          %s177 = scalar_lea.vmem %s1, %s176
          %s178 = smul.u32 6, %s26
          %s179 = ssub.s32 16, %s178
          %p180 = scmp.lt.s32.totalorder %s179, 6
          %s181 = scalar_select %p180, %s179, 6
          %s182 = smul.u32 16, %s181
        $region20: #{_forward_arrays.3} parent=11 // pred_fallthru
          _
      $region12: #{_forward_arrays.3} parent=5 // pred_fallthru
        _
      %p183 = scmp.lt.s32.totalorder %s16, 2
      // Predicated region
      $region21: #{_forward_arrays.3} parent=5 // pred_check
        %p184 = pneg %p183
      $region22: #{_forward_arrays.3} parent=5 // pred_check_branch
        %186 = sbr.rel (%p184) target = $region24
      $region23: #{_forward_arrays.3} parent=5 // pred_region
        _
      $region24: #{_forward_arrays.3} parent=5 // pred_fallthru
        _
      %p187 = scmp.le.s32.totalorder 1, %s16
      %p188 = scmp.lt.s32.totalorder %s16, 3
      %p189 = pnand %p187, %p188
      %p190 = pneg %p189
      // Predicated region
      $region25: #{_forward_arrays.3} parent=5 // pred_check
        _
      $region26: #{_forward_arrays.3} parent=5 // pred_check_branch
        %192 = sbr.rel (%p189) target = $region28
      $region27: #{_forward_arrays.3} parent=5 // pred_region
        %s193 = ssub.s32 %s16, 1
        %s194 = smul.u32 6, %s26
        %s195 = ssub.s32 16, %s194
        %p196 = scmp.lt.s32.totalorder %s195, 6
        %s197 = scalar_select %p196, %s195, 6
        %s198 = smul.u32 16, %s197
        %p199 = scmp.lt.s32.totalorder %s194, 15
        %s200 = scalar_select %p199, %s194, 15
        %s201 = scalar_lea.vmem %s0, %s200
        %p202 = pneg %p54
        %p203 = pneg %p51
        %s204 = smul.u32 6, %s26
        %s205 = ssub.s32 16, %s204
        %p206 = scmp.lt.s32.totalorder %s205, 6
        %s207 = scalar_select %p206, %s205, 6
        %s208 = smul.u32 16, %s207
        %p209 = scmp.lt.s32.totalorder %s204, 15
        %s210 = scalar_select %p209, %s204, 15
        %s211 = scalar_lea.vmem %s1, %s210
        %p212 = pneg %p80
        %p213 = pneg %p77
        %p214 = pneg %p108
        %p215 = pneg %p105
        %s216 = sand.u32 %s95, 1
        %s217 = scalar_lea.sflag [#allocation3], %s216
        %s218 = sand.u32 %s95, 1
        %s219 = smul.addr %s218, 3072
        %s220 = scalar_lea.vmem [#allocation2], %s219
        %p221 = pneg %p136
        %p222 = pneg %p133
        %s223 = sand.u32 %s123, 1
        %s224 = scalar_lea.sflag [#allocation5], %s223
        %s225 = sand.u32 %s123, 1
        %s226 = smul.addr %s225, 3072
        %s227 = scalar_lea.vmem [#allocation4], %s226
        %s228 = smul.u32 6, %s26
        %s229 = ssub.s32 16, %s228
        %p230 = scmp.lt.s32.totalorder %s229, 6
        %s231 = scalar_select %p230, %s229, 6
        %s232 = smul.u32 16, %s231
        %p233 = scmp.lt.s32.totalorder %s228, 15
        %s234 = scalar_select %p233, %s228, 15
        %s235 = scalar_lea.vmem %s0, %s234
        %s236 = smul.u32 6, %s26
        %s237 = ssub.s32 16, %s236
        %p238 = scmp.lt.s32.totalorder %s237, 6
        %s239 = scalar_select %p238, %s237, 6
        %s240 = smul.u32 16, %s239
        %s241 = smul.u32 6, %s26
        %s242 = ssub.s32 16, %s241
        %p243 = scmp.lt.s32.totalorder %s242, 6
        %s244 = scalar_select %p243, %s242, 6
        %s245 = smul.u32 16, %s244
        %p246 = scmp.lt.s32.totalorder %s241, 15
        %s247 = scalar_select %p246, %s241, 15
        %s248 = scalar_lea.vmem %s1, %s247
        %s249 = smul.u32 6, %s26
        %s250 = ssub.s32 16, %s249
        %p251 = scmp.lt.s32.totalorder %s250, 6
        %s252 = scalar_select %p251, %s250, 6
        %s253 = smul.u32 16, %s252
        %s254 = smul.u32 64, %s25
        %s255 = smul.u32 6, %s26
        %s256 = ssub.s32 88, %s254
        %p257 = scmp.lt.s32.totalorder %s256, 64
        %s258 = scalar_select %p257, %s256, 64
        %s259 = smul.u32 128, %s258
        %s260 = smul.u32 %s259, 6
        %s261 = smul.u32 64, %s25
        %s262 = smul.u32 6, %s26
        %s263 = ssub.s32 88, %s261
        %p264 = scmp.lt.s32.totalorder %s263, 64
        %s265 = scalar_select %p264, %s263, 64
        %s266 = smul.u32 128, %s265
        %s267 = smul.u32 %s266, 6
        %s268 = smul.u32 %s25, 512
        %s269 = smul.u32 %s26, 768
        %s270 = sadd.s32 %s269, 768
        %p271 = scmp.lt.s32.totalorder %s268, %s270
        %s272 = sadd.s32 %s268, 512
        %p273 = scmp.lt.s32.totalorder %s269, %s272
        %p274 = pnand %p271, %p273
        %p275 = pneg %p274
        // Predicated region
        $region29: #{_forward_arrays.3} parent=27 // pred_check
          _
        $region30: #{_forward_arrays.3} parent=27 // pred_check_branch
          %277 = sbr.rel (%p274) target = $region32
        $region31: #{_forward_arrays.3} parent=27 // pred_region
          %v278 = vlaneseq
          %v279 = vshrl.u32 %v278, 7
          %v280 = vadd.s32 %v279, 8
          %v281 = vadd.s32 %v279, 16
          %v282 = vadd.s32 %v279, 24
          %v283 = vadd.s32 %v279, 32
          %v284 = vadd.s32 %v279, 40
          %v285 = vadd.s32 %v279, 48
          %v286 = vadd.s32 %v279, 56
          %v287 = vadd.s32 %v279, 64
          %v288 = vadd.s32 %v279, 72
          %v289 = vadd.s32 %v279, 80
          %v290 = vadd.s32 %v279, 88
          %v291 = vadd.s32 %v279, 96
          %v292 = vadd.s32 %v279, 104
          %v293 = vadd.s32 %v279, 112
          %v294 = vadd.s32 %v279, 120
          %v295 = vadd.s32 %v279, 128
          %v296 = vadd.s32 %v279, 136
          %v297 = vadd.s32 %v279, 144
          %v298 = vadd.s32 %v279, 152
          %v299 = vadd.s32 %v279, 160
          %v300 = vadd.s32 %v279, 168
          %v301 = vadd.s32 %v279, 176
          %v302 = vadd.s32 %v279, 184
          %v303 = vadd.s32 %v279, 192
          %v304 = vadd.s32 %v279, 200
          %v305 = vadd.s32 %v279, 208
          %v306 = vadd.s32 %v279, 216
          %v307 = vadd.s32 %v279, 224
          %v308 = vadd.s32 %v279, 232
          %v309 = vadd.s32 %v279, 240
          %v310 = vadd.s32 %v279, 248
          %v311 = vadd.s32 %v279, 256
          %v312 = vadd.s32 %v279, 264
          %v313 = vadd.s32 %v279, 272
          %v314 = vadd.s32 %v279, 280
          %v315 = vadd.s32 %v279, 288
          %v316 = vadd.s32 %v279, 296
          %v317 = vadd.s32 %v279, 304
          %v318 = vadd.s32 %v279, 312
          %v319 = vadd.s32 %v279, 320
          %v320 = vadd.s32 %v279, 328
          %v321 = vadd.s32 %v279, 336
          %v322 = vadd.s32 %v279, 344
          %v323 = vadd.s32 %v279, 352
          %v324 = vadd.s32 %v279, 360
          %v325 = vadd.s32 %v279, 368
          %v326 = vadd.s32 %v279, 376
          %v327 = vadd.s32 %v279, 384
          %v328 = vadd.s32 %v279, 392
          %v329 = vadd.s32 %v279, 400
          %v330 = vadd.s32 %v279, 408
          %v331 = vadd.s32 %v279, 416
          %v332 = vadd.s32 %v279, 424
          %v333 = vadd.s32 %v279, 432
          %v334 = vadd.s32 %v279, 440
          %v335 = vadd.s32 %v279, 448
          %v336 = vadd.s32 %v279, 456
          %v337 = vadd.s32 %v279, 464
          %v338 = vadd.s32 %v279, 472
          %v339 = vadd.s32 %v279, 480
          %v340 = vadd.s32 %v279, 488
          %v341 = vadd.s32 %v279, 496
          %v342 = vadd.s32 %v279, 504
          %v343 = vstv %s268
          %v344 = vadd.s32 %v279, %v343
          %v345 = vadd.s32 %v280, %v343
          %v346 = vadd.s32 %v281, %v343
          %v347 = vadd.s32 %v282, %v343
          %v348 = vadd.s32 %v283, %v343
          %v349 = vadd.s32 %v284, %v343
          %v350 = vadd.s32 %v285, %v343
          %v351 = vadd.s32 %v286, %v343
          %v352 = vadd.s32 %v287, %v343
          %v353 = vadd.s32 %v288, %v343
          %v354 = vadd.s32 %v289, %v343
          %v355 = vadd.s32 %v290, %v343
          %v356 = vadd.s32 %v291, %v343
          %v357 = vadd.s32 %v292, %v343
          %v358 = vadd.s32 %v293, %v343
          %v359 = vadd.s32 %v294, %v343
          %v360 = vadd.s32 %v295, %v343
          %v361 = vadd.s32 %v296, %v343
          %v362 = vadd.s32 %v297, %v343
          %v363 = vadd.s32 %v298, %v343
          %v364 = vadd.s32 %v299, %v343
          %v365 = vadd.s32 %v300, %v343
          %v366 = vadd.s32 %v301, %v343
          %v367 = vadd.s32 %v302, %v343
          %v368 = vadd.s32 %v303, %v343
          %v369 = vadd.s32 %v304, %v343
          %v370 = vadd.s32 %v305, %v343
          %v371 = vadd.s32 %v306, %v343
          %v372 = vadd.s32 %v307, %v343
          %v373 = vadd.s32 %v308, %v343
          %v374 = vadd.s32 %v309, %v343
          %v375 = vadd.s32 %v310, %v343
          %v376 = vadd.s32 %v311, %v343
          %v377 = vadd.s32 %v312, %v343
          %v378 = vadd.s32 %v313, %v343
          %v379 = vadd.s32 %v314, %v343
          %v380 = vadd.s32 %v315, %v343
          %v381 = vadd.s32 %v316, %v343
          %v382 = vadd.s32 %v317, %v343
          %v383 = vadd.s32 %v318, %v343
          %v384 = vadd.s32 %v319, %v343
          %v385 = vadd.s32 %v320, %v343
          %v386 = vadd.s32 %v321, %v343
          %v387 = vadd.s32 %v322, %v343
          %v388 = vadd.s32 %v323, %v343
          %v389 = vadd.s32 %v324, %v343
          %v390 = vadd.s32 %v325, %v343
          %v391 = vadd.s32 %v326, %v343
          %v392 = vadd.s32 %v327, %v343
          %v393 = vadd.s32 %v328, %v343
          %v394 = vadd.s32 %v329, %v343
          %v395 = vadd.s32 %v330, %v343
          %v396 = vadd.s32 %v331, %v343
          %v397 = vadd.s32 %v332, %v343
          %v398 = vadd.s32 %v333, %v343
          %v399 = vadd.s32 %v334, %v343
          %v400 = vadd.s32 %v335, %v343
          %v401 = vadd.s32 %v336, %v343
          %v402 = vadd.s32 %v337, %v343
          %v403 = vadd.s32 %v338, %v343
          %v404 = vadd.s32 %v339, %v343
          %v405 = vadd.s32 %v340, %v343
          %v406 = vadd.s32 %v341, %v343
          %v407 = vadd.s32 %v342, %v343
          %v408 = vlaneseq
          %v409 = vand.u32 %v408, 127
          %v410 = vadd.s32 %v409, 128
          %v411 = vadd.s32 %v409, 256
          %v412 = vadd.s32 %v409, 384
          %v413 = vadd.s32 %v409, 512
          %v414 = vadd.s32 %v409, 640
          %v415 = vstv %s269
          %v416 = vadd.s32 %v409, %v415
          %v417 = vadd.s32 %v410, %v415
          %v418 = vadd.s32 %v411, %v415
          %v419 = vadd.s32 %v412, %v415
          %v420 = vadd.s32 %v413, %v415
          %v421 = vadd.s32 %v414, %v415
          %vm422 = vcmp.eq.s32.totalorder %v344, %v416
          %vm423 = vcmp.eq.s32.totalorder %v344, %v417
          %vm424 = vcmp.eq.s32.totalorder %v344, %v418
          %vm425 = vcmp.eq.s32.totalorder %v344, %v419
          %vm426 = vcmp.eq.s32.totalorder %v344, %v420
          %vm427 = vcmp.eq.s32.totalorder %v344, %v421
          %vm428 = vcmp.eq.s32.totalorder %v345, %v416
          %vm429 = vcmp.eq.s32.totalorder %v345, %v417
          %vm430 = vcmp.eq.s32.totalorder %v345, %v418
          %vm431 = vcmp.eq.s32.totalorder %v345, %v419
          %vm432 = vcmp.eq.s32.totalorder %v345, %v420
          %vm433 = vcmp.eq.s32.totalorder %v345, %v421
          %vm434 = vcmp.eq.s32.totalorder %v346, %v416
          %vm435 = vcmp.eq.s32.totalorder %v346, %v417
          %vm436 = vcmp.eq.s32.totalorder %v346, %v418
          %vm437 = vcmp.eq.s32.totalorder %v346, %v419
          %vm438 = vcmp.eq.s32.totalorder %v346, %v420
          %vm439 = vcmp.eq.s32.totalorder %v346, %v421
          %vm440 = vcmp.eq.s32.totalorder %v347, %v416
          %vm441 = vcmp.eq.s32.totalorder %v347, %v417
          %vm442 = vcmp.eq.s32.totalorder %v347, %v418
          %vm443 = vcmp.eq.s32.totalorder %v347, %v419
          %vm444 = vcmp.eq.s32.totalorder %v347, %v420
          %vm445 = vcmp.eq.s32.totalorder %v347, %v421
          %vm446 = vcmp.eq.s32.totalorder %v348, %v416
          %vm447 = vcmp.eq.s32.totalorder %v348, %v417
          %vm448 = vcmp.eq.s32.totalorder %v348, %v418
          %vm449 = vcmp.eq.s32.totalorder %v348, %v419
          %vm450 = vcmp.eq.s32.totalorder %v348, %v420
          %vm451 = vcmp.eq.s32.totalorder %v348, %v421
          %vm452 = vcmp.eq.s32.totalorder %v349, %v416
          %vm453 = vcmp.eq.s32.totalorder %v349, %v417
          %vm454 = vcmp.eq.s32.totalorder %v349, %v418
          %vm455 = vcmp.eq.s32.totalorder %v349, %v419
          %vm456 = vcmp.eq.s32.totalorder %v349, %v420
          %vm457 = vcmp.eq.s32.totalorder %v349, %v421
          %vm458 = vcmp.eq.s32.totalorder %v350, %v416
          %vm459 = vcmp.eq.s32.totalorder %v350, %v417
          %vm460 = vcmp.eq.s32.totalorder %v350, %v418
          %vm461 = vcmp.eq.s32.totalorder %v350, %v419
          %vm462 = vcmp.eq.s32.totalorder %v350, %v420
          %vm463 = vcmp.eq.s32.totalorder %v350, %v421
          %vm464 = vcmp.eq.s32.totalorder %v351, %v416
          %vm465 = vcmp.eq.s32.totalorder %v351, %v417
          %vm466 = vcmp.eq.s32.totalorder %v351, %v418
          %vm467 = vcmp.eq.s32.totalorder %v351, %v419
          %vm468 = vcmp.eq.s32.totalorder %v351, %v420
          %vm469 = vcmp.eq.s32.totalorder %v351, %v421
          %vm470 = vcmp.eq.s32.totalorder %v352, %v416
          %vm471 = vcmp.eq.s32.totalorder %v352, %v417
          %vm472 = vcmp.eq.s32.totalorder %v352, %v418
          %vm473 = vcmp.eq.s32.totalorder %v352, %v419
          %vm474 = vcmp.eq.s32.totalorder %v352, %v420
          %vm475 = vcmp.eq.s32.totalorder %v352, %v421
          %vm476 = vcmp.eq.s32.totalorder %v353, %v416
          %vm477 = vcmp.eq.s32.totalorder %v353, %v417
          %vm478 = vcmp.eq.s32.totalorder %v353, %v418
          %vm479 = vcmp.eq.s32.totalorder %v353, %v419
          %vm480 = vcmp.eq.s32.totalorder %v353, %v420
          %vm481 = vcmp.eq.s32.totalorder %v353, %v421
          %vm482 = vcmp.eq.s32.totalorder %v354, %v416
          %vm483 = vcmp.eq.s32.totalorder %v354, %v417
          %vm484 = vcmp.eq.s32.totalorder %v354, %v418
          %vm485 = vcmp.eq.s32.totalorder %v354, %v419
          %vm486 = vcmp.eq.s32.totalorder %v354, %v420
          %vm487 = vcmp.eq.s32.totalorder %v354, %v421
          %vm488 = vcmp.eq.s32.totalorder %v355, %v416
          %vm489 = vcmp.eq.s32.totalorder %v355, %v417
          %vm490 = vcmp.eq.s32.totalorder %v355, %v418
          %vm491 = vcmp.eq.s32.totalorder %v355, %v419
          %vm492 = vcmp.eq.s32.totalorder %v355, %v420
          %vm493 = vcmp.eq.s32.totalorder %v355, %v421
          %vm494 = vcmp.eq.s32.totalorder %v356, %v416
          %vm495 = vcmp.eq.s32.totalorder %v356, %v417
          %vm496 = vcmp.eq.s32.totalorder %v356, %v418
          %vm497 = vcmp.eq.s32.totalorder %v356, %v419
          %vm498 = vcmp.eq.s32.totalorder %v356, %v420
          %vm499 = vcmp.eq.s32.totalorder %v356, %v421
          %vm500 = vcmp.eq.s32.totalorder %v357, %v416
          %vm501 = vcmp.eq.s32.totalorder %v357, %v417
          %vm502 = vcmp.eq.s32.totalorder %v357, %v418
          %vm503 = vcmp.eq.s32.totalorder %v357, %v419
          %vm504 = vcmp.eq.s32.totalorder %v357, %v420
          %vm505 = vcmp.eq.s32.totalorder %v357, %v421
          %vm506 = vcmp.eq.s32.totalorder %v358, %v416
          %vm507 = vcmp.eq.s32.totalorder %v358, %v417
          %vm508 = vcmp.eq.s32.totalorder %v358, %v418
          %vm509 = vcmp.eq.s32.totalorder %v358, %v419
          %vm510 = vcmp.eq.s32.totalorder %v358, %v420
          %vm511 = vcmp.eq.s32.totalorder %v358, %v421
          %vm512 = vcmp.eq.s32.totalorder %v359, %v416
          %vm513 = vcmp.eq.s32.totalorder %v359, %v417
          %vm514 = vcmp.eq.s32.totalorder %v359, %v418
          %vm515 = vcmp.eq.s32.totalorder %v359, %v419
          %vm516 = vcmp.eq.s32.totalorder %v359, %v420
          %vm517 = vcmp.eq.s32.totalorder %v359, %v421
          %vm518 = vcmp.eq.s32.totalorder %v360, %v416
          %vm519 = vcmp.eq.s32.totalorder %v360, %v417
          %vm520 = vcmp.eq.s32.totalorder %v360, %v418
          %vm521 = vcmp.eq.s32.totalorder %v360, %v419
          %vm522 = vcmp.eq.s32.totalorder %v360, %v420
          %vm523 = vcmp.eq.s32.totalorder %v360, %v421
          %vm524 = vcmp.eq.s32.totalorder %v361, %v416
          %vm525 = vcmp.eq.s32.totalorder %v361, %v417
          %vm526 = vcmp.eq.s32.totalorder %v361, %v418
          %vm527 = vcmp.eq.s32.totalorder %v361, %v419
          %vm528 = vcmp.eq.s32.totalorder %v361, %v420
          %vm529 = vcmp.eq.s32.totalorder %v361, %v421
          %vm530 = vcmp.eq.s32.totalorder %v362, %v416
          %vm531 = vcmp.eq.s32.totalorder %v362, %v417
          %vm532 = vcmp.eq.s32.totalorder %v362, %v418
          %vm533 = vcmp.eq.s32.totalorder %v362, %v419
          %vm534 = vcmp.eq.s32.totalorder %v362, %v420
          %vm535 = vcmp.eq.s32.totalorder %v362, %v421
          %vm536 = vcmp.eq.s32.totalorder %v363, %v416
          %vm537 = vcmp.eq.s32.totalorder %v363, %v417
          %vm538 = vcmp.eq.s32.totalorder %v363, %v418
          %vm539 = vcmp.eq.s32.totalorder %v363, %v419
          %vm540 = vcmp.eq.s32.totalorder %v363, %v420
          %vm541 = vcmp.eq.s32.totalorder %v363, %v421
          %vm542 = vcmp.eq.s32.totalorder %v364, %v416
          %vm543 = vcmp.eq.s32.totalorder %v364, %v417
          %vm544 = vcmp.eq.s32.totalorder %v364, %v418
          %vm545 = vcmp.eq.s32.totalorder %v364, %v419
          %vm546 = vcmp.eq.s32.totalorder %v364, %v420
          %vm547 = vcmp.eq.s32.totalorder %v364, %v421
          %vm548 = vcmp.eq.s32.totalorder %v365, %v416
          %vm549 = vcmp.eq.s32.totalorder %v365, %v417
          %vm550 = vcmp.eq.s32.totalorder %v365, %v418
          %vm551 = vcmp.eq.s32.totalorder %v365, %v419
          %vm552 = vcmp.eq.s32.totalorder %v365, %v420
          %vm553 = vcmp.eq.s32.totalorder %v365, %v421
          %vm554 = vcmp.eq.s32.totalorder %v366, %v416
          %vm555 = vcmp.eq.s32.totalorder %v366, %v417
          %vm556 = vcmp.eq.s32.totalorder %v366, %v418
          %vm557 = vcmp.eq.s32.totalorder %v366, %v419
          %vm558 = vcmp.eq.s32.totalorder %v366, %v420
          %vm559 = vcmp.eq.s32.totalorder %v366, %v421
          %vm560 = vcmp.eq.s32.totalorder %v367, %v416
          %vm561 = vcmp.eq.s32.totalorder %v367, %v417
          %vm562 = vcmp.eq.s32.totalorder %v367, %v418
          %vm563 = vcmp.eq.s32.totalorder %v367, %v419
          %vm564 = vcmp.eq.s32.totalorder %v367, %v420
          %vm565 = vcmp.eq.s32.totalorder %v367, %v421
          %vm566 = vcmp.eq.s32.totalorder %v368, %v416
          %vm567 = vcmp.eq.s32.totalorder %v368, %v417
          %vm568 = vcmp.eq.s32.totalorder %v368, %v418
          %vm569 = vcmp.eq.s32.totalorder %v368, %v419
          %vm570 = vcmp.eq.s32.totalorder %v368, %v420
          %vm571 = vcmp.eq.s32.totalorder %v368, %v421
          %vm572 = vcmp.eq.s32.totalorder %v369, %v416
          %vm573 = vcmp.eq.s32.totalorder %v369, %v417
          %vm574 = vcmp.eq.s32.totalorder %v369, %v418
          %vm575 = vcmp.eq.s32.totalorder %v369, %v419
          %vm576 = vcmp.eq.s32.totalorder %v369, %v420
          %vm577 = vcmp.eq.s32.totalorder %v369, %v421
          %vm578 = vcmp.eq.s32.totalorder %v370, %v416
          %vm579 = vcmp.eq.s32.totalorder %v370, %v417
          %vm580 = vcmp.eq.s32.totalorder %v370, %v418
          %vm581 = vcmp.eq.s32.totalorder %v370, %v419
          %vm582 = vcmp.eq.s32.totalorder %v370, %v420
          %vm583 = vcmp.eq.s32.totalorder %v370, %v421
          %vm584 = vcmp.eq.s32.totalorder %v371, %v416
          %vm585 = vcmp.eq.s32.totalorder %v371, %v417
          %vm586 = vcmp.eq.s32.totalorder %v371, %v418
          %vm587 = vcmp.eq.s32.totalorder %v371, %v419
          %vm588 = vcmp.eq.s32.totalorder %v371, %v420
          %vm589 = vcmp.eq.s32.totalorder %v371, %v421
          %vm590 = vcmp.eq.s32.totalorder %v372, %v416
          %vm591 = vcmp.eq.s32.totalorder %v372, %v417
          %vm592 = vcmp.eq.s32.totalorder %v372, %v418
          %vm593 = vcmp.eq.s32.totalorder %v372, %v419
          %vm594 = vcmp.eq.s32.totalorder %v372, %v420
          %vm595 = vcmp.eq.s32.totalorder %v372, %v421
          %vm596 = vcmp.eq.s32.totalorder %v373, %v416
          %vm597 = vcmp.eq.s32.totalorder %v373, %v417
          %vm598 = vcmp.eq.s32.totalorder %v373, %v418
          %vm599 = vcmp.eq.s32.totalorder %v373, %v419
          %vm600 = vcmp.eq.s32.totalorder %v373, %v420
          %vm601 = vcmp.eq.s32.totalorder %v373, %v421
          %vm602 = vcmp.eq.s32.totalorder %v374, %v416
          %vm603 = vcmp.eq.s32.totalorder %v374, %v417
          %vm604 = vcmp.eq.s32.totalorder %v374, %v418
          %vm605 = vcmp.eq.s32.totalorder %v374, %v419
          %vm606 = vcmp.eq.s32.totalorder %v374, %v420
          %vm607 = vcmp.eq.s32.totalorder %v374, %v421
          %vm608 = vcmp.eq.s32.totalorder %v375, %v416
          %vm609 = vcmp.eq.s32.totalorder %v375, %v417
          %vm610 = vcmp.eq.s32.totalorder %v375, %v418
          %vm611 = vcmp.eq.s32.totalorder %v375, %v419
          %vm612 = vcmp.eq.s32.totalorder %v375, %v420
          %vm613 = vcmp.eq.s32.totalorder %v375, %v421
          %vm614 = vcmp.eq.s32.totalorder %v376, %v416
          %vm615 = vcmp.eq.s32.totalorder %v376, %v417
          %vm616 = vcmp.eq.s32.totalorder %v376, %v418
          %vm617 = vcmp.eq.s32.totalorder %v376, %v419
          %vm618 = vcmp.eq.s32.totalorder %v376, %v420
          %vm619 = vcmp.eq.s32.totalorder %v376, %v421
          %vm620 = vcmp.eq.s32.totalorder %v377, %v416
          %vm621 = vcmp.eq.s32.totalorder %v377, %v417
          %vm622 = vcmp.eq.s32.totalorder %v377, %v418
          %vm623 = vcmp.eq.s32.totalorder %v377, %v419
          %vm624 = vcmp.eq.s32.totalorder %v377, %v420
          %vm625 = vcmp.eq.s32.totalorder %v377, %v421
          %vm626 = vcmp.eq.s32.totalorder %v378, %v416
          %vm627 = vcmp.eq.s32.totalorder %v378, %v417
          %vm628 = vcmp.eq.s32.totalorder %v378, %v418
          %vm629 = vcmp.eq.s32.totalorder %v378, %v419
          %vm630 = vcmp.eq.s32.totalorder %v378, %v420
          %vm631 = vcmp.eq.s32.totalorder %v378, %v421
          %vm632 = vcmp.eq.s32.totalorder %v379, %v416
          %vm633 = vcmp.eq.s32.totalorder %v379, %v417
          %vm634 = vcmp.eq.s32.totalorder %v379, %v418
          %vm635 = vcmp.eq.s32.totalorder %v379, %v419
          %vm636 = vcmp.eq.s32.totalorder %v379, %v420
          %vm637 = vcmp.eq.s32.totalorder %v379, %v421
          %vm638 = vcmp.eq.s32.totalorder %v380, %v416
          %vm639 = vcmp.eq.s32.totalorder %v380, %v417
          %vm640 = vcmp.eq.s32.totalorder %v380, %v418
          %vm641 = vcmp.eq.s32.totalorder %v380, %v419
          %vm642 = vcmp.eq.s32.totalorder %v380, %v420
          %vm643 = vcmp.eq.s32.totalorder %v380, %v421
          %vm644 = vcmp.eq.s32.totalorder %v381, %v416
          %vm645 = vcmp.eq.s32.totalorder %v381, %v417
          %vm646 = vcmp.eq.s32.totalorder %v381, %v418
          %vm647 = vcmp.eq.s32.totalorder %v381, %v419
          %vm648 = vcmp.eq.s32.totalorder %v381, %v420
          %vm649 = vcmp.eq.s32.totalorder %v381, %v421
          %vm650 = vcmp.eq.s32.totalorder %v382, %v416
          %vm651 = vcmp.eq.s32.totalorder %v382, %v417
          %vm652 = vcmp.eq.s32.totalorder %v382, %v418
          %vm653 = vcmp.eq.s32.totalorder %v382, %v419
          %vm654 = vcmp.eq.s32.totalorder %v382, %v420
          %vm655 = vcmp.eq.s32.totalorder %v382, %v421
          %vm656 = vcmp.eq.s32.totalorder %v383, %v416
          %vm657 = vcmp.eq.s32.totalorder %v383, %v417
          %vm658 = vcmp.eq.s32.totalorder %v383, %v418
          %vm659 = vcmp.eq.s32.totalorder %v383, %v419
          %vm660 = vcmp.eq.s32.totalorder %v383, %v420
          %vm661 = vcmp.eq.s32.totalorder %v383, %v421
          %vm662 = vcmp.eq.s32.totalorder %v384, %v416
          %vm663 = vcmp.eq.s32.totalorder %v384, %v417
          %vm664 = vcmp.eq.s32.totalorder %v384, %v418
          %vm665 = vcmp.eq.s32.totalorder %v384, %v419
          %vm666 = vcmp.eq.s32.totalorder %v384, %v420
          %vm667 = vcmp.eq.s32.totalorder %v384, %v421
          %vm668 = vcmp.eq.s32.totalorder %v385, %v416
          %vm669 = vcmp.eq.s32.totalorder %v385, %v417
          %vm670 = vcmp.eq.s32.totalorder %v385, %v418
          %vm671 = vcmp.eq.s32.totalorder %v385, %v419
          %vm672 = vcmp.eq.s32.totalorder %v385, %v420
          %vm673 = vcmp.eq.s32.totalorder %v385, %v421
          %vm674 = vcmp.eq.s32.totalorder %v386, %v416
          %vm675 = vcmp.eq.s32.totalorder %v386, %v417
          %vm676 = vcmp.eq.s32.totalorder %v386, %v418
          %vm677 = vcmp.eq.s32.totalorder %v386, %v419
          %vm678 = vcmp.eq.s32.totalorder %v386, %v420
          %vm679 = vcmp.eq.s32.totalorder %v386, %v421
          %vm680 = vcmp.eq.s32.totalorder %v387, %v416
          %vm681 = vcmp.eq.s32.totalorder %v387, %v417
          %vm682 = vcmp.eq.s32.totalorder %v387, %v418
          %vm683 = vcmp.eq.s32.totalorder %v387, %v419
          %vm684 = vcmp.eq.s32.totalorder %v387, %v420
          %vm685 = vcmp.eq.s32.totalorder %v387, %v421
          %vm686 = vcmp.eq.s32.totalorder %v388, %v416
          %vm687 = vcmp.eq.s32.totalorder %v388, %v417
          %vm688 = vcmp.eq.s32.totalorder %v388, %v418
          %vm689 = vcmp.eq.s32.totalorder %v388, %v419
          %vm690 = vcmp.eq.s32.totalorder %v388, %v420
          %vm691 = vcmp.eq.s32.totalorder %v388, %v421
          %vm692 = vcmp.eq.s32.totalorder %v389, %v416
          %vm693 = vcmp.eq.s32.totalorder %v389, %v417
          %vm694 = vcmp.eq.s32.totalorder %v389, %v418
          %vm695 = vcmp.eq.s32.totalorder %v389, %v419
          %vm696 = vcmp.eq.s32.totalorder %v389, %v420
          %vm697 = vcmp.eq.s32.totalorder %v389, %v421
          %vm698 = vcmp.eq.s32.totalorder %v390, %v416
          %vm699 = vcmp.eq.s32.totalorder %v390, %v417
          %vm700 = vcmp.eq.s32.totalorder %v390, %v418
          %vm701 = vcmp.eq.s32.totalorder %v390, %v419
          %vm702 = vcmp.eq.s32.totalorder %v390, %v420
          %vm703 = vcmp.eq.s32.totalorder %v390, %v421
          %vm704 = vcmp.eq.s32.totalorder %v391, %v416
          %vm705 = vcmp.eq.s32.totalorder %v391, %v417
          %vm706 = vcmp.eq.s32.totalorder %v391, %v418
          %vm707 = vcmp.eq.s32.totalorder %v391, %v419
          %vm708 = vcmp.eq.s32.totalorder %v391, %v420
          %vm709 = vcmp.eq.s32.totalorder %v391, %v421
          %vm710 = vcmp.eq.s32.totalorder %v392, %v416
          %vm711 = vcmp.eq.s32.totalorder %v392, %v417
          %vm712 = vcmp.eq.s32.totalorder %v392, %v418
          %vm713 = vcmp.eq.s32.totalorder %v392, %v419
          %vm714 = vcmp.eq.s32.totalorder %v392, %v420
          %vm715 = vcmp.eq.s32.totalorder %v392, %v421
          %vm716 = vcmp.eq.s32.totalorder %v393, %v416
          %vm717 = vcmp.eq.s32.totalorder %v393, %v417
          %vm718 = vcmp.eq.s32.totalorder %v393, %v418
          %vm719 = vcmp.eq.s32.totalorder %v393, %v419
          %vm720 = vcmp.eq.s32.totalorder %v393, %v420
          %vm721 = vcmp.eq.s32.totalorder %v393, %v421
          %vm722 = vcmp.eq.s32.totalorder %v394, %v416
          %vm723 = vcmp.eq.s32.totalorder %v394, %v417
          %vm724 = vcmp.eq.s32.totalorder %v394, %v418
          %vm725 = vcmp.eq.s32.totalorder %v394, %v419
          %vm726 = vcmp.eq.s32.totalorder %v394, %v420
          %vm727 = vcmp.eq.s32.totalorder %v394, %v421
          %vm728 = vcmp.eq.s32.totalorder %v395, %v416
          %vm729 = vcmp.eq.s32.totalorder %v395, %v417
          %vm730 = vcmp.eq.s32.totalorder %v395, %v418
          %vm731 = vcmp.eq.s32.totalorder %v395, %v419
          %vm732 = vcmp.eq.s32.totalorder %v395, %v420
          %vm733 = vcmp.eq.s32.totalorder %v395, %v421
          %vm734 = vcmp.eq.s32.totalorder %v396, %v416
          %vm735 = vcmp.eq.s32.totalorder %v396, %v417
          %vm736 = vcmp.eq.s32.totalorder %v396, %v418
          %vm737 = vcmp.eq.s32.totalorder %v396, %v419
          %vm738 = vcmp.eq.s32.totalorder %v396, %v420
          %vm739 = vcmp.eq.s32.totalorder %v396, %v421
          %vm740 = vcmp.eq.s32.totalorder %v397, %v416
          %vm741 = vcmp.eq.s32.totalorder %v397, %v417
          %vm742 = vcmp.eq.s32.totalorder %v397, %v418
          %vm743 = vcmp.eq.s32.totalorder %v397, %v419
          %vm744 = vcmp.eq.s32.totalorder %v397, %v420
          %vm745 = vcmp.eq.s32.totalorder %v397, %v421
          %vm746 = vcmp.eq.s32.totalorder %v398, %v416
          %vm747 = vcmp.eq.s32.totalorder %v398, %v417
          %vm748 = vcmp.eq.s32.totalorder %v398, %v418
          %vm749 = vcmp.eq.s32.totalorder %v398, %v419
          %vm750 = vcmp.eq.s32.totalorder %v398, %v420
          %vm751 = vcmp.eq.s32.totalorder %v398, %v421
          %vm752 = vcmp.eq.s32.totalorder %v399, %v416
          %vm753 = vcmp.eq.s32.totalorder %v399, %v417
          %vm754 = vcmp.eq.s32.totalorder %v399, %v418
          %vm755 = vcmp.eq.s32.totalorder %v399, %v419
          %vm756 = vcmp.eq.s32.totalorder %v399, %v420
          %vm757 = vcmp.eq.s32.totalorder %v399, %v421
          %vm758 = vcmp.eq.s32.totalorder %v400, %v416
          %vm759 = vcmp.eq.s32.totalorder %v400, %v417
          %vm760 = vcmp.eq.s32.totalorder %v400, %v418
          %vm761 = vcmp.eq.s32.totalorder %v400, %v419
          %vm762 = vcmp.eq.s32.totalorder %v400, %v420
          %vm763 = vcmp.eq.s32.totalorder %v400, %v421
          %vm764 = vcmp.eq.s32.totalorder %v401, %v416
          %vm765 = vcmp.eq.s32.totalorder %v401, %v417
          %vm766 = vcmp.eq.s32.totalorder %v401, %v418
          %vm767 = vcmp.eq.s32.totalorder %v401, %v419
          %vm768 = vcmp.eq.s32.totalorder %v401, %v420
          %vm769 = vcmp.eq.s32.totalorder %v401, %v421
          %vm770 = vcmp.eq.s32.totalorder %v402, %v416
          %vm771 = vcmp.eq.s32.totalorder %v402, %v417
          %vm772 = vcmp.eq.s32.totalorder %v402, %v418
          %vm773 = vcmp.eq.s32.totalorder %v402, %v419
          %vm774 = vcmp.eq.s32.totalorder %v402, %v420
          %vm775 = vcmp.eq.s32.totalorder %v402, %v421
          %vm776 = vcmp.eq.s32.totalorder %v403, %v416
          %vm777 = vcmp.eq.s32.totalorder %v403, %v417
          %vm778 = vcmp.eq.s32.totalorder %v403, %v418
          %vm779 = vcmp.eq.s32.totalorder %v403, %v419
          %vm780 = vcmp.eq.s32.totalorder %v403, %v420
          %vm781 = vcmp.eq.s32.totalorder %v403, %v421
          %vm782 = vcmp.eq.s32.totalorder %v404, %v416
          %vm783 = vcmp.eq.s32.totalorder %v404, %v417
          %vm784 = vcmp.eq.s32.totalorder %v404, %v418
          %vm785 = vcmp.eq.s32.totalorder %v404, %v419
          %vm786 = vcmp.eq.s32.totalorder %v404, %v420
          %vm787 = vcmp.eq.s32.totalorder %v404, %v421
          %vm788 = vcmp.eq.s32.totalorder %v405, %v416
          %vm789 = vcmp.eq.s32.totalorder %v405, %v417
          %vm790 = vcmp.eq.s32.totalorder %v405, %v418
          %vm791 = vcmp.eq.s32.totalorder %v405, %v419
          %vm792 = vcmp.eq.s32.totalorder %v405, %v420
          %vm793 = vcmp.eq.s32.totalorder %v405, %v421
          %vm794 = vcmp.eq.s32.totalorder %v406, %v416
          %vm795 = vcmp.eq.s32.totalorder %v406, %v417
          %vm796 = vcmp.eq.s32.totalorder %v406, %v418
          %vm797 = vcmp.eq.s32.totalorder %v406, %v419
          %vm798 = vcmp.eq.s32.totalorder %v406, %v420
          %vm799 = vcmp.eq.s32.totalorder %v406, %v421
          %vm800 = vcmp.eq.s32.totalorder %v407, %v416
          %vm801 = vcmp.eq.s32.totalorder %v407, %v417
          %vm802 = vcmp.eq.s32.totalorder %v407, %v418
          %vm803 = vcmp.eq.s32.totalorder %v407, %v419
          %vm804 = vcmp.eq.s32.totalorder %v407, %v420
          %vm805 = vcmp.eq.s32.totalorder %v407, %v421
          %v806 = vld [vmem:[%s235] sm:$0x3f]
          %v808 = vlaneseq
          %v809 = vshrl.u32 %v808, 7
          %v810 = vsub.s32 0, %v809
          %v811 = vrot.slane %v806, %v810
          %v812 = vlaneseq
          %v813 = vshrl.u32 %v812, 7
          %v814 = vsub.s32 1, %v813
          %v815 = vrot.slane %v806, %v814
          %v816 = vlaneseq
          %v817 = vshrl.u32 %v816, 7
          %v818 = vsub.s32 2, %v817
          %v819 = vrot.slane %v806, %v818
          %v820 = vlaneseq
          %v821 = vshrl.u32 %v820, 7
          %v822 = vsub.s32 3, %v821
          %v823 = vrot.slane %v806, %v822
          %v824 = vlaneseq
          %v825 = vshrl.u32 %v824, 7
          %v826 = vsub.s32 4, %v825
          %v827 = vrot.slane %v806, %v826
          %v828 = vlaneseq
          %v829 = vshrl.u32 %v828, 7
          %v830 = vsub.s32 5, %v829
          %v831 = vrot.slane %v806, %v830
          %v838 = vsel %vm422, %v811, 0.0
          %v839 = vsel %vm423, %v815, 0.0
          %v840 = vsel %vm424, %v819, 0.0
          %v841 = vsel %vm425, %v823, 0.0
          %v842 = vsel %vm426, %v827, 0.0
          %v843 = vsel %vm427, %v831, 0.0
          %v844 = vsel %vm428, %v811, 0.0
          %v845 = vsel %vm429, %v815, 0.0
          %v846 = vsel %vm430, %v819, 0.0
          %v847 = vsel %vm431, %v823, 0.0
          %v848 = vsel %vm432, %v827, 0.0
          %v849 = vsel %vm433, %v831, 0.0
          %v850 = vsel %vm434, %v811, 0.0
          %v851 = vsel %vm435, %v815, 0.0
          %v852 = vsel %vm436, %v819, 0.0
          %v853 = vsel %vm437, %v823, 0.0
          %v854 = vsel %vm438, %v827, 0.0
          %v855 = vsel %vm439, %v831, 0.0
          %v856 = vsel %vm440, %v811, 0.0
          %v857 = vsel %vm441, %v815, 0.0
          %v858 = vsel %vm442, %v819, 0.0
          %v859 = vsel %vm443, %v823, 0.0
          %v860 = vsel %vm444, %v827, 0.0
          %v861 = vsel %vm445, %v831, 0.0
          %v862 = vsel %vm446, %v811, 0.0
          %v863 = vsel %vm447, %v815, 0.0
          %v864 = vsel %vm448, %v819, 0.0
          %v865 = vsel %vm449, %v823, 0.0
          %v866 = vsel %vm450, %v827, 0.0
          %v867 = vsel %vm451, %v831, 0.0
          %v868 = vsel %vm452, %v811, 0.0
          %v869 = vsel %vm453, %v815, 0.0
          %v870 = vsel %vm454, %v819, 0.0
          %v871 = vsel %vm455, %v823, 0.0
          %v872 = vsel %vm456, %v827, 0.0
          %v873 = vsel %vm457, %v831, 0.0
          %v874 = vsel %vm458, %v811, 0.0
          %v875 = vsel %vm459, %v815, 0.0
          %v876 = vsel %vm460, %v819, 0.0
          %v877 = vsel %vm461, %v823, 0.0
          %v878 = vsel %vm462, %v827, 0.0
          %v879 = vsel %vm463, %v831, 0.0
          %v880 = vsel %vm464, %v811, 0.0
          %v881 = vsel %vm465, %v815, 0.0
          %v882 = vsel %vm466, %v819, 0.0
          %v883 = vsel %vm467, %v823, 0.0
          %v884 = vsel %vm468, %v827, 0.0
          %v885 = vsel %vm469, %v831, 0.0
          %v886 = vsel %vm470, %v811, 0.0
          %v887 = vsel %vm471, %v815, 0.0
          %v888 = vsel %vm472, %v819, 0.0
          %v889 = vsel %vm473, %v823, 0.0
          %v890 = vsel %vm474, %v827, 0.0
          %v891 = vsel %vm475, %v831, 0.0
          %v892 = vsel %vm476, %v811, 0.0
          %v893 = vsel %vm477, %v815, 0.0
          %v894 = vsel %vm478, %v819, 0.0
          %v895 = vsel %vm479, %v823, 0.0
          %v896 = vsel %vm480, %v827, 0.0
          %v897 = vsel %vm481, %v831, 0.0
          %v898 = vsel %vm482, %v811, 0.0
          %v899 = vsel %vm483, %v815, 0.0
          %v900 = vsel %vm484, %v819, 0.0
          %v901 = vsel %vm485, %v823, 0.0
          %v902 = vsel %vm486, %v827, 0.0
          %v903 = vsel %vm487, %v831, 0.0
          %v904 = vsel %vm488, %v811, 0.0
          %v905 = vsel %vm489, %v815, 0.0
          %v906 = vsel %vm490, %v819, 0.0
          %v907 = vsel %vm491, %v823, 0.0
          %v908 = vsel %vm492, %v827, 0.0
          %v909 = vsel %vm493, %v831, 0.0
          %v910 = vsel %vm494, %v811, 0.0
          %v911 = vsel %vm495, %v815, 0.0
          %v912 = vsel %vm496, %v819, 0.0
          %v913 = vsel %vm497, %v823, 0.0
          %v914 = vsel %vm498, %v827, 0.0
          %v915 = vsel %vm499, %v831, 0.0
          %v916 = vsel %vm500, %v811, 0.0
          %v917 = vsel %vm501, %v815, 0.0
          %v918 = vsel %vm502, %v819, 0.0
          %v919 = vsel %vm503, %v823, 0.0
          %v920 = vsel %vm504, %v827, 0.0
          %v921 = vsel %vm505, %v831, 0.0
          %v922 = vsel %vm506, %v811, 0.0
          %v923 = vsel %vm507, %v815, 0.0
          %v924 = vsel %vm508, %v819, 0.0
          %v925 = vsel %vm509, %v823, 0.0
          %v926 = vsel %vm510, %v827, 0.0
          %v927 = vsel %vm511, %v831, 0.0
          %v928 = vsel %vm512, %v811, 0.0
          %v929 = vsel %vm513, %v815, 0.0
          %v930 = vsel %vm514, %v819, 0.0
          %v931 = vsel %vm515, %v823, 0.0
          %v932 = vsel %vm516, %v827, 0.0
          %v933 = vsel %vm517, %v831, 0.0
          %v934 = vsel %vm518, %v811, 0.0
          %v935 = vsel %vm519, %v815, 0.0
          %v936 = vsel %vm520, %v819, 0.0
          %v937 = vsel %vm521, %v823, 0.0
          %v938 = vsel %vm522, %v827, 0.0
          %v939 = vsel %vm523, %v831, 0.0
          %v940 = vsel %vm524, %v811, 0.0
          %v941 = vsel %vm525, %v815, 0.0
          %v942 = vsel %vm526, %v819, 0.0
          %v943 = vsel %vm527, %v823, 0.0
          %v944 = vsel %vm528, %v827, 0.0
          %v945 = vsel %vm529, %v831, 0.0
          %v946 = vsel %vm530, %v811, 0.0
          %v947 = vsel %vm531, %v815, 0.0
          %v948 = vsel %vm532, %v819, 0.0
          %v949 = vsel %vm533, %v823, 0.0
          %v950 = vsel %vm534, %v827, 0.0
          %v951 = vsel %vm535, %v831, 0.0
          %v952 = vsel %vm536, %v811, 0.0
          %v953 = vsel %vm537, %v815, 0.0
          %v954 = vsel %vm538, %v819, 0.0
          %v955 = vsel %vm539, %v823, 0.0
          %v956 = vsel %vm540, %v827, 0.0
          %v957 = vsel %vm541, %v831, 0.0
          %v958 = vsel %vm542, %v811, 0.0
          %v959 = vsel %vm543, %v815, 0.0
          %v960 = vsel %vm544, %v819, 0.0
          %v961 = vsel %vm545, %v823, 0.0
          %v962 = vsel %vm546, %v827, 0.0
          %v963 = vsel %vm547, %v831, 0.0
          %v964 = vsel %vm548, %v811, 0.0
          %v965 = vsel %vm549, %v815, 0.0
          %v966 = vsel %vm550, %v819, 0.0
          %v967 = vsel %vm551, %v823, 0.0
          %v968 = vsel %vm552, %v827, 0.0
          %v969 = vsel %vm553, %v831, 0.0
          %v970 = vsel %vm554, %v811, 0.0
          %v971 = vsel %vm555, %v815, 0.0
          %v972 = vsel %vm556, %v819, 0.0
          %v973 = vsel %vm557, %v823, 0.0
          %v974 = vsel %vm558, %v827, 0.0
          %v975 = vsel %vm559, %v831, 0.0
          %v976 = vsel %vm560, %v811, 0.0
          %v977 = vsel %vm561, %v815, 0.0
          %v978 = vsel %vm562, %v819, 0.0
          %v979 = vsel %vm563, %v823, 0.0
          %v980 = vsel %vm564, %v827, 0.0
          %v981 = vsel %vm565, %v831, 0.0
          %v982 = vsel %vm566, %v811, 0.0
          %v983 = vsel %vm567, %v815, 0.0
          %v984 = vsel %vm568, %v819, 0.0
          %v985 = vsel %vm569, %v823, 0.0
          %v986 = vsel %vm570, %v827, 0.0
          %v987 = vsel %vm571, %v831, 0.0
          %v988 = vsel %vm572, %v811, 0.0
          %v989 = vsel %vm573, %v815, 0.0
          %v990 = vsel %vm574, %v819, 0.0
          %v991 = vsel %vm575, %v823, 0.0
          %v992 = vsel %vm576, %v827, 0.0
          %v993 = vsel %vm577, %v831, 0.0
          %v994 = vsel %vm578, %v811, 0.0
          %v995 = vsel %vm579, %v815, 0.0
          %v996 = vsel %vm580, %v819, 0.0
          %v997 = vsel %vm581, %v823, 0.0
          %v998 = vsel %vm582, %v827, 0.0
          %v999 = vsel %vm583, %v831, 0.0
          %v1000 = vsel %vm584, %v811, 0.0
          %v1001 = vsel %vm585, %v815, 0.0
          %v1002 = vsel %vm586, %v819, 0.0
          %v1003 = vsel %vm587, %v823, 0.0
          %v1004 = vsel %vm588, %v827, 0.0
          %v1005 = vsel %vm589, %v831, 0.0
          %v1006 = vsel %vm590, %v811, 0.0
          %v1007 = vsel %vm591, %v815, 0.0
          %v1008 = vsel %vm592, %v819, 0.0
          %v1009 = vsel %vm593, %v823, 0.0
          %v1010 = vsel %vm594, %v827, 0.0
          %v1011 = vsel %vm595, %v831, 0.0
          %v1012 = vsel %vm596, %v811, 0.0
          %v1013 = vsel %vm597, %v815, 0.0
          %v1014 = vsel %vm598, %v819, 0.0
          %v1015 = vsel %vm599, %v823, 0.0
          %v1016 = vsel %vm600, %v827, 0.0
          %v1017 = vsel %vm601, %v831, 0.0
          %v1018 = vsel %vm602, %v811, 0.0
          %v1019 = vsel %vm603, %v815, 0.0
          %v1020 = vsel %vm604, %v819, 0.0
          %v1021 = vsel %vm605, %v823, 0.0
          %v1022 = vsel %vm606, %v827, 0.0
          %v1023 = vsel %vm607, %v831, 0.0
          %v1024 = vsel %vm608, %v811, 0.0
          %v1025 = vsel %vm609, %v815, 0.0
          %v1026 = vsel %vm610, %v819, 0.0
          %v1027 = vsel %vm611, %v823, 0.0
          %v1028 = vsel %vm612, %v827, 0.0
          %v1029 = vsel %vm613, %v831, 0.0
          %v1030 = vsel %vm614, %v811, 0.0
          %v1031 = vsel %vm615, %v815, 0.0
          %v1032 = vsel %vm616, %v819, 0.0
          %v1033 = vsel %vm617, %v823, 0.0
          %v1034 = vsel %vm618, %v827, 0.0
          %v1035 = vsel %vm619, %v831, 0.0
          %v1036 = vsel %vm620, %v811, 0.0
          %v1037 = vsel %vm621, %v815, 0.0
          %v1038 = vsel %vm622, %v819, 0.0
          %v1039 = vsel %vm623, %v823, 0.0
          %v1040 = vsel %vm624, %v827, 0.0
          %v1041 = vsel %vm625, %v831, 0.0
          %v1042 = vsel %vm626, %v811, 0.0
          %v1043 = vsel %vm627, %v815, 0.0
          %v1044 = vsel %vm628, %v819, 0.0
          %v1045 = vsel %vm629, %v823, 0.0
          %v1046 = vsel %vm630, %v827, 0.0
          %v1047 = vsel %vm631, %v831, 0.0
          %v1048 = vsel %vm632, %v811, 0.0
          %v1049 = vsel %vm633, %v815, 0.0
          %v1050 = vsel %vm634, %v819, 0.0
          %v1051 = vsel %vm635, %v823, 0.0
          %v1052 = vsel %vm636, %v827, 0.0
          %v1053 = vsel %vm637, %v831, 0.0
          %v1054 = vsel %vm638, %v811, 0.0
          %v1055 = vsel %vm639, %v815, 0.0
          %v1056 = vsel %vm640, %v819, 0.0
          %v1057 = vsel %vm641, %v823, 0.0
          %v1058 = vsel %vm642, %v827, 0.0
          %v1059 = vsel %vm643, %v831, 0.0
          %v1060 = vsel %vm644, %v811, 0.0
          %v1061 = vsel %vm645, %v815, 0.0
          %v1062 = vsel %vm646, %v819, 0.0
          %v1063 = vsel %vm647, %v823, 0.0
          %v1064 = vsel %vm648, %v827, 0.0
          %v1065 = vsel %vm649, %v831, 0.0
          %v1066 = vsel %vm650, %v811, 0.0
          %v1067 = vsel %vm651, %v815, 0.0
          %v1068 = vsel %vm652, %v819, 0.0
          %v1069 = vsel %vm653, %v823, 0.0
          %v1070 = vsel %vm654, %v827, 0.0
          %v1071 = vsel %vm655, %v831, 0.0
          %v1072 = vsel %vm656, %v811, 0.0
          %v1073 = vsel %vm657, %v815, 0.0
          %v1074 = vsel %vm658, %v819, 0.0
          %v1075 = vsel %vm659, %v823, 0.0
          %v1076 = vsel %vm660, %v827, 0.0
          %v1077 = vsel %vm661, %v831, 0.0
          %v1078 = vsel %vm662, %v811, 0.0
          %v1079 = vsel %vm663, %v815, 0.0
          %v1080 = vsel %vm664, %v819, 0.0
          %v1081 = vsel %vm665, %v823, 0.0
          %v1082 = vsel %vm666, %v827, 0.0
          %v1083 = vsel %vm667, %v831, 0.0
          %v1084 = vsel %vm668, %v811, 0.0
          %v1085 = vsel %vm669, %v815, 0.0
          %v1086 = vsel %vm670, %v819, 0.0
          %v1087 = vsel %vm671, %v823, 0.0
          %v1088 = vsel %vm672, %v827, 0.0
          %v1089 = vsel %vm673, %v831, 0.0
          %v1090 = vsel %vm674, %v811, 0.0
          %v1091 = vsel %vm675, %v815, 0.0
          %v1092 = vsel %vm676, %v819, 0.0
          %v1093 = vsel %vm677, %v823, 0.0
          %v1094 = vsel %vm678, %v827, 0.0
          %v1095 = vsel %vm679, %v831, 0.0
          %v1096 = vsel %vm680, %v811, 0.0
          %v1097 = vsel %vm681, %v815, 0.0
          %v1098 = vsel %vm682, %v819, 0.0
          %v1099 = vsel %vm683, %v823, 0.0
          %v1100 = vsel %vm684, %v827, 0.0
          %v1101 = vsel %vm685, %v831, 0.0
          %v1102 = vsel %vm686, %v811, 0.0
          %v1103 = vsel %vm687, %v815, 0.0
          %v1104 = vsel %vm688, %v819, 0.0
          %v1105 = vsel %vm689, %v823, 0.0
          %v1106 = vsel %vm690, %v827, 0.0
          %v1107 = vsel %vm691, %v831, 0.0
          %v1108 = vsel %vm692, %v811, 0.0
          %v1109 = vsel %vm693, %v815, 0.0
          %v1110 = vsel %vm694, %v819, 0.0
          %v1111 = vsel %vm695, %v823, 0.0
          %v1112 = vsel %vm696, %v827, 0.0
          %v1113 = vsel %vm697, %v831, 0.0
          %v1114 = vsel %vm698, %v811, 0.0
          %v1115 = vsel %vm699, %v815, 0.0
          %v1116 = vsel %vm700, %v819, 0.0
          %v1117 = vsel %vm701, %v823, 0.0
          %v1118 = vsel %vm702, %v827, 0.0
          %v1119 = vsel %vm703, %v831, 0.0
          %v1120 = vsel %vm704, %v811, 0.0
          %v1121 = vsel %vm705, %v815, 0.0
          %v1122 = vsel %vm706, %v819, 0.0
          %v1123 = vsel %vm707, %v823, 0.0
          %v1124 = vsel %vm708, %v827, 0.0
          %v1125 = vsel %vm709, %v831, 0.0
          %v1126 = vsel %vm710, %v811, 0.0
          %v1127 = vsel %vm711, %v815, 0.0
          %v1128 = vsel %vm712, %v819, 0.0
          %v1129 = vsel %vm713, %v823, 0.0
          %v1130 = vsel %vm714, %v827, 0.0
          %v1131 = vsel %vm715, %v831, 0.0
          %v1132 = vsel %vm716, %v811, 0.0
          %v1133 = vsel %vm717, %v815, 0.0
          %v1134 = vsel %vm718, %v819, 0.0
          %v1135 = vsel %vm719, %v823, 0.0
          %v1136 = vsel %vm720, %v827, 0.0
          %v1137 = vsel %vm721, %v831, 0.0
          %v1138 = vsel %vm722, %v811, 0.0
          %v1139 = vsel %vm723, %v815, 0.0
          %v1140 = vsel %vm724, %v819, 0.0
          %v1141 = vsel %vm725, %v823, 0.0
          %v1142 = vsel %vm726, %v827, 0.0
          %v1143 = vsel %vm727, %v831, 0.0
          %v1144 = vsel %vm728, %v811, 0.0
          %v1145 = vsel %vm729, %v815, 0.0
          %v1146 = vsel %vm730, %v819, 0.0
          %v1147 = vsel %vm731, %v823, 0.0
          %v1148 = vsel %vm732, %v827, 0.0
          %v1149 = vsel %vm733, %v831, 0.0
          %v1150 = vsel %vm734, %v811, 0.0
          %v1151 = vsel %vm735, %v815, 0.0
          %v1152 = vsel %vm736, %v819, 0.0
          %v1153 = vsel %vm737, %v823, 0.0
          %v1154 = vsel %vm738, %v827, 0.0
          %v1155 = vsel %vm739, %v831, 0.0
          %v1156 = vsel %vm740, %v811, 0.0
          %v1157 = vsel %vm741, %v815, 0.0
          %v1158 = vsel %vm742, %v819, 0.0
          %v1159 = vsel %vm743, %v823, 0.0
          %v1160 = vsel %vm744, %v827, 0.0
          %v1161 = vsel %vm745, %v831, 0.0
          %v1162 = vsel %vm746, %v811, 0.0
          %v1163 = vsel %vm747, %v815, 0.0
          %v1164 = vsel %vm748, %v819, 0.0
          %v1165 = vsel %vm749, %v823, 0.0
          %v1166 = vsel %vm750, %v827, 0.0
          %v1167 = vsel %vm751, %v831, 0.0
          %v1168 = vsel %vm752, %v811, 0.0
          %v1169 = vsel %vm753, %v815, 0.0
          %v1170 = vsel %vm754, %v819, 0.0
          %v1171 = vsel %vm755, %v823, 0.0
          %v1172 = vsel %vm756, %v827, 0.0
          %v1173 = vsel %vm757, %v831, 0.0
          %v1174 = vsel %vm758, %v811, 0.0
          %v1175 = vsel %vm759, %v815, 0.0
          %v1176 = vsel %vm760, %v819, 0.0
          %v1177 = vsel %vm761, %v823, 0.0
          %v1178 = vsel %vm762, %v827, 0.0
          %v1179 = vsel %vm763, %v831, 0.0
          %v1180 = vsel %vm764, %v811, 0.0
          %v1181 = vsel %vm765, %v815, 0.0
          %v1182 = vsel %vm766, %v819, 0.0
          %v1183 = vsel %vm767, %v823, 0.0
          %v1184 = vsel %vm768, %v827, 0.0
          %v1185 = vsel %vm769, %v831, 0.0
          %v1186 = vsel %vm770, %v811, 0.0
          %v1187 = vsel %vm771, %v815, 0.0
          %v1188 = vsel %vm772, %v819, 0.0
          %v1189 = vsel %vm773, %v823, 0.0
          %v1190 = vsel %vm774, %v827, 0.0
          %v1191 = vsel %vm775, %v831, 0.0
          %v1192 = vsel %vm776, %v811, 0.0
          %v1193 = vsel %vm777, %v815, 0.0
          %v1194 = vsel %vm778, %v819, 0.0
          %v1195 = vsel %vm779, %v823, 0.0
          %v1196 = vsel %vm780, %v827, 0.0
          %v1197 = vsel %vm781, %v831, 0.0
          %v1198 = vsel %vm782, %v811, 0.0
          %v1199 = vsel %vm783, %v815, 0.0
          %v1200 = vsel %vm784, %v819, 0.0
          %v1201 = vsel %vm785, %v823, 0.0
          %v1202 = vsel %vm786, %v827, 0.0
          %v1203 = vsel %vm787, %v831, 0.0
          %v1204 = vsel %vm788, %v811, 0.0
          %v1205 = vsel %vm789, %v815, 0.0
          %v1206 = vsel %vm790, %v819, 0.0
          %v1207 = vsel %vm791, %v823, 0.0
          %v1208 = vsel %vm792, %v827, 0.0
          %v1209 = vsel %vm793, %v831, 0.0
          %v1210 = vsel %vm794, %v811, 0.0
          %v1211 = vsel %vm795, %v815, 0.0
          %v1212 = vsel %vm796, %v819, 0.0
          %v1213 = vsel %vm797, %v823, 0.0
          %v1214 = vsel %vm798, %v827, 0.0
          %v1215 = vsel %vm799, %v831, 0.0
          %v1216 = vsel %vm800, %v811, 0.0
          %v1217 = vsel %vm801, %v815, 0.0
          %v1218 = vsel %vm802, %v819, 0.0
          %v1219 = vsel %vm803, %v823, 0.0
          %v1220 = vsel %vm804, %v827, 0.0
          %v1221 = vsel %vm805, %v831, 0.0
          %1222 = vst [vmem:[%s220] sm:$0xff] %v838
          %1223 = vst [vmem:[%s220 + $0x8] sm:$0xff] %v839
          %1224 = vst [vmem:[%s220 + $0x10] sm:$0xff] %v840
          %1225 = vst [vmem:[%s220 + $0x18] sm:$0xff] %v841
          %1226 = vst [vmem:[%s220 + $0x20] sm:$0xff] %v842
          %1227 = vst [vmem:[%s220 + $0x28] sm:$0xff] %v843
          %1228 = vst [vmem:[%s220 + $0x30] sm:$0xff] %v844
          %1229 = vst [vmem:[%s220 + $0x38] sm:$0xff] %v845
          %1230 = vst [vmem:[%s220 + $0x40] sm:$0xff] %v846
          %1231 = vst [vmem:[%s220 + $0x48] sm:$0xff] %v847
          %1232 = vst [vmem:[%s220 + $0x50] sm:$0xff] %v848
          %1233 = vst [vmem:[%s220 + $0x58] sm:$0xff] %v849
          %1234 = vst [vmem:[%s220 + $0x60] sm:$0xff] %v850
          %1235 = vst [vmem:[%s220 + $0x68] sm:$0xff] %v851
          %1236 = vst [vmem:[%s220 + $0x70] sm:$0xff] %v852
          %1237 = vst [vmem:[%s220 + $0x78] sm:$0xff] %v853
          %1238 = vst [vmem:[%s220 + $0x80] sm:$0xff] %v854
          %1239 = vst [vmem:[%s220 + $0x88] sm:$0xff] %v855
          %1240 = vst [vmem:[%s220 + $0x90] sm:$0xff] %v856
          %1241 = vst [vmem:[%s220 + $0x98] sm:$0xff] %v857
          %1242 = vst [vmem:[%s220 + $0xa0] sm:$0xff] %v858
          %1243 = vst [vmem:[%s220 + $0xa8] sm:$0xff] %v859
          %1244 = vst [vmem:[%s220 + $0xb0] sm:$0xff] %v860
          %1245 = vst [vmem:[%s220 + $0xb8] sm:$0xff] %v861
          %1246 = vst [vmem:[%s220 + $0xc0] sm:$0xff] %v862
          %1247 = vst [vmem:[%s220 + $0xc8] sm:$0xff] %v863
          %1248 = vst [vmem:[%s220 + $0xd0] sm:$0xff] %v864
          %1249 = vst [vmem:[%s220 + $0xd8] sm:$0xff] %v865
          %1250 = vst [vmem:[%s220 + $0xe0] sm:$0xff] %v866
          %1251 = vst [vmem:[%s220 + $0xe8] sm:$0xff] %v867
          %1252 = vst [vmem:[%s220 + $0xf0] sm:$0xff] %v868
          %1253 = vst [vmem:[%s220 + $0xf8] sm:$0xff] %v869
          %1254 = vst [vmem:[%s220 + $0x100] sm:$0xff] %v870
          %1255 = vst [vmem:[%s220 + $0x108] sm:$0xff] %v871
          %1256 = vst [vmem:[%s220 + $0x110] sm:$0xff] %v872
          %1257 = vst [vmem:[%s220 + $0x118] sm:$0xff] %v873
          %1258 = vst [vmem:[%s220 + $0x120] sm:$0xff] %v874
          %1259 = vst [vmem:[%s220 + $0x128] sm:$0xff] %v875
          %1260 = vst [vmem:[%s220 + $0x130] sm:$0xff] %v876
          %1261 = vst [vmem:[%s220 + $0x138] sm:$0xff] %v877
          %1262 = vst [vmem:[%s220 + $0x140] sm:$0xff] %v878
          %1263 = vst [vmem:[%s220 + $0x148] sm:$0xff] %v879
          %1264 = vst [vmem:[%s220 + $0x150] sm:$0xff] %v880
          %1265 = vst [vmem:[%s220 + $0x158] sm:$0xff] %v881
          %1266 = vst [vmem:[%s220 + $0x160] sm:$0xff] %v882
          %1267 = vst [vmem:[%s220 + $0x168] sm:$0xff] %v883
          %1268 = vst [vmem:[%s220 + $0x170] sm:$0xff] %v884
          %1269 = vst [vmem:[%s220 + $0x178] sm:$0xff] %v885
          %1270 = vst [vmem:[%s220 + $0x180] sm:$0xff] %v886
          %1271 = vst [vmem:[%s220 + $0x188] sm:$0xff] %v887
          %1272 = vst [vmem:[%s220 + $0x190] sm:$0xff] %v888
          %1273 = vst [vmem:[%s220 + $0x198] sm:$0xff] %v889
          %1274 = vst [vmem:[%s220 + $0x1a0] sm:$0xff] %v890
          %1275 = vst [vmem:[%s220 + $0x1a8] sm:$0xff] %v891
          %1276 = vst [vmem:[%s220 + $0x1b0] sm:$0xff] %v892
          %1277 = vst [vmem:[%s220 + $0x1b8] sm:$0xff] %v893
          %1278 = vst [vmem:[%s220 + $0x1c0] sm:$0xff] %v894
          %1279 = vst [vmem:[%s220 + $0x1c8] sm:$0xff] %v895
          %1280 = vst [vmem:[%s220 + $0x1d0] sm:$0xff] %v896
          %1281 = vst [vmem:[%s220 + $0x1d8] sm:$0xff] %v897
          %1282 = vst [vmem:[%s220 + $0x1e0] sm:$0xff] %v898
          %1283 = vst [vmem:[%s220 + $0x1e8] sm:$0xff] %v899
          %1284 = vst [vmem:[%s220 + $0x1f0] sm:$0xff] %v900
          %1285 = vst [vmem:[%s220 + $0x1f8] sm:$0xff] %v901
          %1286 = vst [vmem:[%s220 + $0x200] sm:$0xff] %v902
          %1287 = vst [vmem:[%s220 + $0x208] sm:$0xff] %v903
          %1288 = vst [vmem:[%s220 + $0x210] sm:$0xff] %v904
          %1289 = vst [vmem:[%s220 + $0x218] sm:$0xff] %v905
          %1290 = vst [vmem:[%s220 + $0x220] sm:$0xff] %v906
          %1291 = vst [vmem:[%s220 + $0x228] sm:$0xff] %v907
          %1292 = vst [vmem:[%s220 + $0x230] sm:$0xff] %v908
          %1293 = vst [vmem:[%s220 + $0x238] sm:$0xff] %v909
          %1294 = vst [vmem:[%s220 + $0x240] sm:$0xff] %v910
          %1295 = vst [vmem:[%s220 + $0x248] sm:$0xff] %v911
          %1296 = vst [vmem:[%s220 + $0x250] sm:$0xff] %v912
          %1297 = vst [vmem:[%s220 + $0x258] sm:$0xff] %v913
          %1298 = vst [vmem:[%s220 + $0x260] sm:$0xff] %v914
          %1299 = vst [vmem:[%s220 + $0x268] sm:$0xff] %v915
          %1300 = vst [vmem:[%s220 + $0x270] sm:$0xff] %v916
          %1301 = vst [vmem:[%s220 + $0x278] sm:$0xff] %v917
          %1302 = vst [vmem:[%s220 + $0x280] sm:$0xff] %v918
          %1303 = vst [vmem:[%s220 + $0x288] sm:$0xff] %v919
          %1304 = vst [vmem:[%s220 + $0x290] sm:$0xff] %v920
          %1305 = vst [vmem:[%s220 + $0x298] sm:$0xff] %v921
          %1306 = vst [vmem:[%s220 + $0x2a0] sm:$0xff] %v922
          %1307 = vst [vmem:[%s220 + $0x2a8] sm:$0xff] %v923
          %1308 = vst [vmem:[%s220 + $0x2b0] sm:$0xff] %v924
          %1309 = vst [vmem:[%s220 + $0x2b8] sm:$0xff] %v925
          %1310 = vst [vmem:[%s220 + $0x2c0] sm:$0xff] %v926
          %1311 = vst [vmem:[%s220 + $0x2c8] sm:$0xff] %v927
          %1312 = vst [vmem:[%s220 + $0x2d0] sm:$0xff] %v928
          %1313 = vst [vmem:[%s220 + $0x2d8] sm:$0xff] %v929
          %1314 = vst [vmem:[%s220 + $0x2e0] sm:$0xff] %v930
          %1315 = vst [vmem:[%s220 + $0x2e8] sm:$0xff] %v931
          %1316 = vst [vmem:[%s220 + $0x2f0] sm:$0xff] %v932
          %1317 = vst [vmem:[%s220 + $0x2f8] sm:$0xff] %v933
          %1318 = vst [vmem:[%s220 + $0x300] sm:$0xff] %v934
          %1319 = vst [vmem:[%s220 + $0x308] sm:$0xff] %v935
          %1320 = vst [vmem:[%s220 + $0x310] sm:$0xff] %v936
          %1321 = vst [vmem:[%s220 + $0x318] sm:$0xff] %v937
          %1322 = vst [vmem:[%s220 + $0x320] sm:$0xff] %v938
          %1323 = vst [vmem:[%s220 + $0x328] sm:$0xff] %v939
          %1324 = vst [vmem:[%s220 + $0x330] sm:$0xff] %v940
          %1325 = vst [vmem:[%s220 + $0x338] sm:$0xff] %v941
          %1326 = vst [vmem:[%s220 + $0x340] sm:$0xff] %v942
          %1327 = vst [vmem:[%s220 + $0x348] sm:$0xff] %v943
          %1328 = vst [vmem:[%s220 + $0x350] sm:$0xff] %v944
          %1329 = vst [vmem:[%s220 + $0x358] sm:$0xff] %v945
          %1330 = vst [vmem:[%s220 + $0x360] sm:$0xff] %v946
          %1331 = vst [vmem:[%s220 + $0x368] sm:$0xff] %v947
          %1332 = vst [vmem:[%s220 + $0x370] sm:$0xff] %v948
          %1333 = vst [vmem:[%s220 + $0x378] sm:$0xff] %v949
          %1334 = vst [vmem:[%s220 + $0x380] sm:$0xff] %v950
          %1335 = vst [vmem:[%s220 + $0x388] sm:$0xff] %v951
          %1336 = vst [vmem:[%s220 + $0x390] sm:$0xff] %v952
          %1337 = vst [vmem:[%s220 + $0x398] sm:$0xff] %v953
          %1338 = vst [vmem:[%s220 + $0x3a0] sm:$0xff] %v954
          %1339 = vst [vmem:[%s220 + $0x3a8] sm:$0xff] %v955
          %1340 = vst [vmem:[%s220 + $0x3b0] sm:$0xff] %v956
          %1341 = vst [vmem:[%s220 + $0x3b8] sm:$0xff] %v957
          %1342 = vst [vmem:[%s220 + $0x3c0] sm:$0xff] %v958
          %1343 = vst [vmem:[%s220 + $0x3c8] sm:$0xff] %v959
          %1344 = vst [vmem:[%s220 + $0x3d0] sm:$0xff] %v960
          %1345 = vst [vmem:[%s220 + $0x3d8] sm:$0xff] %v961
          %1346 = vst [vmem:[%s220 + $0x3e0] sm:$0xff] %v962
          %1347 = vst [vmem:[%s220 + $0x3e8] sm:$0xff] %v963
          %1348 = vst [vmem:[%s220 + $0x3f0] sm:$0xff] %v964
          %1349 = vst [vmem:[%s220 + $0x3f8] sm:$0xff] %v965
          %1350 = vst [vmem:[%s220 + $0x400] sm:$0xff] %v966
          %1351 = vst [vmem:[%s220 + $0x408] sm:$0xff] %v967
          %1352 = vst [vmem:[%s220 + $0x410] sm:$0xff] %v968
          %1353 = vst [vmem:[%s220 + $0x418] sm:$0xff] %v969
          %1354 = vst [vmem:[%s220 + $0x420] sm:$0xff] %v970
          %1355 = vst [vmem:[%s220 + $0x428] sm:$0xff] %v971
          %1356 = vst [vmem:[%s220 + $0x430] sm:$0xff] %v972
          %1357 = vst [vmem:[%s220 + $0x438] sm:$0xff] %v973
          %1358 = vst [vmem:[%s220 + $0x440] sm:$0xff] %v974
          %1359 = vst [vmem:[%s220 + $0x448] sm:$0xff] %v975
          %1360 = vst [vmem:[%s220 + $0x450] sm:$0xff] %v976
          %1361 = vst [vmem:[%s220 + $0x458] sm:$0xff] %v977
          %1362 = vst [vmem:[%s220 + $0x460] sm:$0xff] %v978
          %1363 = vst [vmem:[%s220 + $0x468] sm:$0xff] %v979
          %1364 = vst [vmem:[%s220 + $0x470] sm:$0xff] %v980
          %1365 = vst [vmem:[%s220 + $0x478] sm:$0xff] %v981
          %1366 = vst [vmem:[%s220 + $0x480] sm:$0xff] %v982
          %1367 = vst [vmem:[%s220 + $0x488] sm:$0xff] %v983
          %1368 = vst [vmem:[%s220 + $0x490] sm:$0xff] %v984
          %1369 = vst [vmem:[%s220 + $0x498] sm:$0xff] %v985
          %1370 = vst [vmem:[%s220 + $0x4a0] sm:$0xff] %v986
          %1371 = vst [vmem:[%s220 + $0x4a8] sm:$0xff] %v987
          %1372 = vst [vmem:[%s220 + $0x4b0] sm:$0xff] %v988
          %1373 = vst [vmem:[%s220 + $0x4b8] sm:$0xff] %v989
          %1374 = vst [vmem:[%s220 + $0x4c0] sm:$0xff] %v990
          %1375 = vst [vmem:[%s220 + $0x4c8] sm:$0xff] %v991
          %1376 = vst [vmem:[%s220 + $0x4d0] sm:$0xff] %v992
          %1377 = vst [vmem:[%s220 + $0x4d8] sm:$0xff] %v993
          %1378 = vst [vmem:[%s220 + $0x4e0] sm:$0xff] %v994
          %1379 = vst [vmem:[%s220 + $0x4e8] sm:$0xff] %v995
          %1380 = vst [vmem:[%s220 + $0x4f0] sm:$0xff] %v996
          %1381 = vst [vmem:[%s220 + $0x4f8] sm:$0xff] %v997
          %1382 = vst [vmem:[%s220 + $0x500] sm:$0xff] %v998
          %1383 = vst [vmem:[%s220 + $0x508] sm:$0xff] %v999
          %1384 = vst [vmem:[%s220 + $0x510] sm:$0xff] %v1000
          %1385 = vst [vmem:[%s220 + $0x518] sm:$0xff] %v1001
          %1386 = vst [vmem:[%s220 + $0x520] sm:$0xff] %v1002
          %1387 = vst [vmem:[%s220 + $0x528] sm:$0xff] %v1003
          %1388 = vst [vmem:[%s220 + $0x530] sm:$0xff] %v1004
          %1389 = vst [vmem:[%s220 + $0x538] sm:$0xff] %v1005
          %1390 = vst [vmem:[%s220 + $0x540] sm:$0xff] %v1006
          %1391 = vst [vmem:[%s220 + $0x548] sm:$0xff] %v1007
          %1392 = vst [vmem:[%s220 + $0x550] sm:$0xff] %v1008
          %1393 = vst [vmem:[%s220 + $0x558] sm:$0xff] %v1009
          %1394 = vst [vmem:[%s220 + $0x560] sm:$0xff] %v1010
          %1395 = vst [vmem:[%s220 + $0x568] sm:$0xff] %v1011
          %1396 = vst [vmem:[%s220 + $0x570] sm:$0xff] %v1012
          %1397 = vst [vmem:[%s220 + $0x578] sm:$0xff] %v1013
          %1398 = vst [vmem:[%s220 + $0x580] sm:$0xff] %v1014
          %1399 = vst [vmem:[%s220 + $0x588] sm:$0xff] %v1015
          %1400 = vst [vmem:[%s220 + $0x590] sm:$0xff] %v1016
          %1401 = vst [vmem:[%s220 + $0x598] sm:$0xff] %v1017
          %1402 = vst [vmem:[%s220 + $0x5a0] sm:$0xff] %v1018
          %1403 = vst [vmem:[%s220 + $0x5a8] sm:$0xff] %v1019
          %1404 = vst [vmem:[%s220 + $0x5b0] sm:$0xff] %v1020
          %1405 = vst [vmem:[%s220 + $0x5b8] sm:$0xff] %v1021
          %1406 = vst [vmem:[%s220 + $0x5c0] sm:$0xff] %v1022
          %1407 = vst [vmem:[%s220 + $0x5c8] sm:$0xff] %v1023
          %1408 = vst [vmem:[%s220 + $0x5d0] sm:$0xff] %v1024
          %1409 = vst [vmem:[%s220 + $0x5d8] sm:$0xff] %v1025
          %1410 = vst [vmem:[%s220 + $0x5e0] sm:$0xff] %v1026
          %1411 = vst [vmem:[%s220 + $0x5e8] sm:$0xff] %v1027
          %1412 = vst [vmem:[%s220 + $0x5f0] sm:$0xff] %v1028
          %1413 = vst [vmem:[%s220 + $0x5f8] sm:$0xff] %v1029
          %1414 = vst [vmem:[%s220 + $0x600] sm:$0xff] %v1030
          %1415 = vst [vmem:[%s220 + $0x608] sm:$0xff] %v1031
          %1416 = vst [vmem:[%s220 + $0x610] sm:$0xff] %v1032
          %1417 = vst [vmem:[%s220 + $0x618] sm:$0xff] %v1033
          %1418 = vst [vmem:[%s220 + $0x620] sm:$0xff] %v1034
          %1419 = vst [vmem:[%s220 + $0x628] sm:$0xff] %v1035
          %1420 = vst [vmem:[%s220 + $0x630] sm:$0xff] %v1036
          %1421 = vst [vmem:[%s220 + $0x638] sm:$0xff] %v1037
          %1422 = vst [vmem:[%s220 + $0x640] sm:$0xff] %v1038
          %1423 = vst [vmem:[%s220 + $0x648] sm:$0xff] %v1039
          %1424 = vst [vmem:[%s220 + $0x650] sm:$0xff] %v1040
          %1425 = vst [vmem:[%s220 + $0x658] sm:$0xff] %v1041
          %1426 = vst [vmem:[%s220 + $0x660] sm:$0xff] %v1042
          %1427 = vst [vmem:[%s220 + $0x668] sm:$0xff] %v1043
          %1428 = vst [vmem:[%s220 + $0x670] sm:$0xff] %v1044
          %1429 = vst [vmem:[%s220 + $0x678] sm:$0xff] %v1045
          %1430 = vst [vmem:[%s220 + $0x680] sm:$0xff] %v1046
          %1431 = vst [vmem:[%s220 + $0x688] sm:$0xff] %v1047
          %1432 = vst [vmem:[%s220 + $0x690] sm:$0xff] %v1048
          %1433 = vst [vmem:[%s220 + $0x698] sm:$0xff] %v1049
          %1434 = vst [vmem:[%s220 + $0x6a0] sm:$0xff] %v1050
          %1435 = vst [vmem:[%s220 + $0x6a8] sm:$0xff] %v1051
          %1436 = vst [vmem:[%s220 + $0x6b0] sm:$0xff] %v1052
          %1437 = vst [vmem:[%s220 + $0x6b8] sm:$0xff] %v1053
          %1438 = vst [vmem:[%s220 + $0x6c0] sm:$0xff] %v1054
          %1439 = vst [vmem:[%s220 + $0x6c8] sm:$0xff] %v1055
          %1440 = vst [vmem:[%s220 + $0x6d0] sm:$0xff] %v1056
          %1441 = vst [vmem:[%s220 + $0x6d8] sm:$0xff] %v1057
          %1442 = vst [vmem:[%s220 + $0x6e0] sm:$0xff] %v1058
          %1443 = vst [vmem:[%s220 + $0x6e8] sm:$0xff] %v1059
          %1444 = vst [vmem:[%s220 + $0x6f0] sm:$0xff] %v1060
          %1445 = vst [vmem:[%s220 + $0x6f8] sm:$0xff] %v1061
          %1446 = vst [vmem:[%s220 + $0x700] sm:$0xff] %v1062
          %1447 = vst [vmem:[%s220 + $0x708] sm:$0xff] %v1063
          %1448 = vst [vmem:[%s220 + $0x710] sm:$0xff] %v1064
          %1449 = vst [vmem:[%s220 + $0x718] sm:$0xff] %v1065
          %1450 = vst [vmem:[%s220 + $0x720] sm:$0xff] %v1066
          %1451 = vst [vmem:[%s220 + $0x728] sm:$0xff] %v1067
          %1452 = vst [vmem:[%s220 + $0x730] sm:$0xff] %v1068
          %1453 = vst [vmem:[%s220 + $0x738] sm:$0xff] %v1069
          %1454 = vst [vmem:[%s220 + $0x740] sm:$0xff] %v1070
          %1455 = vst [vmem:[%s220 + $0x748] sm:$0xff] %v1071
          %1456 = vst [vmem:[%s220 + $0x750] sm:$0xff] %v1072
          %1457 = vst [vmem:[%s220 + $0x758] sm:$0xff] %v1073
          %1458 = vst [vmem:[%s220 + $0x760] sm:$0xff] %v1074
          %1459 = vst [vmem:[%s220 + $0x768] sm:$0xff] %v1075
          %1460 = vst [vmem:[%s220 + $0x770] sm:$0xff] %v1076
          %1461 = vst [vmem:[%s220 + $0x778] sm:$0xff] %v1077
          %1462 = vst [vmem:[%s220 + $0x780] sm:$0xff] %v1078
          %1463 = vst [vmem:[%s220 + $0x788] sm:$0xff] %v1079
          %1464 = vst [vmem:[%s220 + $0x790] sm:$0xff] %v1080
          %1465 = vst [vmem:[%s220 + $0x798] sm:$0xff] %v1081
          %1466 = vst [vmem:[%s220 + $0x7a0] sm:$0xff] %v1082
          %1467 = vst [vmem:[%s220 + $0x7a8] sm:$0xff] %v1083
          %1468 = vst [vmem:[%s220 + $0x7b0] sm:$0xff] %v1084
          %1469 = vst [vmem:[%s220 + $0x7b8] sm:$0xff] %v1085
          %1470 = vst [vmem:[%s220 + $0x7c0] sm:$0xff] %v1086
          %1471 = vst [vmem:[%s220 + $0x7c8] sm:$0xff] %v1087
          %1472 = vst [vmem:[%s220 + $0x7d0] sm:$0xff] %v1088
          %1473 = vst [vmem:[%s220 + $0x7d8] sm:$0xff] %v1089
          %1474 = vst [vmem:[%s220 + $0x7e0] sm:$0xff] %v1090
          %1475 = vst [vmem:[%s220 + $0x7e8] sm:$0xff] %v1091
          %1476 = vst [vmem:[%s220 + $0x7f0] sm:$0xff] %v1092
          %1477 = vst [vmem:[%s220 + $0x7f8] sm:$0xff] %v1093
          %1478 = vst [vmem:[%s220 + $0x800] sm:$0xff] %v1094
          %1479 = vst [vmem:[%s220 + $0x808] sm:$0xff] %v1095
          %1480 = vst [vmem:[%s220 + $0x810] sm:$0xff] %v1096
          %1481 = vst [vmem:[%s220 + $0x818] sm:$0xff] %v1097
          %1482 = vst [vmem:[%s220 + $0x820] sm:$0xff] %v1098
          %1483 = vst [vmem:[%s220 + $0x828] sm:$0xff] %v1099
          %1484 = vst [vmem:[%s220 + $0x830] sm:$0xff] %v1100
          %1485 = vst [vmem:[%s220 + $0x838] sm:$0xff] %v1101
          %1486 = vst [vmem:[%s220 + $0x840] sm:$0xff] %v1102
          %1487 = vst [vmem:[%s220 + $0x848] sm:$0xff] %v1103
          %1488 = vst [vmem:[%s220 + $0x850] sm:$0xff] %v1104
          %1489 = vst [vmem:[%s220 + $0x858] sm:$0xff] %v1105
          %1490 = vst [vmem:[%s220 + $0x860] sm:$0xff] %v1106
          %1491 = vst [vmem:[%s220 + $0x868] sm:$0xff] %v1107
          %1492 = vst [vmem:[%s220 + $0x870] sm:$0xff] %v1108
          %1493 = vst [vmem:[%s220 + $0x878] sm:$0xff] %v1109
          %1494 = vst [vmem:[%s220 + $0x880] sm:$0xff] %v1110
          %1495 = vst [vmem:[%s220 + $0x888] sm:$0xff] %v1111
          %1496 = vst [vmem:[%s220 + $0x890] sm:$0xff] %v1112
          %1497 = vst [vmem:[%s220 + $0x898] sm:$0xff] %v1113
          %1498 = vst [vmem:[%s220 + $0x8a0] sm:$0xff] %v1114
          %1499 = vst [vmem:[%s220 + $0x8a8] sm:$0xff] %v1115
          %1500 = vst [vmem:[%s220 + $0x8b0] sm:$0xff] %v1116
          %1501 = vst [vmem:[%s220 + $0x8b8] sm:$0xff] %v1117
          %1502 = vst [vmem:[%s220 + $0x8c0] sm:$0xff] %v1118
          %1503 = vst [vmem:[%s220 + $0x8c8] sm:$0xff] %v1119
          %1504 = vst [vmem:[%s220 + $0x8d0] sm:$0xff] %v1120
          %1505 = vst [vmem:[%s220 + $0x8d8] sm:$0xff] %v1121
          %1506 = vst [vmem:[%s220 + $0x8e0] sm:$0xff] %v1122
          %1507 = vst [vmem:[%s220 + $0x8e8] sm:$0xff] %v1123
          %1508 = vst [vmem:[%s220 + $0x8f0] sm:$0xff] %v1124
          %1509 = vst [vmem:[%s220 + $0x8f8] sm:$0xff] %v1125
          %1510 = vst [vmem:[%s220 + $0x900] sm:$0xff] %v1126
          %1511 = vst [vmem:[%s220 + $0x908] sm:$0xff] %v1127
          %1512 = vst [vmem:[%s220 + $0x910] sm:$0xff] %v1128
          %1513 = vst [vmem:[%s220 + $0x918] sm:$0xff] %v1129
          %1514 = vst [vmem:[%s220 + $0x920] sm:$0xff] %v1130
          %1515 = vst [vmem:[%s220 + $0x928] sm:$0xff] %v1131
          %1516 = vst [vmem:[%s220 + $0x930] sm:$0xff] %v1132
          %1517 = vst [vmem:[%s220 + $0x938] sm:$0xff] %v1133
          %1518 = vst [vmem:[%s220 + $0x940] sm:$0xff] %v1134
          %1519 = vst [vmem:[%s220 + $0x948] sm:$0xff] %v1135
          %1520 = vst [vmem:[%s220 + $0x950] sm:$0xff] %v1136
          %1521 = vst [vmem:[%s220 + $0x958] sm:$0xff] %v1137
          %1522 = vst [vmem:[%s220 + $0x960] sm:$0xff] %v1138
          %1523 = vst [vmem:[%s220 + $0x968] sm:$0xff] %v1139
          %1524 = vst [vmem:[%s220 + $0x970] sm:$0xff] %v1140
          %1525 = vst [vmem:[%s220 + $0x978] sm:$0xff] %v1141
          %1526 = vst [vmem:[%s220 + $0x980] sm:$0xff] %v1142
          %1527 = vst [vmem:[%s220 + $0x988] sm:$0xff] %v1143
          %1528 = vst [vmem:[%s220 + $0x990] sm:$0xff] %v1144
          %1529 = vst [vmem:[%s220 + $0x998] sm:$0xff] %v1145
          %1530 = vst [vmem:[%s220 + $0x9a0] sm:$0xff] %v1146
          %1531 = vst [vmem:[%s220 + $0x9a8] sm:$0xff] %v1147
          %1532 = vst [vmem:[%s220 + $0x9b0] sm:$0xff] %v1148
          %1533 = vst [vmem:[%s220 + $0x9b8] sm:$0xff] %v1149
          %1534 = vst [vmem:[%s220 + $0x9c0] sm:$0xff] %v1150
          %1535 = vst [vmem:[%s220 + $0x9c8] sm:$0xff] %v1151
          %1536 = vst [vmem:[%s220 + $0x9d0] sm:$0xff] %v1152
          %1537 = vst [vmem:[%s220 + $0x9d8] sm:$0xff] %v1153
          %1538 = vst [vmem:[%s220 + $0x9e0] sm:$0xff] %v1154
          %1539 = vst [vmem:[%s220 + $0x9e8] sm:$0xff] %v1155
          %1540 = vst [vmem:[%s220 + $0x9f0] sm:$0xff] %v1156
          %1541 = vst [vmem:[%s220 + $0x9f8] sm:$0xff] %v1157
          %1542 = vst [vmem:[%s220 + $0xa00] sm:$0xff] %v1158
          %1543 = vst [vmem:[%s220 + $0xa08] sm:$0xff] %v1159
          %1544 = vst [vmem:[%s220 + $0xa10] sm:$0xff] %v1160
          %1545 = vst [vmem:[%s220 + $0xa18] sm:$0xff] %v1161
          %1546 = vst [vmem:[%s220 + $0xa20] sm:$0xff] %v1162
          %1547 = vst [vmem:[%s220 + $0xa28] sm:$0xff] %v1163
          %1548 = vst [vmem:[%s220 + $0xa30] sm:$0xff] %v1164
          %1549 = vst [vmem:[%s220 + $0xa38] sm:$0xff] %v1165
          %1550 = vst [vmem:[%s220 + $0xa40] sm:$0xff] %v1166
          %1551 = vst [vmem:[%s220 + $0xa48] sm:$0xff] %v1167
          %1552 = vst [vmem:[%s220 + $0xa50] sm:$0xff] %v1168
          %1553 = vst [vmem:[%s220 + $0xa58] sm:$0xff] %v1169
          %1554 = vst [vmem:[%s220 + $0xa60] sm:$0xff] %v1170
          %1555 = vst [vmem:[%s220 + $0xa68] sm:$0xff] %v1171
          %1556 = vst [vmem:[%s220 + $0xa70] sm:$0xff] %v1172
          %1557 = vst [vmem:[%s220 + $0xa78] sm:$0xff] %v1173
          %1558 = vst [vmem:[%s220 + $0xa80] sm:$0xff] %v1174
          %1559 = vst [vmem:[%s220 + $0xa88] sm:$0xff] %v1175
          %1560 = vst [vmem:[%s220 + $0xa90] sm:$0xff] %v1176
          %1561 = vst [vmem:[%s220 + $0xa98] sm:$0xff] %v1177
          %1562 = vst [vmem:[%s220 + $0xaa0] sm:$0xff] %v1178
          %1563 = vst [vmem:[%s220 + $0xaa8] sm:$0xff] %v1179
          %1564 = vst [vmem:[%s220 + $0xab0] sm:$0xff] %v1180
          %1565 = vst [vmem:[%s220 + $0xab8] sm:$0xff] %v1181
          %1566 = vst [vmem:[%s220 + $0xac0] sm:$0xff] %v1182
          %1567 = vst [vmem:[%s220 + $0xac8] sm:$0xff] %v1183
          %1568 = vst [vmem:[%s220 + $0xad0] sm:$0xff] %v1184
          %1569 = vst [vmem:[%s220 + $0xad8] sm:$0xff] %v1185
          %1570 = vst [vmem:[%s220 + $0xae0] sm:$0xff] %v1186
          %1571 = vst [vmem:[%s220 + $0xae8] sm:$0xff] %v1187
          %1572 = vst [vmem:[%s220 + $0xaf0] sm:$0xff] %v1188
          %1573 = vst [vmem:[%s220 + $0xaf8] sm:$0xff] %v1189
          %1574 = vst [vmem:[%s220 + $0xb00] sm:$0xff] %v1190
          %1575 = vst [vmem:[%s220 + $0xb08] sm:$0xff] %v1191
          %1576 = vst [vmem:[%s220 + $0xb10] sm:$0xff] %v1192
          %1577 = vst [vmem:[%s220 + $0xb18] sm:$0xff] %v1193
          %1578 = vst [vmem:[%s220 + $0xb20] sm:$0xff] %v1194
          %1579 = vst [vmem:[%s220 + $0xb28] sm:$0xff] %v1195
          %1580 = vst [vmem:[%s220 + $0xb30] sm:$0xff] %v1196
          %1581 = vst [vmem:[%s220 + $0xb38] sm:$0xff] %v1197
          %1582 = vst [vmem:[%s220 + $0xb40] sm:$0xff] %v1198
          %1583 = vst [vmem:[%s220 + $0xb48] sm:$0xff] %v1199
          %1584 = vst [vmem:[%s220 + $0xb50] sm:$0xff] %v1200
          %1585 = vst [vmem:[%s220 + $0xb58] sm:$0xff] %v1201
          %1586 = vst [vmem:[%s220 + $0xb60] sm:$0xff] %v1202
          %1587 = vst [vmem:[%s220 + $0xb68] sm:$0xff] %v1203
          %1588 = vst [vmem:[%s220 + $0xb70] sm:$0xff] %v1204
          %1589 = vst [vmem:[%s220 + $0xb78] sm:$0xff] %v1205
          %1590 = vst [vmem:[%s220 + $0xb80] sm:$0xff] %v1206
          %1591 = vst [vmem:[%s220 + $0xb88] sm:$0xff] %v1207
          %1592 = vst [vmem:[%s220 + $0xb90] sm:$0xff] %v1208
          %1593 = vst [vmem:[%s220 + $0xb98] sm:$0xff] %v1209
          %1594 = vst [vmem:[%s220 + $0xba0] sm:$0xff] %v1210
          %1595 = vst [vmem:[%s220 + $0xba8] sm:$0xff] %v1211
          %1596 = vst [vmem:[%s220 + $0xbb0] sm:$0xff] %v1212
          %1597 = vst [vmem:[%s220 + $0xbb8] sm:$0xff] %v1213
          %1598 = vst [vmem:[%s220 + $0xbc0] sm:$0xff] %v1214
          %1599 = vst [vmem:[%s220 + $0xbc8] sm:$0xff] %v1215
          %1600 = vst [vmem:[%s220 + $0xbd0] sm:$0xff] %v1216
          %1601 = vst [vmem:[%s220 + $0xbd8] sm:$0xff] %v1217
          %1602 = vst [vmem:[%s220 + $0xbe0] sm:$0xff] %v1218
          %1603 = vst [vmem:[%s220 + $0xbe8] sm:$0xff] %v1219
          %1604 = vst [vmem:[%s220 + $0xbf0] sm:$0xff] %v1220
          %1605 = vst [vmem:[%s220 + $0xbf8] sm:$0xff] %v1221
          %v1606 = vld [vmem:[%s248] sm:$0x3f]
          %v1608 = vlaneseq
          %v1609 = vshrl.u32 %v1608, 7
          %v1610 = vsub.s32 0, %v1609
          %v1611 = vrot.slane %v1606, %v1610
          %v1612 = vlaneseq
          %v1613 = vshrl.u32 %v1612, 7
          %v1614 = vsub.s32 1, %v1613
          %v1615 = vrot.slane %v1606, %v1614
          %v1616 = vlaneseq
          %v1617 = vshrl.u32 %v1616, 7
          %v1618 = vsub.s32 2, %v1617
          %v1619 = vrot.slane %v1606, %v1618
          %v1620 = vlaneseq
          %v1621 = vshrl.u32 %v1620, 7
          %v1622 = vsub.s32 3, %v1621
          %v1623 = vrot.slane %v1606, %v1622
          %v1624 = vlaneseq
          %v1625 = vshrl.u32 %v1624, 7
          %v1626 = vsub.s32 4, %v1625
          %v1627 = vrot.slane %v1606, %v1626
          %v1628 = vlaneseq
          %v1629 = vshrl.u32 %v1628, 7
          %v1630 = vsub.s32 5, %v1629
          %v1631 = vrot.slane %v1606, %v1630
          %v1638 = vsel %vm422, %v1611, 0.0
          %v1639 = vsel %vm423, %v1615, 0.0
          %v1640 = vsel %vm424, %v1619, 0.0
          %v1641 = vsel %vm425, %v1623, 0.0
          %v1642 = vsel %vm426, %v1627, 0.0
          %v1643 = vsel %vm427, %v1631, 0.0
          %v1644 = vsel %vm428, %v1611, 0.0
          %v1645 = vsel %vm429, %v1615, 0.0
          %v1646 = vsel %vm430, %v1619, 0.0
          %v1647 = vsel %vm431, %v1623, 0.0
          %v1648 = vsel %vm432, %v1627, 0.0
          %v1649 = vsel %vm433, %v1631, 0.0
          %v1650 = vsel %vm434, %v1611, 0.0
          %v1651 = vsel %vm435, %v1615, 0.0
          %v1652 = vsel %vm436, %v1619, 0.0
          %v1653 = vsel %vm437, %v1623, 0.0
          %v1654 = vsel %vm438, %v1627, 0.0
          %v1655 = vsel %vm439, %v1631, 0.0
          %v1656 = vsel %vm440, %v1611, 0.0
          %v1657 = vsel %vm441, %v1615, 0.0
          %v1658 = vsel %vm442, %v1619, 0.0
          %v1659 = vsel %vm443, %v1623, 0.0
          %v1660 = vsel %vm444, %v1627, 0.0
          %v1661 = vsel %vm445, %v1631, 0.0
          %v1662 = vsel %vm446, %v1611, 0.0
          %v1663 = vsel %vm447, %v1615, 0.0
          %v1664 = vsel %vm448, %v1619, 0.0
          %v1665 = vsel %vm449, %v1623, 0.0
          %v1666 = vsel %vm450, %v1627, 0.0
          %v1667 = vsel %vm451, %v1631, 0.0
          %v1668 = vsel %vm452, %v1611, 0.0
          %v1669 = vsel %vm453, %v1615, 0.0
          %v1670 = vsel %vm454, %v1619, 0.0
          %v1671 = vsel %vm455, %v1623, 0.0
          %v1672 = vsel %vm456, %v1627, 0.0
          %v1673 = vsel %vm457, %v1631, 0.0
          %v1674 = vsel %vm458, %v1611, 0.0
          %v1675 = vsel %vm459, %v1615, 0.0
          %v1676 = vsel %vm460, %v1619, 0.0
          %v1677 = vsel %vm461, %v1623, 0.0
          %v1678 = vsel %vm462, %v1627, 0.0
          %v1679 = vsel %vm463, %v1631, 0.0
          %v1680 = vsel %vm464, %v1611, 0.0
          %v1681 = vsel %vm465, %v1615, 0.0
          %v1682 = vsel %vm466, %v1619, 0.0
          %v1683 = vsel %vm467, %v1623, 0.0
          %v1684 = vsel %vm468, %v1627, 0.0
          %v1685 = vsel %vm469, %v1631, 0.0
          %v1686 = vsel %vm470, %v1611, 0.0
          %v1687 = vsel %vm471, %v1615, 0.0
          %v1688 = vsel %vm472, %v1619, 0.0
          %v1689 = vsel %vm473, %v1623, 0.0
          %v1690 = vsel %vm474, %v1627, 0.0
          %v1691 = vsel %vm475, %v1631, 0.0
          %v1692 = vsel %vm476, %v1611, 0.0
          %v1693 = vsel %vm477, %v1615, 0.0
          %v1694 = vsel %vm478, %v1619, 0.0
          %v1695 = vsel %vm479, %v1623, 0.0
          %v1696 = vsel %vm480, %v1627, 0.0
          %v1697 = vsel %vm481, %v1631, 0.0
          %v1698 = vsel %vm482, %v1611, 0.0
          %v1699 = vsel %vm483, %v1615, 0.0
          %v1700 = vsel %vm484, %v1619, 0.0
          %v1701 = vsel %vm485, %v1623, 0.0
          %v1702 = vsel %vm486, %v1627, 0.0
          %v1703 = vsel %vm487, %v1631, 0.0
          %v1704 = vsel %vm488, %v1611, 0.0
          %v1705 = vsel %vm489, %v1615, 0.0
          %v1706 = vsel %vm490, %v1619, 0.0
          %v1707 = vsel %vm491, %v1623, 0.0
          %v1708 = vsel %vm492, %v1627, 0.0
          %v1709 = vsel %vm493, %v1631, 0.0
          %v1710 = vsel %vm494, %v1611, 0.0
          %v1711 = vsel %vm495, %v1615, 0.0
          %v1712 = vsel %vm496, %v1619, 0.0
          %v1713 = vsel %vm497, %v1623, 0.0
          %v1714 = vsel %vm498, %v1627, 0.0
          %v1715 = vsel %vm499, %v1631, 0.0
          %v1716 = vsel %vm500, %v1611, 0.0
          %v1717 = vsel %vm501, %v1615, 0.0
          %v1718 = vsel %vm502, %v1619, 0.0
          %v1719 = vsel %vm503, %v1623, 0.0
          %v1720 = vsel %vm504, %v1627, 0.0
          %v1721 = vsel %vm505, %v1631, 0.0
          %v1722 = vsel %vm506, %v1611, 0.0
          %v1723 = vsel %vm507, %v1615, 0.0
          %v1724 = vsel %vm508, %v1619, 0.0
          %v1725 = vsel %vm509, %v1623, 0.0
          %v1726 = vsel %vm510, %v1627, 0.0
          %v1727 = vsel %vm511, %v1631, 0.0
          %v1728 = vsel %vm512, %v1611, 0.0
          %v1729 = vsel %vm513, %v1615, 0.0
          %v1730 = vsel %vm514, %v1619, 0.0
          %v1731 = vsel %vm515, %v1623, 0.0
          %v1732 = vsel %vm516, %v1627, 0.0
          %v1733 = vsel %vm517, %v1631, 0.0
          %v1734 = vsel %vm518, %v1611, 0.0
          %v1735 = vsel %vm519, %v1615, 0.0
          %v1736 = vsel %vm520, %v1619, 0.0
          %v1737 = vsel %vm521, %v1623, 0.0
          %v1738 = vsel %vm522, %v1627, 0.0
          %v1739 = vsel %vm523, %v1631, 0.0
          %v1740 = vsel %vm524, %v1611, 0.0
          %v1741 = vsel %vm525, %v1615, 0.0
          %v1742 = vsel %vm526, %v1619, 0.0
          %v1743 = vsel %vm527, %v1623, 0.0
          %v1744 = vsel %vm528, %v1627, 0.0
          %v1745 = vsel %vm529, %v1631, 0.0
          %v1746 = vsel %vm530, %v1611, 0.0
          %v1747 = vsel %vm531, %v1615, 0.0
          %v1748 = vsel %vm532, %v1619, 0.0
          %v1749 = vsel %vm533, %v1623, 0.0
          %v1750 = vsel %vm534, %v1627, 0.0
          %v1751 = vsel %vm535, %v1631, 0.0
          %v1752 = vsel %vm536, %v1611, 0.0
          %v1753 = vsel %vm537, %v1615, 0.0
          %v1754 = vsel %vm538, %v1619, 0.0
          %v1755 = vsel %vm539, %v1623, 0.0
          %v1756 = vsel %vm540, %v1627, 0.0
          %v1757 = vsel %vm541, %v1631, 0.0
          %v1758 = vsel %vm542, %v1611, 0.0
          %v1759 = vsel %vm543, %v1615, 0.0
          %v1760 = vsel %vm544, %v1619, 0.0
          %v1761 = vsel %vm545, %v1623, 0.0
          %v1762 = vsel %vm546, %v1627, 0.0
          %v1763 = vsel %vm547, %v1631, 0.0
          %v1764 = vsel %vm548, %v1611, 0.0
          %v1765 = vsel %vm549, %v1615, 0.0
          %v1766 = vsel %vm550, %v1619, 0.0
          %v1767 = vsel %vm551, %v1623, 0.0
          %v1768 = vsel %vm552, %v1627, 0.0
          %v1769 = vsel %vm553, %v1631, 0.0
          %v1770 = vsel %vm554, %v1611, 0.0
          %v1771 = vsel %vm555, %v1615, 0.0
          %v1772 = vsel %vm556, %v1619, 0.0
          %v1773 = vsel %vm557, %v1623, 0.0
          %v1774 = vsel %vm558, %v1627, 0.0
          %v1775 = vsel %vm559, %v1631, 0.0
          %v1776 = vsel %vm560, %v1611, 0.0
          %v1777 = vsel %vm561, %v1615, 0.0
          %v1778 = vsel %vm562, %v1619, 0.0
          %v1779 = vsel %vm563, %v1623, 0.0
          %v1780 = vsel %vm564, %v1627, 0.0
          %v1781 = vsel %vm565, %v1631, 0.0
          %v1782 = vsel %vm566, %v1611, 0.0
          %v1783 = vsel %vm567, %v1615, 0.0
          %v1784 = vsel %vm568, %v1619, 0.0
          %v1785 = vsel %vm569, %v1623, 0.0
          %v1786 = vsel %vm570, %v1627, 0.0
          %v1787 = vsel %vm571, %v1631, 0.0
          %v1788 = vsel %vm572, %v1611, 0.0
          %v1789 = vsel %vm573, %v1615, 0.0
          %v1790 = vsel %vm574, %v1619, 0.0
          %v1791 = vsel %vm575, %v1623, 0.0
          %v1792 = vsel %vm576, %v1627, 0.0
          %v1793 = vsel %vm577, %v1631, 0.0
          %v1794 = vsel %vm578, %v1611, 0.0
          %v1795 = vsel %vm579, %v1615, 0.0
          %v1796 = vsel %vm580, %v1619, 0.0
          %v1797 = vsel %vm581, %v1623, 0.0
          %v1798 = vsel %vm582, %v1627, 0.0
          %v1799 = vsel %vm583, %v1631, 0.0
          %v1800 = vsel %vm584, %v1611, 0.0
          %v1801 = vsel %vm585, %v1615, 0.0
          %v1802 = vsel %vm586, %v1619, 0.0
          %v1803 = vsel %vm587, %v1623, 0.0
          %v1804 = vsel %vm588, %v1627, 0.0
          %v1805 = vsel %vm589, %v1631, 0.0
          %v1806 = vsel %vm590, %v1611, 0.0
          %v1807 = vsel %vm591, %v1615, 0.0
          %v1808 = vsel %vm592, %v1619, 0.0
          %v1809 = vsel %vm593, %v1623, 0.0
          %v1810 = vsel %vm594, %v1627, 0.0
          %v1811 = vsel %vm595, %v1631, 0.0
          %v1812 = vsel %vm596, %v1611, 0.0
          %v1813 = vsel %vm597, %v1615, 0.0
          %v1814 = vsel %vm598, %v1619, 0.0
          %v1815 = vsel %vm599, %v1623, 0.0
          %v1816 = vsel %vm600, %v1627, 0.0
          %v1817 = vsel %vm601, %v1631, 0.0
          %v1818 = vsel %vm602, %v1611, 0.0
          %v1819 = vsel %vm603, %v1615, 0.0
          %v1820 = vsel %vm604, %v1619, 0.0
          %v1821 = vsel %vm605, %v1623, 0.0
          %v1822 = vsel %vm606, %v1627, 0.0
          %v1823 = vsel %vm607, %v1631, 0.0
          %v1824 = vsel %vm608, %v1611, 0.0
          %v1825 = vsel %vm609, %v1615, 0.0
          %v1826 = vsel %vm610, %v1619, 0.0
          %v1827 = vsel %vm611, %v1623, 0.0
          %v1828 = vsel %vm612, %v1627, 0.0
          %v1829 = vsel %vm613, %v1631, 0.0
          %v1830 = vsel %vm614, %v1611, 0.0
          %v1831 = vsel %vm615, %v1615, 0.0
          %v1832 = vsel %vm616, %v1619, 0.0
          %v1833 = vsel %vm617, %v1623, 0.0
          %v1834 = vsel %vm618, %v1627, 0.0
          %v1835 = vsel %vm619, %v1631, 0.0
          %v1836 = vsel %vm620, %v1611, 0.0
          %v1837 = vsel %vm621, %v1615, 0.0
          %v1838 = vsel %vm622, %v1619, 0.0
          %v1839 = vsel %vm623, %v1623, 0.0
          %v1840 = vsel %vm624, %v1627, 0.0
          %v1841 = vsel %vm625, %v1631, 0.0
          %v1842 = vsel %vm626, %v1611, 0.0
          %v1843 = vsel %vm627, %v1615, 0.0
          %v1844 = vsel %vm628, %v1619, 0.0
          %v1845 = vsel %vm629, %v1623, 0.0
          %v1846 = vsel %vm630, %v1627, 0.0
          %v1847 = vsel %vm631, %v1631, 0.0
          %v1848 = vsel %vm632, %v1611, 0.0
          %v1849 = vsel %vm633, %v1615, 0.0
          %v1850 = vsel %vm634, %v1619, 0.0
          %v1851 = vsel %vm635, %v1623, 0.0
          %v1852 = vsel %vm636, %v1627, 0.0
          %v1853 = vsel %vm637, %v1631, 0.0
          %v1854 = vsel %vm638, %v1611, 0.0
          %v1855 = vsel %vm639, %v1615, 0.0
          %v1856 = vsel %vm640, %v1619, 0.0
          %v1857 = vsel %vm641, %v1623, 0.0
          %v1858 = vsel %vm642, %v1627, 0.0
          %v1859 = vsel %vm643, %v1631, 0.0
          %v1860 = vsel %vm644, %v1611, 0.0
          %v1861 = vsel %vm645, %v1615, 0.0
          %v1862 = vsel %vm646, %v1619, 0.0
          %v1863 = vsel %vm647, %v1623, 0.0
          %v1864 = vsel %vm648, %v1627, 0.0
          %v1865 = vsel %vm649, %v1631, 0.0
          %v1866 = vsel %vm650, %v1611, 0.0
          %v1867 = vsel %vm651, %v1615, 0.0
          %v1868 = vsel %vm652, %v1619, 0.0
          %v1869 = vsel %vm653, %v1623, 0.0
          %v1870 = vsel %vm654, %v1627, 0.0
          %v1871 = vsel %vm655, %v1631, 0.0
          %v1872 = vsel %vm656, %v1611, 0.0
          %v1873 = vsel %vm657, %v1615, 0.0
          %v1874 = vsel %vm658, %v1619, 0.0
          %v1875 = vsel %vm659, %v1623, 0.0
          %v1876 = vsel %vm660, %v1627, 0.0
          %v1877 = vsel %vm661, %v1631, 0.0
          %v1878 = vsel %vm662, %v1611, 0.0
          %v1879 = vsel %vm663, %v1615, 0.0
          %v1880 = vsel %vm664, %v1619, 0.0
          %v1881 = vsel %vm665, %v1623, 0.0
          %v1882 = vsel %vm666, %v1627, 0.0
          %v1883 = vsel %vm667, %v1631, 0.0
          %v1884 = vsel %vm668, %v1611, 0.0
          %v1885 = vsel %vm669, %v1615, 0.0
          %v1886 = vsel %vm670, %v1619, 0.0
          %v1887 = vsel %vm671, %v1623, 0.0
          %v1888 = vsel %vm672, %v1627, 0.0
          %v1889 = vsel %vm673, %v1631, 0.0
          %v1890 = vsel %vm674, %v1611, 0.0
          %v1891 = vsel %vm675, %v1615, 0.0
          %v1892 = vsel %vm676, %v1619, 0.0
          %v1893 = vsel %vm677, %v1623, 0.0
          %v1894 = vsel %vm678, %v1627, 0.0
          %v1895 = vsel %vm679, %v1631, 0.0
          %v1896 = vsel %vm680, %v1611, 0.0
          %v1897 = vsel %vm681, %v1615, 0.0
          %v1898 = vsel %vm682, %v1619, 0.0
          %v1899 = vsel %vm683, %v1623, 0.0
          %v1900 = vsel %vm684, %v1627, 0.0
          %v1901 = vsel %vm685, %v1631, 0.0
          %v1902 = vsel %vm686, %v1611, 0.0
          %v1903 = vsel %vm687, %v1615, 0.0
          %v1904 = vsel %vm688, %v1619, 0.0
          %v1905 = vsel %vm689, %v1623, 0.0
          %v1906 = vsel %vm690, %v1627, 0.0
          %v1907 = vsel %vm691, %v1631, 0.0
          %v1908 = vsel %vm692, %v1611, 0.0
          %v1909 = vsel %vm693, %v1615, 0.0
          %v1910 = vsel %vm694, %v1619, 0.0
          %v1911 = vsel %vm695, %v1623, 0.0
          %v1912 = vsel %vm696, %v1627, 0.0
          %v1913 = vsel %vm697, %v1631, 0.0
          %v1914 = vsel %vm698, %v1611, 0.0
          %v1915 = vsel %vm699, %v1615, 0.0
          %v1916 = vsel %vm700, %v1619, 0.0
          %v1917 = vsel %vm701, %v1623, 0.0
          %v1918 = vsel %vm702, %v1627, 0.0
          %v1919 = vsel %vm703, %v1631, 0.0
          %v1920 = vsel %vm704, %v1611, 0.0
          %v1921 = vsel %vm705, %v1615, 0.0
          %v1922 = vsel %vm706, %v1619, 0.0
          %v1923 = vsel %vm707, %v1623, 0.0
          %v1924 = vsel %vm708, %v1627, 0.0
          %v1925 = vsel %vm709, %v1631, 0.0
          %v1926 = vsel %vm710, %v1611, 0.0
          %v1927 = vsel %vm711, %v1615, 0.0
          %v1928 = vsel %vm712, %v1619, 0.0
          %v1929 = vsel %vm713, %v1623, 0.0
          %v1930 = vsel %vm714, %v1627, 0.0
          %v1931 = vsel %vm715, %v1631, 0.0
          %v1932 = vsel %vm716, %v1611, 0.0
          %v1933 = vsel %vm717, %v1615, 0.0
          %v1934 = vsel %vm718, %v1619, 0.0
          %v1935 = vsel %vm719, %v1623, 0.0
          %v1936 = vsel %vm720, %v1627, 0.0
          %v1937 = vsel %vm721, %v1631, 0.0
          %v1938 = vsel %vm722, %v1611, 0.0
          %v1939 = vsel %vm723, %v1615, 0.0
          %v1940 = vsel %vm724, %v1619, 0.0
          %v1941 = vsel %vm725, %v1623, 0.0
          %v1942 = vsel %vm726, %v1627, 0.0
          %v1943 = vsel %vm727, %v1631, 0.0
          %v1944 = vsel %vm728, %v1611, 0.0
          %v1945 = vsel %vm729, %v1615, 0.0
          %v1946 = vsel %vm730, %v1619, 0.0
          %v1947 = vsel %vm731, %v1623, 0.0
          %v1948 = vsel %vm732, %v1627, 0.0
          %v1949 = vsel %vm733, %v1631, 0.0
          %v1950 = vsel %vm734, %v1611, 0.0
          %v1951 = vsel %vm735, %v1615, 0.0
          %v1952 = vsel %vm736, %v1619, 0.0
          %v1953 = vsel %vm737, %v1623, 0.0
          %v1954 = vsel %vm738, %v1627, 0.0
          %v1955 = vsel %vm739, %v1631, 0.0
          %v1956 = vsel %vm740, %v1611, 0.0
          %v1957 = vsel %vm741, %v1615, 0.0
          %v1958 = vsel %vm742, %v1619, 0.0
          %v1959 = vsel %vm743, %v1623, 0.0
          %v1960 = vsel %vm744, %v1627, 0.0
          %v1961 = vsel %vm745, %v1631, 0.0
          %v1962 = vsel %vm746, %v1611, 0.0
          %v1963 = vsel %vm747, %v1615, 0.0
          %v1964 = vsel %vm748, %v1619, 0.0
          %v1965 = vsel %vm749, %v1623, 0.0
          %v1966 = vsel %vm750, %v1627, 0.0
          %v1967 = vsel %vm751, %v1631, 0.0
          %v1968 = vsel %vm752, %v1611, 0.0
          %v1969 = vsel %vm753, %v1615, 0.0
          %v1970 = vsel %vm754, %v1619, 0.0
          %v1971 = vsel %vm755, %v1623, 0.0
          %v1972 = vsel %vm756, %v1627, 0.0
          %v1973 = vsel %vm757, %v1631, 0.0
          %v1974 = vsel %vm758, %v1611, 0.0
          %v1975 = vsel %vm759, %v1615, 0.0
          %v1976 = vsel %vm760, %v1619, 0.0
          %v1977 = vsel %vm761, %v1623, 0.0
          %v1978 = vsel %vm762, %v1627, 0.0
          %v1979 = vsel %vm763, %v1631, 0.0
          %v1980 = vsel %vm764, %v1611, 0.0
          %v1981 = vsel %vm765, %v1615, 0.0
          %v1982 = vsel %vm766, %v1619, 0.0
          %v1983 = vsel %vm767, %v1623, 0.0
          %v1984 = vsel %vm768, %v1627, 0.0
          %v1985 = vsel %vm769, %v1631, 0.0
          %v1986 = vsel %vm770, %v1611, 0.0
          %v1987 = vsel %vm771, %v1615, 0.0
          %v1988 = vsel %vm772, %v1619, 0.0
          %v1989 = vsel %vm773, %v1623, 0.0
          %v1990 = vsel %vm774, %v1627, 0.0
          %v1991 = vsel %vm775, %v1631, 0.0
          %v1992 = vsel %vm776, %v1611, 0.0
          %v1993 = vsel %vm777, %v1615, 0.0
          %v1994 = vsel %vm778, %v1619, 0.0
          %v1995 = vsel %vm779, %v1623, 0.0
          %v1996 = vsel %vm780, %v1627, 0.0
          %v1997 = vsel %vm781, %v1631, 0.0
          %v1998 = vsel %vm782, %v1611, 0.0
          %v1999 = vsel %vm783, %v1615, 0.0
          %v2000 = vsel %vm784, %v1619, 0.0
          %v2001 = vsel %vm785, %v1623, 0.0
          %v2002 = vsel %vm786, %v1627, 0.0
          %v2003 = vsel %vm787, %v1631, 0.0
          %v2004 = vsel %vm788, %v1611, 0.0
          %v2005 = vsel %vm789, %v1615, 0.0
          %v2006 = vsel %vm790, %v1619, 0.0
          %v2007 = vsel %vm791, %v1623, 0.0
          %v2008 = vsel %vm792, %v1627, 0.0
          %v2009 = vsel %vm793, %v1631, 0.0
          %v2010 = vsel %vm794, %v1611, 0.0
          %v2011 = vsel %vm795, %v1615, 0.0
          %v2012 = vsel %vm796, %v1619, 0.0
          %v2013 = vsel %vm797, %v1623, 0.0
          %v2014 = vsel %vm798, %v1627, 0.0
          %v2015 = vsel %vm799, %v1631, 0.0
          %v2016 = vsel %vm800, %v1611, 0.0
          %v2017 = vsel %vm801, %v1615, 0.0
          %v2018 = vsel %vm802, %v1619, 0.0
          %v2019 = vsel %vm803, %v1623, 0.0
          %v2020 = vsel %vm804, %v1627, 0.0
          %v2021 = vsel %vm805, %v1631, 0.0
          %2022 = vst [vmem:[%s227] sm:$0xff] %v1638
          %2023 = vst [vmem:[%s227 + $0x8] sm:$0xff] %v1639
          %2024 = vst [vmem:[%s227 + $0x10] sm:$0xff] %v1640
          %2025 = vst [vmem:[%s227 + $0x18] sm:$0xff] %v1641
          %2026 = vst [vmem:[%s227 + $0x20] sm:$0xff] %v1642
          %2027 = vst [vmem:[%s227 + $0x28] sm:$0xff] %v1643
          %2028 = vst [vmem:[%s227 + $0x30] sm:$0xff] %v1644
          %2029 = vst [vmem:[%s227 + $0x38] sm:$0xff] %v1645
          %2030 = vst [vmem:[%s227 + $0x40] sm:$0xff] %v1646
          %2031 = vst [vmem:[%s227 + $0x48] sm:$0xff] %v1647
          %2032 = vst [vmem:[%s227 + $0x50] sm:$0xff] %v1648
          %2033 = vst [vmem:[%s227 + $0x58] sm:$0xff] %v1649
          %2034 = vst [vmem:[%s227 + $0x60] sm:$0xff] %v1650
          %2035 = vst [vmem:[%s227 + $0x68] sm:$0xff] %v1651
          %2036 = vst [vmem:[%s227 + $0x70] sm:$0xff] %v1652
          %2037 = vst [vmem:[%s227 + $0x78] sm:$0xff] %v1653
          %2038 = vst [vmem:[%s227 + $0x80] sm:$0xff] %v1654
          %2039 = vst [vmem:[%s227 + $0x88] sm:$0xff] %v1655
          %2040 = vst [vmem:[%s227 + $0x90] sm:$0xff] %v1656
          %2041 = vst [vmem:[%s227 + $0x98] sm:$0xff] %v1657
          %2042 = vst [vmem:[%s227 + $0xa0] sm:$0xff] %v1658
          %2043 = vst [vmem:[%s227 + $0xa8] sm:$0xff] %v1659
          %2044 = vst [vmem:[%s227 + $0xb0] sm:$0xff] %v1660
          %2045 = vst [vmem:[%s227 + $0xb8] sm:$0xff] %v1661
          %2046 = vst [vmem:[%s227 + $0xc0] sm:$0xff] %v1662
          %2047 = vst [vmem:[%s227 + $0xc8] sm:$0xff] %v1663
          %2048 = vst [vmem:[%s227 + $0xd0] sm:$0xff] %v1664
          %2049 = vst [vmem:[%s227 + $0xd8] sm:$0xff] %v1665
          %2050 = vst [vmem:[%s227 + $0xe0] sm:$0xff] %v1666
          %2051 = vst [vmem:[%s227 + $0xe8] sm:$0xff] %v1667
          %2052 = vst [vmem:[%s227 + $0xf0] sm:$0xff] %v1668
          %2053 = vst [vmem:[%s227 + $0xf8] sm:$0xff] %v1669
          %2054 = vst [vmem:[%s227 + $0x100] sm:$0xff] %v1670
          %2055 = vst [vmem:[%s227 + $0x108] sm:$0xff] %v1671
          %2056 = vst [vmem:[%s227 + $0x110] sm:$0xff] %v1672
          %2057 = vst [vmem:[%s227 + $0x118] sm:$0xff] %v1673
          %2058 = vst [vmem:[%s227 + $0x120] sm:$0xff] %v1674
          %2059 = vst [vmem:[%s227 + $0x128] sm:$0xff] %v1675
          %2060 = vst [vmem:[%s227 + $0x130] sm:$0xff] %v1676
          %2061 = vst [vmem:[%s227 + $0x138] sm:$0xff] %v1677
          %2062 = vst [vmem:[%s227 + $0x140] sm:$0xff] %v1678
          %2063 = vst [vmem:[%s227 + $0x148] sm:$0xff] %v1679
          %2064 = vst [vmem:[%s227 + $0x150] sm:$0xff] %v1680
          %2065 = vst [vmem:[%s227 + $0x158] sm:$0xff] %v1681
          %2066 = vst [vmem:[%s227 + $0x160] sm:$0xff] %v1682
          %2067 = vst [vmem:[%s227 + $0x168] sm:$0xff] %v1683
          %2068 = vst [vmem:[%s227 + $0x170] sm:$0xff] %v1684
          %2069 = vst [vmem:[%s227 + $0x178] sm:$0xff] %v1685
          %2070 = vst [vmem:[%s227 + $0x180] sm:$0xff] %v1686
          %2071 = vst [vmem:[%s227 + $0x188] sm:$0xff] %v1687
          %2072 = vst [vmem:[%s227 + $0x190] sm:$0xff] %v1688
          %2073 = vst [vmem:[%s227 + $0x198] sm:$0xff] %v1689
          %2074 = vst [vmem:[%s227 + $0x1a0] sm:$0xff] %v1690
          %2075 = vst [vmem:[%s227 + $0x1a8] sm:$0xff] %v1691
          %2076 = vst [vmem:[%s227 + $0x1b0] sm:$0xff] %v1692
          %2077 = vst [vmem:[%s227 + $0x1b8] sm:$0xff] %v1693
          %2078 = vst [vmem:[%s227 + $0x1c0] sm:$0xff] %v1694
          %2079 = vst [vmem:[%s227 + $0x1c8] sm:$0xff] %v1695
          %2080 = vst [vmem:[%s227 + $0x1d0] sm:$0xff] %v1696
          %2081 = vst [vmem:[%s227 + $0x1d8] sm:$0xff] %v1697
          %2082 = vst [vmem:[%s227 + $0x1e0] sm:$0xff] %v1698
          %2083 = vst [vmem:[%s227 + $0x1e8] sm:$0xff] %v1699
          %2084 = vst [vmem:[%s227 + $0x1f0] sm:$0xff] %v1700
          %2085 = vst [vmem:[%s227 + $0x1f8] sm:$0xff] %v1701
          %2086 = vst [vmem:[%s227 + $0x200] sm:$0xff] %v1702
          %2087 = vst [vmem:[%s227 + $0x208] sm:$0xff] %v1703
          %2088 = vst [vmem:[%s227 + $0x210] sm:$0xff] %v1704
          %2089 = vst [vmem:[%s227 + $0x218] sm:$0xff] %v1705
          %2090 = vst [vmem:[%s227 + $0x220] sm:$0xff] %v1706
          %2091 = vst [vmem:[%s227 + $0x228] sm:$0xff] %v1707
          %2092 = vst [vmem:[%s227 + $0x230] sm:$0xff] %v1708
          %2093 = vst [vmem:[%s227 + $0x238] sm:$0xff] %v1709
          %2094 = vst [vmem:[%s227 + $0x240] sm:$0xff] %v1710
          %2095 = vst [vmem:[%s227 + $0x248] sm:$0xff] %v1711
          %2096 = vst [vmem:[%s227 + $0x250] sm:$0xff] %v1712
          %2097 = vst [vmem:[%s227 + $0x258] sm:$0xff] %v1713
          %2098 = vst [vmem:[%s227 + $0x260] sm:$0xff] %v1714
          %2099 = vst [vmem:[%s227 + $0x268] sm:$0xff] %v1715
          %2100 = vst [vmem:[%s227 + $0x270] sm:$0xff] %v1716
          %2101 = vst [vmem:[%s227 + $0x278] sm:$0xff] %v1717
          %2102 = vst [vmem:[%s227 + $0x280] sm:$0xff] %v1718
          %2103 = vst [vmem:[%s227 + $0x288] sm:$0xff] %v1719
          %2104 = vst [vmem:[%s227 + $0x290] sm:$0xff] %v1720
          %2105 = vst [vmem:[%s227 + $0x298] sm:$0xff] %v1721
          %2106 = vst [vmem:[%s227 + $0x2a0] sm:$0xff] %v1722
          %2107 = vst [vmem:[%s227 + $0x2a8] sm:$0xff] %v1723
          %2108 = vst [vmem:[%s227 + $0x2b0] sm:$0xff] %v1724
          %2109 = vst [vmem:[%s227 + $0x2b8] sm:$0xff] %v1725
          %2110 = vst [vmem:[%s227 + $0x2c0] sm:$0xff] %v1726
          %2111 = vst [vmem:[%s227 + $0x2c8] sm:$0xff] %v1727
          %2112 = vst [vmem:[%s227 + $0x2d0] sm:$0xff] %v1728
          %2113 = vst [vmem:[%s227 + $0x2d8] sm:$0xff] %v1729
          %2114 = vst [vmem:[%s227 + $0x2e0] sm:$0xff] %v1730
          %2115 = vst [vmem:[%s227 + $0x2e8] sm:$0xff] %v1731
          %2116 = vst [vmem:[%s227 + $0x2f0] sm:$0xff] %v1732
          %2117 = vst [vmem:[%s227 + $0x2f8] sm:$0xff] %v1733
          %2118 = vst [vmem:[%s227 + $0x300] sm:$0xff] %v1734
          %2119 = vst [vmem:[%s227 + $0x308] sm:$0xff] %v1735
          %2120 = vst [vmem:[%s227 + $0x310] sm:$0xff] %v1736
          %2121 = vst [vmem:[%s227 + $0x318] sm:$0xff] %v1737
          %2122 = vst [vmem:[%s227 + $0x320] sm:$0xff] %v1738
          %2123 = vst [vmem:[%s227 + $0x328] sm:$0xff] %v1739
          %2124 = vst [vmem:[%s227 + $0x330] sm:$0xff] %v1740
          %2125 = vst [vmem:[%s227 + $0x338] sm:$0xff] %v1741
          %2126 = vst [vmem:[%s227 + $0x340] sm:$0xff] %v1742
          %2127 = vst [vmem:[%s227 + $0x348] sm:$0xff] %v1743
          %2128 = vst [vmem:[%s227 + $0x350] sm:$0xff] %v1744
          %2129 = vst [vmem:[%s227 + $0x358] sm:$0xff] %v1745
          %2130 = vst [vmem:[%s227 + $0x360] sm:$0xff] %v1746
          %2131 = vst [vmem:[%s227 + $0x368] sm:$0xff] %v1747
          %2132 = vst [vmem:[%s227 + $0x370] sm:$0xff] %v1748
          %2133 = vst [vmem:[%s227 + $0x378] sm:$0xff] %v1749
          %2134 = vst [vmem:[%s227 + $0x380] sm:$0xff] %v1750
          %2135 = vst [vmem:[%s227 + $0x388] sm:$0xff] %v1751
          %2136 = vst [vmem:[%s227 + $0x390] sm:$0xff] %v1752
          %2137 = vst [vmem:[%s227 + $0x398] sm:$0xff] %v1753
          %2138 = vst [vmem:[%s227 + $0x3a0] sm:$0xff] %v1754
          %2139 = vst [vmem:[%s227 + $0x3a8] sm:$0xff] %v1755
          %2140 = vst [vmem:[%s227 + $0x3b0] sm:$0xff] %v1756
          %2141 = vst [vmem:[%s227 + $0x3b8] sm:$0xff] %v1757
          %2142 = vst [vmem:[%s227 + $0x3c0] sm:$0xff] %v1758
          %2143 = vst [vmem:[%s227 + $0x3c8] sm:$0xff] %v1759
          %2144 = vst [vmem:[%s227 + $0x3d0] sm:$0xff] %v1760
          %2145 = vst [vmem:[%s227 + $0x3d8] sm:$0xff] %v1761
          %2146 = vst [vmem:[%s227 + $0x3e0] sm:$0xff] %v1762
          %2147 = vst [vmem:[%s227 + $0x3e8] sm:$0xff] %v1763
          %2148 = vst [vmem:[%s227 + $0x3f0] sm:$0xff] %v1764
          %2149 = vst [vmem:[%s227 + $0x3f8] sm:$0xff] %v1765
          %2150 = vst [vmem:[%s227 + $0x400] sm:$0xff] %v1766
          %2151 = vst [vmem:[%s227 + $0x408] sm:$0xff] %v1767
          %2152 = vst [vmem:[%s227 + $0x410] sm:$0xff] %v1768
          %2153 = vst [vmem:[%s227 + $0x418] sm:$0xff] %v1769
          %2154 = vst [vmem:[%s227 + $0x420] sm:$0xff] %v1770
          %2155 = vst [vmem:[%s227 + $0x428] sm:$0xff] %v1771
          %2156 = vst [vmem:[%s227 + $0x430] sm:$0xff] %v1772
          %2157 = vst [vmem:[%s227 + $0x438] sm:$0xff] %v1773
          %2158 = vst [vmem:[%s227 + $0x440] sm:$0xff] %v1774
          %2159 = vst [vmem:[%s227 + $0x448] sm:$0xff] %v1775
          %2160 = vst [vmem:[%s227 + $0x450] sm:$0xff] %v1776
          %2161 = vst [vmem:[%s227 + $0x458] sm:$0xff] %v1777
          %2162 = vst [vmem:[%s227 + $0x460] sm:$0xff] %v1778
          %2163 = vst [vmem:[%s227 + $0x468] sm:$0xff] %v1779
          %2164 = vst [vmem:[%s227 + $0x470] sm:$0xff] %v1780
          %2165 = vst [vmem:[%s227 + $0x478] sm:$0xff] %v1781
          %2166 = vst [vmem:[%s227 + $0x480] sm:$0xff] %v1782
          %2167 = vst [vmem:[%s227 + $0x488] sm:$0xff] %v1783
          %2168 = vst [vmem:[%s227 + $0x490] sm:$0xff] %v1784
          %2169 = vst [vmem:[%s227 + $0x498] sm:$0xff] %v1785
          %2170 = vst [vmem:[%s227 + $0x4a0] sm:$0xff] %v1786
          %2171 = vst [vmem:[%s227 + $0x4a8] sm:$0xff] %v1787
          %2172 = vst [vmem:[%s227 + $0x4b0] sm:$0xff] %v1788
          %2173 = vst [vmem:[%s227 + $0x4b8] sm:$0xff] %v1789
          %2174 = vst [vmem:[%s227 + $0x4c0] sm:$0xff] %v1790
          %2175 = vst [vmem:[%s227 + $0x4c8] sm:$0xff] %v1791
          %2176 = vst [vmem:[%s227 + $0x4d0] sm:$0xff] %v1792
          %2177 = vst [vmem:[%s227 + $0x4d8] sm:$0xff] %v1793
          %2178 = vst [vmem:[%s227 + $0x4e0] sm:$0xff] %v1794
          %2179 = vst [vmem:[%s227 + $0x4e8] sm:$0xff] %v1795
          %2180 = vst [vmem:[%s227 + $0x4f0] sm:$0xff] %v1796
          %2181 = vst [vmem:[%s227 + $0x4f8] sm:$0xff] %v1797
          %2182 = vst [vmem:[%s227 + $0x500] sm:$0xff] %v1798
          %2183 = vst [vmem:[%s227 + $0x508] sm:$0xff] %v1799
          %2184 = vst [vmem:[%s227 + $0x510] sm:$0xff] %v1800
          %2185 = vst [vmem:[%s227 + $0x518] sm:$0xff] %v1801
          %2186 = vst [vmem:[%s227 + $0x520] sm:$0xff] %v1802
          %2187 = vst [vmem:[%s227 + $0x528] sm:$0xff] %v1803
          %2188 = vst [vmem:[%s227 + $0x530] sm:$0xff] %v1804
          %2189 = vst [vmem:[%s227 + $0x538] sm:$0xff] %v1805
          %2190 = vst [vmem:[%s227 + $0x540] sm:$0xff] %v1806
          %2191 = vst [vmem:[%s227 + $0x548] sm:$0xff] %v1807
          %2192 = vst [vmem:[%s227 + $0x550] sm:$0xff] %v1808
          %2193 = vst [vmem:[%s227 + $0x558] sm:$0xff] %v1809
          %2194 = vst [vmem:[%s227 + $0x560] sm:$0xff] %v1810
          %2195 = vst [vmem:[%s227 + $0x568] sm:$0xff] %v1811
          %2196 = vst [vmem:[%s227 + $0x570] sm:$0xff] %v1812
          %2197 = vst [vmem:[%s227 + $0x578] sm:$0xff] %v1813
          %2198 = vst [vmem:[%s227 + $0x580] sm:$0xff] %v1814
          %2199 = vst [vmem:[%s227 + $0x588] sm:$0xff] %v1815
          %2200 = vst [vmem:[%s227 + $0x590] sm:$0xff] %v1816
          %2201 = vst [vmem:[%s227 + $0x598] sm:$0xff] %v1817
          %2202 = vst [vmem:[%s227 + $0x5a0] sm:$0xff] %v1818
          %2203 = vst [vmem:[%s227 + $0x5a8] sm:$0xff] %v1819
          %2204 = vst [vmem:[%s227 + $0x5b0] sm:$0xff] %v1820
          %2205 = vst [vmem:[%s227 + $0x5b8] sm:$0xff] %v1821
          %2206 = vst [vmem:[%s227 + $0x5c0] sm:$0xff] %v1822
          %2207 = vst [vmem:[%s227 + $0x5c8] sm:$0xff] %v1823
          %2208 = vst [vmem:[%s227 + $0x5d0] sm:$0xff] %v1824
          %2209 = vst [vmem:[%s227 + $0x5d8] sm:$0xff] %v1825
          %2210 = vst [vmem:[%s227 + $0x5e0] sm:$0xff] %v1826
          %2211 = vst [vmem:[%s227 + $0x5e8] sm:$0xff] %v1827
          %2212 = vst [vmem:[%s227 + $0x5f0] sm:$0xff] %v1828
          %2213 = vst [vmem:[%s227 + $0x5f8] sm:$0xff] %v1829
          %2214 = vst [vmem:[%s227 + $0x600] sm:$0xff] %v1830
          %2215 = vst [vmem:[%s227 + $0x608] sm:$0xff] %v1831
          %2216 = vst [vmem:[%s227 + $0x610] sm:$0xff] %v1832
          %2217 = vst [vmem:[%s227 + $0x618] sm:$0xff] %v1833
          %2218 = vst [vmem:[%s227 + $0x620] sm:$0xff] %v1834
          %2219 = vst [vmem:[%s227 + $0x628] sm:$0xff] %v1835
          %2220 = vst [vmem:[%s227 + $0x630] sm:$0xff] %v1836
          %2221 = vst [vmem:[%s227 + $0x638] sm:$0xff] %v1837
          %2222 = vst [vmem:[%s227 + $0x640] sm:$0xff] %v1838
          %2223 = vst [vmem:[%s227 + $0x648] sm:$0xff] %v1839
          %2224 = vst [vmem:[%s227 + $0x650] sm:$0xff] %v1840
          %2225 = vst [vmem:[%s227 + $0x658] sm:$0xff] %v1841
          %2226 = vst [vmem:[%s227 + $0x660] sm:$0xff] %v1842
          %2227 = vst [vmem:[%s227 + $0x668] sm:$0xff] %v1843
          %2228 = vst [vmem:[%s227 + $0x670] sm:$0xff] %v1844
          %2229 = vst [vmem:[%s227 + $0x678] sm:$0xff] %v1845
          %2230 = vst [vmem:[%s227 + $0x680] sm:$0xff] %v1846
          %2231 = vst [vmem:[%s227 + $0x688] sm:$0xff] %v1847
          %2232 = vst [vmem:[%s227 + $0x690] sm:$0xff] %v1848
          %2233 = vst [vmem:[%s227 + $0x698] sm:$0xff] %v1849
          %2234 = vst [vmem:[%s227 + $0x6a0] sm:$0xff] %v1850
          %2235 = vst [vmem:[%s227 + $0x6a8] sm:$0xff] %v1851
          %2236 = vst [vmem:[%s227 + $0x6b0] sm:$0xff] %v1852
          %2237 = vst [vmem:[%s227 + $0x6b8] sm:$0xff] %v1853
          %2238 = vst [vmem:[%s227 + $0x6c0] sm:$0xff] %v1854
          %2239 = vst [vmem:[%s227 + $0x6c8] sm:$0xff] %v1855
          %2240 = vst [vmem:[%s227 + $0x6d0] sm:$0xff] %v1856
          %2241 = vst [vmem:[%s227 + $0x6d8] sm:$0xff] %v1857
          %2242 = vst [vmem:[%s227 + $0x6e0] sm:$0xff] %v1858
          %2243 = vst [vmem:[%s227 + $0x6e8] sm:$0xff] %v1859
          %2244 = vst [vmem:[%s227 + $0x6f0] sm:$0xff] %v1860
          %2245 = vst [vmem:[%s227 + $0x6f8] sm:$0xff] %v1861
          %2246 = vst [vmem:[%s227 + $0x700] sm:$0xff] %v1862
          %2247 = vst [vmem:[%s227 + $0x708] sm:$0xff] %v1863
          %2248 = vst [vmem:[%s227 + $0x710] sm:$0xff] %v1864
          %2249 = vst [vmem:[%s227 + $0x718] sm:$0xff] %v1865
          %2250 = vst [vmem:[%s227 + $0x720] sm:$0xff] %v1866
          %2251 = vst [vmem:[%s227 + $0x728] sm:$0xff] %v1867
          %2252 = vst [vmem:[%s227 + $0x730] sm:$0xff] %v1868
          %2253 = vst [vmem:[%s227 + $0x738] sm:$0xff] %v1869
          %2254 = vst [vmem:[%s227 + $0x740] sm:$0xff] %v1870
          %2255 = vst [vmem:[%s227 + $0x748] sm:$0xff] %v1871
          %2256 = vst [vmem:[%s227 + $0x750] sm:$0xff] %v1872
          %2257 = vst [vmem:[%s227 + $0x758] sm:$0xff] %v1873
          %2258 = vst [vmem:[%s227 + $0x760] sm:$0xff] %v1874
          %2259 = vst [vmem:[%s227 + $0x768] sm:$0xff] %v1875
          %2260 = vst [vmem:[%s227 + $0x770] sm:$0xff] %v1876
          %2261 = vst [vmem:[%s227 + $0x778] sm:$0xff] %v1877
          %2262 = vst [vmem:[%s227 + $0x780] sm:$0xff] %v1878
          %2263 = vst [vmem:[%s227 + $0x788] sm:$0xff] %v1879
          %2264 = vst [vmem:[%s227 + $0x790] sm:$0xff] %v1880
          %2265 = vst [vmem:[%s227 + $0x798] sm:$0xff] %v1881
          %2266 = vst [vmem:[%s227 + $0x7a0] sm:$0xff] %v1882
          %2267 = vst [vmem:[%s227 + $0x7a8] sm:$0xff] %v1883
          %2268 = vst [vmem:[%s227 + $0x7b0] sm:$0xff] %v1884
          %2269 = vst [vmem:[%s227 + $0x7b8] sm:$0xff] %v1885
          %2270 = vst [vmem:[%s227 + $0x7c0] sm:$0xff] %v1886
          %2271 = vst [vmem:[%s227 + $0x7c8] sm:$0xff] %v1887
          %2272 = vst [vmem:[%s227 + $0x7d0] sm:$0xff] %v1888
          %2273 = vst [vmem:[%s227 + $0x7d8] sm:$0xff] %v1889
          %2274 = vst [vmem:[%s227 + $0x7e0] sm:$0xff] %v1890
          %2275 = vst [vmem:[%s227 + $0x7e8] sm:$0xff] %v1891
          %2276 = vst [vmem:[%s227 + $0x7f0] sm:$0xff] %v1892
          %2277 = vst [vmem:[%s227 + $0x7f8] sm:$0xff] %v1893
          %2278 = vst [vmem:[%s227 + $0x800] sm:$0xff] %v1894
          %2279 = vst [vmem:[%s227 + $0x808] sm:$0xff] %v1895
          %2280 = vst [vmem:[%s227 + $0x810] sm:$0xff] %v1896
          %2281 = vst [vmem:[%s227 + $0x818] sm:$0xff] %v1897
          %2282 = vst [vmem:[%s227 + $0x820] sm:$0xff] %v1898
          %2283 = vst [vmem:[%s227 + $0x828] sm:$0xff] %v1899
          %2284 = vst [vmem:[%s227 + $0x830] sm:$0xff] %v1900
          %2285 = vst [vmem:[%s227 + $0x838] sm:$0xff] %v1901
          %2286 = vst [vmem:[%s227 + $0x840] sm:$0xff] %v1902
          %2287 = vst [vmem:[%s227 + $0x848] sm:$0xff] %v1903
          %2288 = vst [vmem:[%s227 + $0x850] sm:$0xff] %v1904
          %2289 = vst [vmem:[%s227 + $0x858] sm:$0xff] %v1905
          %2290 = vst [vmem:[%s227 + $0x860] sm:$0xff] %v1906
          %2291 = vst [vmem:[%s227 + $0x868] sm:$0xff] %v1907
          %2292 = vst [vmem:[%s227 + $0x870] sm:$0xff] %v1908
          %2293 = vst [vmem:[%s227 + $0x878] sm:$0xff] %v1909
          %2294 = vst [vmem:[%s227 + $0x880] sm:$0xff] %v1910
          %2295 = vst [vmem:[%s227 + $0x888] sm:$0xff] %v1911
          %2296 = vst [vmem:[%s227 + $0x890] sm:$0xff] %v1912
          %2297 = vst [vmem:[%s227 + $0x898] sm:$0xff] %v1913
          %2298 = vst [vmem:[%s227 + $0x8a0] sm:$0xff] %v1914
          %2299 = vst [vmem:[%s227 + $0x8a8] sm:$0xff] %v1915
          %2300 = vst [vmem:[%s227 + $0x8b0] sm:$0xff] %v1916
          %2301 = vst [vmem:[%s227 + $0x8b8] sm:$0xff] %v1917
          %2302 = vst [vmem:[%s227 + $0x8c0] sm:$0xff] %v1918
          %2303 = vst [vmem:[%s227 + $0x8c8] sm:$0xff] %v1919
          %2304 = vst [vmem:[%s227 + $0x8d0] sm:$0xff] %v1920
          %2305 = vst [vmem:[%s227 + $0x8d8] sm:$0xff] %v1921
          %2306 = vst [vmem:[%s227 + $0x8e0] sm:$0xff] %v1922
          %2307 = vst [vmem:[%s227 + $0x8e8] sm:$0xff] %v1923
          %2308 = vst [vmem:[%s227 + $0x8f0] sm:$0xff] %v1924
          %2309 = vst [vmem:[%s227 + $0x8f8] sm:$0xff] %v1925
          %2310 = vst [vmem:[%s227 + $0x900] sm:$0xff] %v1926
          %2311 = vst [vmem:[%s227 + $0x908] sm:$0xff] %v1927
          %2312 = vst [vmem:[%s227 + $0x910] sm:$0xff] %v1928
          %2313 = vst [vmem:[%s227 + $0x918] sm:$0xff] %v1929
          %2314 = vst [vmem:[%s227 + $0x920] sm:$0xff] %v1930
          %2315 = vst [vmem:[%s227 + $0x928] sm:$0xff] %v1931
          %2316 = vst [vmem:[%s227 + $0x930] sm:$0xff] %v1932
          %2317 = vst [vmem:[%s227 + $0x938] sm:$0xff] %v1933
          %2318 = vst [vmem:[%s227 + $0x940] sm:$0xff] %v1934
          %2319 = vst [vmem:[%s227 + $0x948] sm:$0xff] %v1935
          %2320 = vst [vmem:[%s227 + $0x950] sm:$0xff] %v1936
          %2321 = vst [vmem:[%s227 + $0x958] sm:$0xff] %v1937
          %2322 = vst [vmem:[%s227 + $0x960] sm:$0xff] %v1938
          %2323 = vst [vmem:[%s227 + $0x968] sm:$0xff] %v1939
          %2324 = vst [vmem:[%s227 + $0x970] sm:$0xff] %v1940
          %2325 = vst [vmem:[%s227 + $0x978] sm:$0xff] %v1941
          %2326 = vst [vmem:[%s227 + $0x980] sm:$0xff] %v1942
          %2327 = vst [vmem:[%s227 + $0x988] sm:$0xff] %v1943
          %2328 = vst [vmem:[%s227 + $0x990] sm:$0xff] %v1944
          %2329 = vst [vmem:[%s227 + $0x998] sm:$0xff] %v1945
          %2330 = vst [vmem:[%s227 + $0x9a0] sm:$0xff] %v1946
          %2331 = vst [vmem:[%s227 + $0x9a8] sm:$0xff] %v1947
          %2332 = vst [vmem:[%s227 + $0x9b0] sm:$0xff] %v1948
          %2333 = vst [vmem:[%s227 + $0x9b8] sm:$0xff] %v1949
          %2334 = vst [vmem:[%s227 + $0x9c0] sm:$0xff] %v1950
          %2335 = vst [vmem:[%s227 + $0x9c8] sm:$0xff] %v1951
          %2336 = vst [vmem:[%s227 + $0x9d0] sm:$0xff] %v1952
          %2337 = vst [vmem:[%s227 + $0x9d8] sm:$0xff] %v1953
          %2338 = vst [vmem:[%s227 + $0x9e0] sm:$0xff] %v1954
          %2339 = vst [vmem:[%s227 + $0x9e8] sm:$0xff] %v1955
          %2340 = vst [vmem:[%s227 + $0x9f0] sm:$0xff] %v1956
          %2341 = vst [vmem:[%s227 + $0x9f8] sm:$0xff] %v1957
          %2342 = vst [vmem:[%s227 + $0xa00] sm:$0xff] %v1958
          %2343 = vst [vmem:[%s227 + $0xa08] sm:$0xff] %v1959
          %2344 = vst [vmem:[%s227 + $0xa10] sm:$0xff] %v1960
          %2345 = vst [vmem:[%s227 + $0xa18] sm:$0xff] %v1961
          %2346 = vst [vmem:[%s227 + $0xa20] sm:$0xff] %v1962
          %2347 = vst [vmem:[%s227 + $0xa28] sm:$0xff] %v1963
          %2348 = vst [vmem:[%s227 + $0xa30] sm:$0xff] %v1964
          %2349 = vst [vmem:[%s227 + $0xa38] sm:$0xff] %v1965
          %2350 = vst [vmem:[%s227 + $0xa40] sm:$0xff] %v1966
          %2351 = vst [vmem:[%s227 + $0xa48] sm:$0xff] %v1967
          %2352 = vst [vmem:[%s227 + $0xa50] sm:$0xff] %v1968
          %2353 = vst [vmem:[%s227 + $0xa58] sm:$0xff] %v1969
          %2354 = vst [vmem:[%s227 + $0xa60] sm:$0xff] %v1970
          %2355 = vst [vmem:[%s227 + $0xa68] sm:$0xff] %v1971
          %2356 = vst [vmem:[%s227 + $0xa70] sm:$0xff] %v1972
          %2357 = vst [vmem:[%s227 + $0xa78] sm:$0xff] %v1973
          %2358 = vst [vmem:[%s227 + $0xa80] sm:$0xff] %v1974
          %2359 = vst [vmem:[%s227 + $0xa88] sm:$0xff] %v1975
          %2360 = vst [vmem:[%s227 + $0xa90] sm:$0xff] %v1976
          %2361 = vst [vmem:[%s227 + $0xa98] sm:$0xff] %v1977
          %2362 = vst [vmem:[%s227 + $0xaa0] sm:$0xff] %v1978
          %2363 = vst [vmem:[%s227 + $0xaa8] sm:$0xff] %v1979
          %2364 = vst [vmem:[%s227 + $0xab0] sm:$0xff] %v1980
          %2365 = vst [vmem:[%s227 + $0xab8] sm:$0xff] %v1981
          %2366 = vst [vmem:[%s227 + $0xac0] sm:$0xff] %v1982
          %2367 = vst [vmem:[%s227 + $0xac8] sm:$0xff] %v1983
          %2368 = vst [vmem:[%s227 + $0xad0] sm:$0xff] %v1984
          %2369 = vst [vmem:[%s227 + $0xad8] sm:$0xff] %v1985
          %2370 = vst [vmem:[%s227 + $0xae0] sm:$0xff] %v1986
          %2371 = vst [vmem:[%s227 + $0xae8] sm:$0xff] %v1987
          %2372 = vst [vmem:[%s227 + $0xaf0] sm:$0xff] %v1988
          %2373 = vst [vmem:[%s227 + $0xaf8] sm:$0xff] %v1989
          %2374 = vst [vmem:[%s227 + $0xb00] sm:$0xff] %v1990
          %2375 = vst [vmem:[%s227 + $0xb08] sm:$0xff] %v1991
          %2376 = vst [vmem:[%s227 + $0xb10] sm:$0xff] %v1992
          %2377 = vst [vmem:[%s227 + $0xb18] sm:$0xff] %v1993
          %2378 = vst [vmem:[%s227 + $0xb20] sm:$0xff] %v1994
          %2379 = vst [vmem:[%s227 + $0xb28] sm:$0xff] %v1995
          %2380 = vst [vmem:[%s227 + $0xb30] sm:$0xff] %v1996
          %2381 = vst [vmem:[%s227 + $0xb38] sm:$0xff] %v1997
          %2382 = vst [vmem:[%s227 + $0xb40] sm:$0xff] %v1998
          %2383 = vst [vmem:[%s227 + $0xb48] sm:$0xff] %v1999
          %2384 = vst [vmem:[%s227 + $0xb50] sm:$0xff] %v2000
          %2385 = vst [vmem:[%s227 + $0xb58] sm:$0xff] %v2001
          %2386 = vst [vmem:[%s227 + $0xb60] sm:$0xff] %v2002
          %2387 = vst [vmem:[%s227 + $0xb68] sm:$0xff] %v2003
          %2388 = vst [vmem:[%s227 + $0xb70] sm:$0xff] %v2004
          %2389 = vst [vmem:[%s227 + $0xb78] sm:$0xff] %v2005
          %2390 = vst [vmem:[%s227 + $0xb80] sm:$0xff] %v2006
          %2391 = vst [vmem:[%s227 + $0xb88] sm:$0xff] %v2007
          %2392 = vst [vmem:[%s227 + $0xb90] sm:$0xff] %v2008
          %2393 = vst [vmem:[%s227 + $0xb98] sm:$0xff] %v2009
          %2394 = vst [vmem:[%s227 + $0xba0] sm:$0xff] %v2010
          %2395 = vst [vmem:[%s227 + $0xba8] sm:$0xff] %v2011
          %2396 = vst [vmem:[%s227 + $0xbb0] sm:$0xff] %v2012
          %2397 = vst [vmem:[%s227 + $0xbb8] sm:$0xff] %v2013
          %2398 = vst [vmem:[%s227 + $0xbc0] sm:$0xff] %v2014
          %2399 = vst [vmem:[%s227 + $0xbc8] sm:$0xff] %v2015
          %2400 = vst [vmem:[%s227 + $0xbd0] sm:$0xff] %v2016
          %2401 = vst [vmem:[%s227 + $0xbd8] sm:$0xff] %v2017
          %2402 = vst [vmem:[%s227 + $0xbe0] sm:$0xff] %v2018
          %2403 = vst [vmem:[%s227 + $0xbe8] sm:$0xff] %v2019
          %2404 = vst [vmem:[%s227 + $0xbf0] sm:$0xff] %v2020
          %2405 = vst [vmem:[%s227 + $0xbf8] sm:$0xff] %v2021
        $region32: #{_forward_arrays.3} parent=27 // pred_fallthru
          _
        // Predicated region
        $region33: #{_forward_arrays.3} parent=27 // pred_check
          %p2406 = pneg %p274
        $region34: #{_forward_arrays.3} parent=27 // pred_check_branch
          %2408 = sbr.rel (%p2406) target = $region36
        $region35: #{_forward_arrays.3} parent=27 // pred_region
          %2409 = vst [vmem:[%s220] sm:$0xff] 0.0
          %2410 = vst [vmem:[%s220 + $0x8] sm:$0xff] 0.0
          %2411 = vst [vmem:[%s220 + $0x10] sm:$0xff] 0.0
          %2412 = vst [vmem:[%s220 + $0x18] sm:$0xff] 0.0
          %2413 = vst [vmem:[%s220 + $0x20] sm:$0xff] 0.0
          %2414 = vst [vmem:[%s220 + $0x28] sm:$0xff] 0.0
          %2415 = vst [vmem:[%s220 + $0x30] sm:$0xff] 0.0
          %2416 = vst [vmem:[%s220 + $0x38] sm:$0xff] 0.0
          %2417 = vst [vmem:[%s220 + $0x40] sm:$0xff] 0.0
          %2418 = vst [vmem:[%s220 + $0x48] sm:$0xff] 0.0
          %2419 = vst [vmem:[%s220 + $0x50] sm:$0xff] 0.0
          %2420 = vst [vmem:[%s220 + $0x58] sm:$0xff] 0.0
          %2421 = vst [vmem:[%s220 + $0x60] sm:$0xff] 0.0
          %2422 = vst [vmem:[%s220 + $0x68] sm:$0xff] 0.0
          %2423 = vst [vmem:[%s220 + $0x70] sm:$0xff] 0.0
          %2424 = vst [vmem:[%s220 + $0x78] sm:$0xff] 0.0
          %2425 = vst [vmem:[%s220 + $0x80] sm:$0xff] 0.0
          %2426 = vst [vmem:[%s220 + $0x88] sm:$0xff] 0.0
          %2427 = vst [vmem:[%s220 + $0x90] sm:$0xff] 0.0
          %2428 = vst [vmem:[%s220 + $0x98] sm:$0xff] 0.0
          %2429 = vst [vmem:[%s220 + $0xa0] sm:$0xff] 0.0
          %2430 = vst [vmem:[%s220 + $0xa8] sm:$0xff] 0.0
          %2431 = vst [vmem:[%s220 + $0xb0] sm:$0xff] 0.0
          %2432 = vst [vmem:[%s220 + $0xb8] sm:$0xff] 0.0
          %2433 = vst [vmem:[%s220 + $0xc0] sm:$0xff] 0.0
          %2434 = vst [vmem:[%s220 + $0xc8] sm:$0xff] 0.0
          %2435 = vst [vmem:[%s220 + $0xd0] sm:$0xff] 0.0
          %2436 = vst [vmem:[%s220 + $0xd8] sm:$0xff] 0.0
          %2437 = vst [vmem:[%s220 + $0xe0] sm:$0xff] 0.0
          %2438 = vst [vmem:[%s220 + $0xe8] sm:$0xff] 0.0
          %2439 = vst [vmem:[%s220 + $0xf0] sm:$0xff] 0.0
          %2440 = vst [vmem:[%s220 + $0xf8] sm:$0xff] 0.0
          %2441 = vst [vmem:[%s220 + $0x100] sm:$0xff] 0.0
          %2442 = vst [vmem:[%s220 + $0x108] sm:$0xff] 0.0
          %2443 = vst [vmem:[%s220 + $0x110] sm:$0xff] 0.0
          %2444 = vst [vmem:[%s220 + $0x118] sm:$0xff] 0.0
          %2445 = vst [vmem:[%s220 + $0x120] sm:$0xff] 0.0
          %2446 = vst [vmem:[%s220 + $0x128] sm:$0xff] 0.0
          %2447 = vst [vmem:[%s220 + $0x130] sm:$0xff] 0.0
          %2448 = vst [vmem:[%s220 + $0x138] sm:$0xff] 0.0
          %2449 = vst [vmem:[%s220 + $0x140] sm:$0xff] 0.0
          %2450 = vst [vmem:[%s220 + $0x148] sm:$0xff] 0.0
          %2451 = vst [vmem:[%s220 + $0x150] sm:$0xff] 0.0
          %2452 = vst [vmem:[%s220 + $0x158] sm:$0xff] 0.0
          %2453 = vst [vmem:[%s220 + $0x160] sm:$0xff] 0.0
          %2454 = vst [vmem:[%s220 + $0x168] sm:$0xff] 0.0
          %2455 = vst [vmem:[%s220 + $0x170] sm:$0xff] 0.0
          %2456 = vst [vmem:[%s220 + $0x178] sm:$0xff] 0.0
          %2457 = vst [vmem:[%s220 + $0x180] sm:$0xff] 0.0
          %2458 = vst [vmem:[%s220 + $0x188] sm:$0xff] 0.0
          %2459 = vst [vmem:[%s220 + $0x190] sm:$0xff] 0.0
          %2460 = vst [vmem:[%s220 + $0x198] sm:$0xff] 0.0
          %2461 = vst [vmem:[%s220 + $0x1a0] sm:$0xff] 0.0
          %2462 = vst [vmem:[%s220 + $0x1a8] sm:$0xff] 0.0
          %2463 = vst [vmem:[%s220 + $0x1b0] sm:$0xff] 0.0
          %2464 = vst [vmem:[%s220 + $0x1b8] sm:$0xff] 0.0
          %2465 = vst [vmem:[%s220 + $0x1c0] sm:$0xff] 0.0
          %2466 = vst [vmem:[%s220 + $0x1c8] sm:$0xff] 0.0
          %2467 = vst [vmem:[%s220 + $0x1d0] sm:$0xff] 0.0
          %2468 = vst [vmem:[%s220 + $0x1d8] sm:$0xff] 0.0
          %2469 = vst [vmem:[%s220 + $0x1e0] sm:$0xff] 0.0
          %2470 = vst [vmem:[%s220 + $0x1e8] sm:$0xff] 0.0
          %2471 = vst [vmem:[%s220 + $0x1f0] sm:$0xff] 0.0
          %2472 = vst [vmem:[%s220 + $0x1f8] sm:$0xff] 0.0
          %2473 = vst [vmem:[%s220 + $0x200] sm:$0xff] 0.0
          %2474 = vst [vmem:[%s220 + $0x208] sm:$0xff] 0.0
          %2475 = vst [vmem:[%s220 + $0x210] sm:$0xff] 0.0
          %2476 = vst [vmem:[%s220 + $0x218] sm:$0xff] 0.0
          %2477 = vst [vmem:[%s220 + $0x220] sm:$0xff] 0.0
          %2478 = vst [vmem:[%s220 + $0x228] sm:$0xff] 0.0
          %2479 = vst [vmem:[%s220 + $0x230] sm:$0xff] 0.0
          %2480 = vst [vmem:[%s220 + $0x238] sm:$0xff] 0.0
          %2481 = vst [vmem:[%s220 + $0x240] sm:$0xff] 0.0
          %2482 = vst [vmem:[%s220 + $0x248] sm:$0xff] 0.0
          %2483 = vst [vmem:[%s220 + $0x250] sm:$0xff] 0.0
          %2484 = vst [vmem:[%s220 + $0x258] sm:$0xff] 0.0
          %2485 = vst [vmem:[%s220 + $0x260] sm:$0xff] 0.0
          %2486 = vst [vmem:[%s220 + $0x268] sm:$0xff] 0.0
          %2487 = vst [vmem:[%s220 + $0x270] sm:$0xff] 0.0
          %2488 = vst [vmem:[%s220 + $0x278] sm:$0xff] 0.0
          %2489 = vst [vmem:[%s220 + $0x280] sm:$0xff] 0.0
          %2490 = vst [vmem:[%s220 + $0x288] sm:$0xff] 0.0
          %2491 = vst [vmem:[%s220 + $0x290] sm:$0xff] 0.0
          %2492 = vst [vmem:[%s220 + $0x298] sm:$0xff] 0.0
          %2493 = vst [vmem:[%s220 + $0x2a0] sm:$0xff] 0.0
          %2494 = vst [vmem:[%s220 + $0x2a8] sm:$0xff] 0.0
          %2495 = vst [vmem:[%s220 + $0x2b0] sm:$0xff] 0.0
          %2496 = vst [vmem:[%s220 + $0x2b8] sm:$0xff] 0.0
          %2497 = vst [vmem:[%s220 + $0x2c0] sm:$0xff] 0.0
          %2498 = vst [vmem:[%s220 + $0x2c8] sm:$0xff] 0.0
          %2499 = vst [vmem:[%s220 + $0x2d0] sm:$0xff] 0.0
          %2500 = vst [vmem:[%s220 + $0x2d8] sm:$0xff] 0.0
          %2501 = vst [vmem:[%s220 + $0x2e0] sm:$0xff] 0.0
          %2502 = vst [vmem:[%s220 + $0x2e8] sm:$0xff] 0.0
          %2503 = vst [vmem:[%s220 + $0x2f0] sm:$0xff] 0.0
          %2504 = vst [vmem:[%s220 + $0x2f8] sm:$0xff] 0.0
          %2505 = vst [vmem:[%s220 + $0x300] sm:$0xff] 0.0
          %2506 = vst [vmem:[%s220 + $0x308] sm:$0xff] 0.0
          %2507 = vst [vmem:[%s220 + $0x310] sm:$0xff] 0.0
          %2508 = vst [vmem:[%s220 + $0x318] sm:$0xff] 0.0
          %2509 = vst [vmem:[%s220 + $0x320] sm:$0xff] 0.0
          %2510 = vst [vmem:[%s220 + $0x328] sm:$0xff] 0.0
          %2511 = vst [vmem:[%s220 + $0x330] sm:$0xff] 0.0
          %2512 = vst [vmem:[%s220 + $0x338] sm:$0xff] 0.0
          %2513 = vst [vmem:[%s220 + $0x340] sm:$0xff] 0.0
          %2514 = vst [vmem:[%s220 + $0x348] sm:$0xff] 0.0
          %2515 = vst [vmem:[%s220 + $0x350] sm:$0xff] 0.0
          %2516 = vst [vmem:[%s220 + $0x358] sm:$0xff] 0.0
          %2517 = vst [vmem:[%s220 + $0x360] sm:$0xff] 0.0
          %2518 = vst [vmem:[%s220 + $0x368] sm:$0xff] 0.0
          %2519 = vst [vmem:[%s220 + $0x370] sm:$0xff] 0.0
          %2520 = vst [vmem:[%s220 + $0x378] sm:$0xff] 0.0
          %2521 = vst [vmem:[%s220 + $0x380] sm:$0xff] 0.0
          %2522 = vst [vmem:[%s220 + $0x388] sm:$0xff] 0.0
          %2523 = vst [vmem:[%s220 + $0x390] sm:$0xff] 0.0
          %2524 = vst [vmem:[%s220 + $0x398] sm:$0xff] 0.0
          %2525 = vst [vmem:[%s220 + $0x3a0] sm:$0xff] 0.0
          %2526 = vst [vmem:[%s220 + $0x3a8] sm:$0xff] 0.0
          %2527 = vst [vmem:[%s220 + $0x3b0] sm:$0xff] 0.0
          %2528 = vst [vmem:[%s220 + $0x3b8] sm:$0xff] 0.0
          %2529 = vst [vmem:[%s220 + $0x3c0] sm:$0xff] 0.0
          %2530 = vst [vmem:[%s220 + $0x3c8] sm:$0xff] 0.0
          %2531 = vst [vmem:[%s220 + $0x3d0] sm:$0xff] 0.0
          %2532 = vst [vmem:[%s220 + $0x3d8] sm:$0xff] 0.0
          %2533 = vst [vmem:[%s220 + $0x3e0] sm:$0xff] 0.0
          %2534 = vst [vmem:[%s220 + $0x3e8] sm:$0xff] 0.0
          %2535 = vst [vmem:[%s220 + $0x3f0] sm:$0xff] 0.0
          %2536 = vst [vmem:[%s220 + $0x3f8] sm:$0xff] 0.0
          %2537 = vst [vmem:[%s220 + $0x400] sm:$0xff] 0.0
          %2538 = vst [vmem:[%s220 + $0x408] sm:$0xff] 0.0
          %2539 = vst [vmem:[%s220 + $0x410] sm:$0xff] 0.0
          %2540 = vst [vmem:[%s220 + $0x418] sm:$0xff] 0.0
          %2541 = vst [vmem:[%s220 + $0x420] sm:$0xff] 0.0
          %2542 = vst [vmem:[%s220 + $0x428] sm:$0xff] 0.0
          %2543 = vst [vmem:[%s220 + $0x430] sm:$0xff] 0.0
          %2544 = vst [vmem:[%s220 + $0x438] sm:$0xff] 0.0
          %2545 = vst [vmem:[%s220 + $0x440] sm:$0xff] 0.0
          %2546 = vst [vmem:[%s220 + $0x448] sm:$0xff] 0.0
          %2547 = vst [vmem:[%s220 + $0x450] sm:$0xff] 0.0
          %2548 = vst [vmem:[%s220 + $0x458] sm:$0xff] 0.0
          %2549 = vst [vmem:[%s220 + $0x460] sm:$0xff] 0.0
          %2550 = vst [vmem:[%s220 + $0x468] sm:$0xff] 0.0
          %2551 = vst [vmem:[%s220 + $0x470] sm:$0xff] 0.0
          %2552 = vst [vmem:[%s220 + $0x478] sm:$0xff] 0.0
          %2553 = vst [vmem:[%s220 + $0x480] sm:$0xff] 0.0
          %2554 = vst [vmem:[%s220 + $0x488] sm:$0xff] 0.0
          %2555 = vst [vmem:[%s220 + $0x490] sm:$0xff] 0.0
          %2556 = vst [vmem:[%s220 + $0x498] sm:$0xff] 0.0
          %2557 = vst [vmem:[%s220 + $0x4a0] sm:$0xff] 0.0
          %2558 = vst [vmem:[%s220 + $0x4a8] sm:$0xff] 0.0
          %2559 = vst [vmem:[%s220 + $0x4b0] sm:$0xff] 0.0
          %2560 = vst [vmem:[%s220 + $0x4b8] sm:$0xff] 0.0
          %2561 = vst [vmem:[%s220 + $0x4c0] sm:$0xff] 0.0
          %2562 = vst [vmem:[%s220 + $0x4c8] sm:$0xff] 0.0
          %2563 = vst [vmem:[%s220 + $0x4d0] sm:$0xff] 0.0
          %2564 = vst [vmem:[%s220 + $0x4d8] sm:$0xff] 0.0
          %2565 = vst [vmem:[%s220 + $0x4e0] sm:$0xff] 0.0
          %2566 = vst [vmem:[%s220 + $0x4e8] sm:$0xff] 0.0
          %2567 = vst [vmem:[%s220 + $0x4f0] sm:$0xff] 0.0
          %2568 = vst [vmem:[%s220 + $0x4f8] sm:$0xff] 0.0
          %2569 = vst [vmem:[%s220 + $0x500] sm:$0xff] 0.0
          %2570 = vst [vmem:[%s220 + $0x508] sm:$0xff] 0.0
          %2571 = vst [vmem:[%s220 + $0x510] sm:$0xff] 0.0
          %2572 = vst [vmem:[%s220 + $0x518] sm:$0xff] 0.0
          %2573 = vst [vmem:[%s220 + $0x520] sm:$0xff] 0.0
          %2574 = vst [vmem:[%s220 + $0x528] sm:$0xff] 0.0
          %2575 = vst [vmem:[%s220 + $0x530] sm:$0xff] 0.0
          %2576 = vst [vmem:[%s220 + $0x538] sm:$0xff] 0.0
          %2577 = vst [vmem:[%s220 + $0x540] sm:$0xff] 0.0
          %2578 = vst [vmem:[%s220 + $0x548] sm:$0xff] 0.0
          %2579 = vst [vmem:[%s220 + $0x550] sm:$0xff] 0.0
          %2580 = vst [vmem:[%s220 + $0x558] sm:$0xff] 0.0
          %2581 = vst [vmem:[%s220 + $0x560] sm:$0xff] 0.0
          %2582 = vst [vmem:[%s220 + $0x568] sm:$0xff] 0.0
          %2583 = vst [vmem:[%s220 + $0x570] sm:$0xff] 0.0
          %2584 = vst [vmem:[%s220 + $0x578] sm:$0xff] 0.0
          %2585 = vst [vmem:[%s220 + $0x580] sm:$0xff] 0.0
          %2586 = vst [vmem:[%s220 + $0x588] sm:$0xff] 0.0
          %2587 = vst [vmem:[%s220 + $0x590] sm:$0xff] 0.0
          %2588 = vst [vmem:[%s220 + $0x598] sm:$0xff] 0.0
          %2589 = vst [vmem:[%s220 + $0x5a0] sm:$0xff] 0.0
          %2590 = vst [vmem:[%s220 + $0x5a8] sm:$0xff] 0.0
          %2591 = vst [vmem:[%s220 + $0x5b0] sm:$0xff] 0.0
          %2592 = vst [vmem:[%s220 + $0x5b8] sm:$0xff] 0.0
          %2593 = vst [vmem:[%s220 + $0x5c0] sm:$0xff] 0.0
          %2594 = vst [vmem:[%s220 + $0x5c8] sm:$0xff] 0.0
          %2595 = vst [vmem:[%s220 + $0x5d0] sm:$0xff] 0.0
          %2596 = vst [vmem:[%s220 + $0x5d8] sm:$0xff] 0.0
          %2597 = vst [vmem:[%s220 + $0x5e0] sm:$0xff] 0.0
          %2598 = vst [vmem:[%s220 + $0x5e8] sm:$0xff] 0.0
          %2599 = vst [vmem:[%s220 + $0x5f0] sm:$0xff] 0.0
          %2600 = vst [vmem:[%s220 + $0x5f8] sm:$0xff] 0.0
          %2601 = vst [vmem:[%s220 + $0x600] sm:$0xff] 0.0
          %2602 = vst [vmem:[%s220 + $0x608] sm:$0xff] 0.0
          %2603 = vst [vmem:[%s220 + $0x610] sm:$0xff] 0.0
          %2604 = vst [vmem:[%s220 + $0x618] sm:$0xff] 0.0
          %2605 = vst [vmem:[%s220 + $0x620] sm:$0xff] 0.0
          %2606 = vst [vmem:[%s220 + $0x628] sm:$0xff] 0.0
          %2607 = vst [vmem:[%s220 + $0x630] sm:$0xff] 0.0
          %2608 = vst [vmem:[%s220 + $0x638] sm:$0xff] 0.0
          %2609 = vst [vmem:[%s220 + $0x640] sm:$0xff] 0.0
          %2610 = vst [vmem:[%s220 + $0x648] sm:$0xff] 0.0
          %2611 = vst [vmem:[%s220 + $0x650] sm:$0xff] 0.0
          %2612 = vst [vmem:[%s220 + $0x658] sm:$0xff] 0.0
          %2613 = vst [vmem:[%s220 + $0x660] sm:$0xff] 0.0
          %2614 = vst [vmem:[%s220 + $0x668] sm:$0xff] 0.0
          %2615 = vst [vmem:[%s220 + $0x670] sm:$0xff] 0.0
          %2616 = vst [vmem:[%s220 + $0x678] sm:$0xff] 0.0
          %2617 = vst [vmem:[%s220 + $0x680] sm:$0xff] 0.0
          %2618 = vst [vmem:[%s220 + $0x688] sm:$0xff] 0.0
          %2619 = vst [vmem:[%s220 + $0x690] sm:$0xff] 0.0
          %2620 = vst [vmem:[%s220 + $0x698] sm:$0xff] 0.0
          %2621 = vst [vmem:[%s220 + $0x6a0] sm:$0xff] 0.0
          %2622 = vst [vmem:[%s220 + $0x6a8] sm:$0xff] 0.0
          %2623 = vst [vmem:[%s220 + $0x6b0] sm:$0xff] 0.0
          %2624 = vst [vmem:[%s220 + $0x6b8] sm:$0xff] 0.0
          %2625 = vst [vmem:[%s220 + $0x6c0] sm:$0xff] 0.0
          %2626 = vst [vmem:[%s220 + $0x6c8] sm:$0xff] 0.0
          %2627 = vst [vmem:[%s220 + $0x6d0] sm:$0xff] 0.0
          %2628 = vst [vmem:[%s220 + $0x6d8] sm:$0xff] 0.0
          %2629 = vst [vmem:[%s220 + $0x6e0] sm:$0xff] 0.0
          %2630 = vst [vmem:[%s220 + $0x6e8] sm:$0xff] 0.0
          %2631 = vst [vmem:[%s220 + $0x6f0] sm:$0xff] 0.0
          %2632 = vst [vmem:[%s220 + $0x6f8] sm:$0xff] 0.0
          %2633 = vst [vmem:[%s220 + $0x700] sm:$0xff] 0.0
          %2634 = vst [vmem:[%s220 + $0x708] sm:$0xff] 0.0
          %2635 = vst [vmem:[%s220 + $0x710] sm:$0xff] 0.0
          %2636 = vst [vmem:[%s220 + $0x718] sm:$0xff] 0.0
          %2637 = vst [vmem:[%s220 + $0x720] sm:$0xff] 0.0
          %2638 = vst [vmem:[%s220 + $0x728] sm:$0xff] 0.0
          %2639 = vst [vmem:[%s220 + $0x730] sm:$0xff] 0.0
          %2640 = vst [vmem:[%s220 + $0x738] sm:$0xff] 0.0
          %2641 = vst [vmem:[%s220 + $0x740] sm:$0xff] 0.0
          %2642 = vst [vmem:[%s220 + $0x748] sm:$0xff] 0.0
          %2643 = vst [vmem:[%s220 + $0x750] sm:$0xff] 0.0
          %2644 = vst [vmem:[%s220 + $0x758] sm:$0xff] 0.0
          %2645 = vst [vmem:[%s220 + $0x760] sm:$0xff] 0.0
          %2646 = vst [vmem:[%s220 + $0x768] sm:$0xff] 0.0
          %2647 = vst [vmem:[%s220 + $0x770] sm:$0xff] 0.0
          %2648 = vst [vmem:[%s220 + $0x778] sm:$0xff] 0.0
          %2649 = vst [vmem:[%s220 + $0x780] sm:$0xff] 0.0
          %2650 = vst [vmem:[%s220 + $0x788] sm:$0xff] 0.0
          %2651 = vst [vmem:[%s220 + $0x790] sm:$0xff] 0.0
          %2652 = vst [vmem:[%s220 + $0x798] sm:$0xff] 0.0
          %2653 = vst [vmem:[%s220 + $0x7a0] sm:$0xff] 0.0
          %2654 = vst [vmem:[%s220 + $0x7a8] sm:$0xff] 0.0
          %2655 = vst [vmem:[%s220 + $0x7b0] sm:$0xff] 0.0
          %2656 = vst [vmem:[%s220 + $0x7b8] sm:$0xff] 0.0
          %2657 = vst [vmem:[%s220 + $0x7c0] sm:$0xff] 0.0
          %2658 = vst [vmem:[%s220 + $0x7c8] sm:$0xff] 0.0
          %2659 = vst [vmem:[%s220 + $0x7d0] sm:$0xff] 0.0
          %2660 = vst [vmem:[%s220 + $0x7d8] sm:$0xff] 0.0
          %2661 = vst [vmem:[%s220 + $0x7e0] sm:$0xff] 0.0
          %2662 = vst [vmem:[%s220 + $0x7e8] sm:$0xff] 0.0
          %2663 = vst [vmem:[%s220 + $0x7f0] sm:$0xff] 0.0
          %2664 = vst [vmem:[%s220 + $0x7f8] sm:$0xff] 0.0
          %2665 = vst [vmem:[%s220 + $0x800] sm:$0xff] 0.0
          %2666 = vst [vmem:[%s220 + $0x808] sm:$0xff] 0.0
          %2667 = vst [vmem:[%s220 + $0x810] sm:$0xff] 0.0
          %2668 = vst [vmem:[%s220 + $0x818] sm:$0xff] 0.0
          %2669 = vst [vmem:[%s220 + $0x820] sm:$0xff] 0.0
          %2670 = vst [vmem:[%s220 + $0x828] sm:$0xff] 0.0
          %2671 = vst [vmem:[%s220 + $0x830] sm:$0xff] 0.0
          %2672 = vst [vmem:[%s220 + $0x838] sm:$0xff] 0.0
          %2673 = vst [vmem:[%s220 + $0x840] sm:$0xff] 0.0
          %2674 = vst [vmem:[%s220 + $0x848] sm:$0xff] 0.0
          %2675 = vst [vmem:[%s220 + $0x850] sm:$0xff] 0.0
          %2676 = vst [vmem:[%s220 + $0x858] sm:$0xff] 0.0
          %2677 = vst [vmem:[%s220 + $0x860] sm:$0xff] 0.0
          %2678 = vst [vmem:[%s220 + $0x868] sm:$0xff] 0.0
          %2679 = vst [vmem:[%s220 + $0x870] sm:$0xff] 0.0
          %2680 = vst [vmem:[%s220 + $0x878] sm:$0xff] 0.0
          %2681 = vst [vmem:[%s220 + $0x880] sm:$0xff] 0.0
          %2682 = vst [vmem:[%s220 + $0x888] sm:$0xff] 0.0
          %2683 = vst [vmem:[%s220 + $0x890] sm:$0xff] 0.0
          %2684 = vst [vmem:[%s220 + $0x898] sm:$0xff] 0.0
          %2685 = vst [vmem:[%s220 + $0x8a0] sm:$0xff] 0.0
          %2686 = vst [vmem:[%s220 + $0x8a8] sm:$0xff] 0.0
          %2687 = vst [vmem:[%s220 + $0x8b0] sm:$0xff] 0.0
          %2688 = vst [vmem:[%s220 + $0x8b8] sm:$0xff] 0.0
          %2689 = vst [vmem:[%s220 + $0x8c0] sm:$0xff] 0.0
          %2690 = vst [vmem:[%s220 + $0x8c8] sm:$0xff] 0.0
          %2691 = vst [vmem:[%s220 + $0x8d0] sm:$0xff] 0.0
          %2692 = vst [vmem:[%s220 + $0x8d8] sm:$0xff] 0.0
          %2693 = vst [vmem:[%s220 + $0x8e0] sm:$0xff] 0.0
          %2694 = vst [vmem:[%s220 + $0x8e8] sm:$0xff] 0.0
          %2695 = vst [vmem:[%s220 + $0x8f0] sm:$0xff] 0.0
          %2696 = vst [vmem:[%s220 + $0x8f8] sm:$0xff] 0.0
          %2697 = vst [vmem:[%s220 + $0x900] sm:$0xff] 0.0
          %2698 = vst [vmem:[%s220 + $0x908] sm:$0xff] 0.0
          %2699 = vst [vmem:[%s220 + $0x910] sm:$0xff] 0.0
          %2700 = vst [vmem:[%s220 + $0x918] sm:$0xff] 0.0
          %2701 = vst [vmem:[%s220 + $0x920] sm:$0xff] 0.0
          %2702 = vst [vmem:[%s220 + $0x928] sm:$0xff] 0.0
          %2703 = vst [vmem:[%s220 + $0x930] sm:$0xff] 0.0
          %2704 = vst [vmem:[%s220 + $0x938] sm:$0xff] 0.0
          %2705 = vst [vmem:[%s220 + $0x940] sm:$0xff] 0.0
          %2706 = vst [vmem:[%s220 + $0x948] sm:$0xff] 0.0
          %2707 = vst [vmem:[%s220 + $0x950] sm:$0xff] 0.0
          %2708 = vst [vmem:[%s220 + $0x958] sm:$0xff] 0.0
          %2709 = vst [vmem:[%s220 + $0x960] sm:$0xff] 0.0
          %2710 = vst [vmem:[%s220 + $0x968] sm:$0xff] 0.0
          %2711 = vst [vmem:[%s220 + $0x970] sm:$0xff] 0.0
          %2712 = vst [vmem:[%s220 + $0x978] sm:$0xff] 0.0
          %2713 = vst [vmem:[%s220 + $0x980] sm:$0xff] 0.0
          %2714 = vst [vmem:[%s220 + $0x988] sm:$0xff] 0.0
          %2715 = vst [vmem:[%s220 + $0x990] sm:$0xff] 0.0
          %2716 = vst [vmem:[%s220 + $0x998] sm:$0xff] 0.0
          %2717 = vst [vmem:[%s220 + $0x9a0] sm:$0xff] 0.0
          %2718 = vst [vmem:[%s220 + $0x9a8] sm:$0xff] 0.0
          %2719 = vst [vmem:[%s220 + $0x9b0] sm:$0xff] 0.0
          %2720 = vst [vmem:[%s220 + $0x9b8] sm:$0xff] 0.0
          %2721 = vst [vmem:[%s220 + $0x9c0] sm:$0xff] 0.0
          %2722 = vst [vmem:[%s220 + $0x9c8] sm:$0xff] 0.0
          %2723 = vst [vmem:[%s220 + $0x9d0] sm:$0xff] 0.0
          %2724 = vst [vmem:[%s220 + $0x9d8] sm:$0xff] 0.0
          %2725 = vst [vmem:[%s220 + $0x9e0] sm:$0xff] 0.0
          %2726 = vst [vmem:[%s220 + $0x9e8] sm:$0xff] 0.0
          %2727 = vst [vmem:[%s220 + $0x9f0] sm:$0xff] 0.0
          %2728 = vst [vmem:[%s220 + $0x9f8] sm:$0xff] 0.0
          %2729 = vst [vmem:[%s220 + $0xa00] sm:$0xff] 0.0
          %2730 = vst [vmem:[%s220 + $0xa08] sm:$0xff] 0.0
          %2731 = vst [vmem:[%s220 + $0xa10] sm:$0xff] 0.0
          %2732 = vst [vmem:[%s220 + $0xa18] sm:$0xff] 0.0
          %2733 = vst [vmem:[%s220 + $0xa20] sm:$0xff] 0.0
          %2734 = vst [vmem:[%s220 + $0xa28] sm:$0xff] 0.0
          %2735 = vst [vmem:[%s220 + $0xa30] sm:$0xff] 0.0
          %2736 = vst [vmem:[%s220 + $0xa38] sm:$0xff] 0.0
          %2737 = vst [vmem:[%s220 + $0xa40] sm:$0xff] 0.0
          %2738 = vst [vmem:[%s220 + $0xa48] sm:$0xff] 0.0
          %2739 = vst [vmem:[%s220 + $0xa50] sm:$0xff] 0.0
          %2740 = vst [vmem:[%s220 + $0xa58] sm:$0xff] 0.0
          %2741 = vst [vmem:[%s220 + $0xa60] sm:$0xff] 0.0
          %2742 = vst [vmem:[%s220 + $0xa68] sm:$0xff] 0.0
          %2743 = vst [vmem:[%s220 + $0xa70] sm:$0xff] 0.0
          %2744 = vst [vmem:[%s220 + $0xa78] sm:$0xff] 0.0
          %2745 = vst [vmem:[%s220 + $0xa80] sm:$0xff] 0.0
          %2746 = vst [vmem:[%s220 + $0xa88] sm:$0xff] 0.0
          %2747 = vst [vmem:[%s220 + $0xa90] sm:$0xff] 0.0
          %2748 = vst [vmem:[%s220 + $0xa98] sm:$0xff] 0.0
          %2749 = vst [vmem:[%s220 + $0xaa0] sm:$0xff] 0.0
          %2750 = vst [vmem:[%s220 + $0xaa8] sm:$0xff] 0.0
          %2751 = vst [vmem:[%s220 + $0xab0] sm:$0xff] 0.0
          %2752 = vst [vmem:[%s220 + $0xab8] sm:$0xff] 0.0
          %2753 = vst [vmem:[%s220 + $0xac0] sm:$0xff] 0.0
          %2754 = vst [vmem:[%s220 + $0xac8] sm:$0xff] 0.0
          %2755 = vst [vmem:[%s220 + $0xad0] sm:$0xff] 0.0
          %2756 = vst [vmem:[%s220 + $0xad8] sm:$0xff] 0.0
          %2757 = vst [vmem:[%s220 + $0xae0] sm:$0xff] 0.0
          %2758 = vst [vmem:[%s220 + $0xae8] sm:$0xff] 0.0
          %2759 = vst [vmem:[%s220 + $0xaf0] sm:$0xff] 0.0
          %2760 = vst [vmem:[%s220 + $0xaf8] sm:$0xff] 0.0
          %2761 = vst [vmem:[%s220 + $0xb00] sm:$0xff] 0.0
          %2762 = vst [vmem:[%s220 + $0xb08] sm:$0xff] 0.0
          %2763 = vst [vmem:[%s220 + $0xb10] sm:$0xff] 0.0
          %2764 = vst [vmem:[%s220 + $0xb18] sm:$0xff] 0.0
          %2765 = vst [vmem:[%s220 + $0xb20] sm:$0xff] 0.0
          %2766 = vst [vmem:[%s220 + $0xb28] sm:$0xff] 0.0
          %2767 = vst [vmem:[%s220 + $0xb30] sm:$0xff] 0.0
          %2768 = vst [vmem:[%s220 + $0xb38] sm:$0xff] 0.0
          %2769 = vst [vmem:[%s220 + $0xb40] sm:$0xff] 0.0
          %2770 = vst [vmem:[%s220 + $0xb48] sm:$0xff] 0.0
          %2771 = vst [vmem:[%s220 + $0xb50] sm:$0xff] 0.0
          %2772 = vst [vmem:[%s220 + $0xb58] sm:$0xff] 0.0
          %2773 = vst [vmem:[%s220 + $0xb60] sm:$0xff] 0.0
          %2774 = vst [vmem:[%s220 + $0xb68] sm:$0xff] 0.0
          %2775 = vst [vmem:[%s220 + $0xb70] sm:$0xff] 0.0
          %2776 = vst [vmem:[%s220 + $0xb78] sm:$0xff] 0.0
          %2777 = vst [vmem:[%s220 + $0xb80] sm:$0xff] 0.0
          %2778 = vst [vmem:[%s220 + $0xb88] sm:$0xff] 0.0
          %2779 = vst [vmem:[%s220 + $0xb90] sm:$0xff] 0.0
          %2780 = vst [vmem:[%s220 + $0xb98] sm:$0xff] 0.0
          %2781 = vst [vmem:[%s220 + $0xba0] sm:$0xff] 0.0
          %2782 = vst [vmem:[%s220 + $0xba8] sm:$0xff] 0.0
          %2783 = vst [vmem:[%s220 + $0xbb0] sm:$0xff] 0.0
          %2784 = vst [vmem:[%s220 + $0xbb8] sm:$0xff] 0.0
          %2785 = vst [vmem:[%s220 + $0xbc0] sm:$0xff] 0.0
          %2786 = vst [vmem:[%s220 + $0xbc8] sm:$0xff] 0.0
          %2787 = vst [vmem:[%s220 + $0xbd0] sm:$0xff] 0.0
          %2788 = vst [vmem:[%s220 + $0xbd8] sm:$0xff] 0.0
          %2789 = vst [vmem:[%s220 + $0xbe0] sm:$0xff] 0.0
          %2790 = vst [vmem:[%s220 + $0xbe8] sm:$0xff] 0.0
          %2791 = vst [vmem:[%s220 + $0xbf0] sm:$0xff] 0.0
          %2792 = vst [vmem:[%s220 + $0xbf8] sm:$0xff] 0.0
          %2793 = vst [vmem:[%s227] sm:$0xff] 0.0
          %2794 = vst [vmem:[%s227 + $0x8] sm:$0xff] 0.0
          %2795 = vst [vmem:[%s227 + $0x10] sm:$0xff] 0.0
          %2796 = vst [vmem:[%s227 + $0x18] sm:$0xff] 0.0
          %2797 = vst [vmem:[%s227 + $0x20] sm:$0xff] 0.0
          %2798 = vst [vmem:[%s227 + $0x28] sm:$0xff] 0.0
          %2799 = vst [vmem:[%s227 + $0x30] sm:$0xff] 0.0
          %2800 = vst [vmem:[%s227 + $0x38] sm:$0xff] 0.0
          %2801 = vst [vmem:[%s227 + $0x40] sm:$0xff] 0.0
          %2802 = vst [vmem:[%s227 + $0x48] sm:$0xff] 0.0
          %2803 = vst [vmem:[%s227 + $0x50] sm:$0xff] 0.0
          %2804 = vst [vmem:[%s227 + $0x58] sm:$0xff] 0.0
          %2805 = vst [vmem:[%s227 + $0x60] sm:$0xff] 0.0
          %2806 = vst [vmem:[%s227 + $0x68] sm:$0xff] 0.0
          %2807 = vst [vmem:[%s227 + $0x70] sm:$0xff] 0.0
          %2808 = vst [vmem:[%s227 + $0x78] sm:$0xff] 0.0
          %2809 = vst [vmem:[%s227 + $0x80] sm:$0xff] 0.0
          %2810 = vst [vmem:[%s227 + $0x88] sm:$0xff] 0.0
          %2811 = vst [vmem:[%s227 + $0x90] sm:$0xff] 0.0
          %2812 = vst [vmem:[%s227 + $0x98] sm:$0xff] 0.0
          %2813 = vst [vmem:[%s227 + $0xa0] sm:$0xff] 0.0
          %2814 = vst [vmem:[%s227 + $0xa8] sm:$0xff] 0.0
          %2815 = vst [vmem:[%s227 + $0xb0] sm:$0xff] 0.0
          %2816 = vst [vmem:[%s227 + $0xb8] sm:$0xff] 0.0
          %2817 = vst [vmem:[%s227 + $0xc0] sm:$0xff] 0.0
          %2818 = vst [vmem:[%s227 + $0xc8] sm:$0xff] 0.0
          %2819 = vst [vmem:[%s227 + $0xd0] sm:$0xff] 0.0
          %2820 = vst [vmem:[%s227 + $0xd8] sm:$0xff] 0.0
          %2821 = vst [vmem:[%s227 + $0xe0] sm:$0xff] 0.0
          %2822 = vst [vmem:[%s227 + $0xe8] sm:$0xff] 0.0
          %2823 = vst [vmem:[%s227 + $0xf0] sm:$0xff] 0.0
          %2824 = vst [vmem:[%s227 + $0xf8] sm:$0xff] 0.0
          %2825 = vst [vmem:[%s227 + $0x100] sm:$0xff] 0.0
          %2826 = vst [vmem:[%s227 + $0x108] sm:$0xff] 0.0
          %2827 = vst [vmem:[%s227 + $0x110] sm:$0xff] 0.0
          %2828 = vst [vmem:[%s227 + $0x118] sm:$0xff] 0.0
          %2829 = vst [vmem:[%s227 + $0x120] sm:$0xff] 0.0
          %2830 = vst [vmem:[%s227 + $0x128] sm:$0xff] 0.0
          %2831 = vst [vmem:[%s227 + $0x130] sm:$0xff] 0.0
          %2832 = vst [vmem:[%s227 + $0x138] sm:$0xff] 0.0
          %2833 = vst [vmem:[%s227 + $0x140] sm:$0xff] 0.0
          %2834 = vst [vmem:[%s227 + $0x148] sm:$0xff] 0.0
          %2835 = vst [vmem:[%s227 + $0x150] sm:$0xff] 0.0
          %2836 = vst [vmem:[%s227 + $0x158] sm:$0xff] 0.0
          %2837 = vst [vmem:[%s227 + $0x160] sm:$0xff] 0.0
          %2838 = vst [vmem:[%s227 + $0x168] sm:$0xff] 0.0
          %2839 = vst [vmem:[%s227 + $0x170] sm:$0xff] 0.0
          %2840 = vst [vmem:[%s227 + $0x178] sm:$0xff] 0.0
          %2841 = vst [vmem:[%s227 + $0x180] sm:$0xff] 0.0
          %2842 = vst [vmem:[%s227 + $0x188] sm:$0xff] 0.0
          %2843 = vst [vmem:[%s227 + $0x190] sm:$0xff] 0.0
          %2844 = vst [vmem:[%s227 + $0x198] sm:$0xff] 0.0
          %2845 = vst [vmem:[%s227 + $0x1a0] sm:$0xff] 0.0
          %2846 = vst [vmem:[%s227 + $0x1a8] sm:$0xff] 0.0
          %2847 = vst [vmem:[%s227 + $0x1b0] sm:$0xff] 0.0
          %2848 = vst [vmem:[%s227 + $0x1b8] sm:$0xff] 0.0
          %2849 = vst [vmem:[%s227 + $0x1c0] sm:$0xff] 0.0
          %2850 = vst [vmem:[%s227 + $0x1c8] sm:$0xff] 0.0
          %2851 = vst [vmem:[%s227 + $0x1d0] sm:$0xff] 0.0
          %2852 = vst [vmem:[%s227 + $0x1d8] sm:$0xff] 0.0
          %2853 = vst [vmem:[%s227 + $0x1e0] sm:$0xff] 0.0
          %2854 = vst [vmem:[%s227 + $0x1e8] sm:$0xff] 0.0
          %2855 = vst [vmem:[%s227 + $0x1f0] sm:$0xff] 0.0
          %2856 = vst [vmem:[%s227 + $0x1f8] sm:$0xff] 0.0
          %2857 = vst [vmem:[%s227 + $0x200] sm:$0xff] 0.0
          %2858 = vst [vmem:[%s227 + $0x208] sm:$0xff] 0.0
          %2859 = vst [vmem:[%s227 + $0x210] sm:$0xff] 0.0
          %2860 = vst [vmem:[%s227 + $0x218] sm:$0xff] 0.0
          %2861 = vst [vmem:[%s227 + $0x220] sm:$0xff] 0.0
          %2862 = vst [vmem:[%s227 + $0x228] sm:$0xff] 0.0
          %2863 = vst [vmem:[%s227 + $0x230] sm:$0xff] 0.0
          %2864 = vst [vmem:[%s227 + $0x238] sm:$0xff] 0.0
          %2865 = vst [vmem:[%s227 + $0x240] sm:$0xff] 0.0
          %2866 = vst [vmem:[%s227 + $0x248] sm:$0xff] 0.0
          %2867 = vst [vmem:[%s227 + $0x250] sm:$0xff] 0.0
          %2868 = vst [vmem:[%s227 + $0x258] sm:$0xff] 0.0
          %2869 = vst [vmem:[%s227 + $0x260] sm:$0xff] 0.0
          %2870 = vst [vmem:[%s227 + $0x268] sm:$0xff] 0.0
          %2871 = vst [vmem:[%s227 + $0x270] sm:$0xff] 0.0
          %2872 = vst [vmem:[%s227 + $0x278] sm:$0xff] 0.0
          %2873 = vst [vmem:[%s227 + $0x280] sm:$0xff] 0.0
          %2874 = vst [vmem:[%s227 + $0x288] sm:$0xff] 0.0
          %2875 = vst [vmem:[%s227 + $0x290] sm:$0xff] 0.0
          %2876 = vst [vmem:[%s227 + $0x298] sm:$0xff] 0.0
          %2877 = vst [vmem:[%s227 + $0x2a0] sm:$0xff] 0.0
          %2878 = vst [vmem:[%s227 + $0x2a8] sm:$0xff] 0.0
          %2879 = vst [vmem:[%s227 + $0x2b0] sm:$0xff] 0.0
          %2880 = vst [vmem:[%s227 + $0x2b8] sm:$0xff] 0.0
          %2881 = vst [vmem:[%s227 + $0x2c0] sm:$0xff] 0.0
          %2882 = vst [vmem:[%s227 + $0x2c8] sm:$0xff] 0.0
          %2883 = vst [vmem:[%s227 + $0x2d0] sm:$0xff] 0.0
          %2884 = vst [vmem:[%s227 + $0x2d8] sm:$0xff] 0.0
          %2885 = vst [vmem:[%s227 + $0x2e0] sm:$0xff] 0.0
          %2886 = vst [vmem:[%s227 + $0x2e8] sm:$0xff] 0.0
          %2887 = vst [vmem:[%s227 + $0x2f0] sm:$0xff] 0.0
          %2888 = vst [vmem:[%s227 + $0x2f8] sm:$0xff] 0.0
          %2889 = vst [vmem:[%s227 + $0x300] sm:$0xff] 0.0
          %2890 = vst [vmem:[%s227 + $0x308] sm:$0xff] 0.0
          %2891 = vst [vmem:[%s227 + $0x310] sm:$0xff] 0.0
          %2892 = vst [vmem:[%s227 + $0x318] sm:$0xff] 0.0
          %2893 = vst [vmem:[%s227 + $0x320] sm:$0xff] 0.0
          %2894 = vst [vmem:[%s227 + $0x328] sm:$0xff] 0.0
          %2895 = vst [vmem:[%s227 + $0x330] sm:$0xff] 0.0
          %2896 = vst [vmem:[%s227 + $0x338] sm:$0xff] 0.0
          %2897 = vst [vmem:[%s227 + $0x340] sm:$0xff] 0.0
          %2898 = vst [vmem:[%s227 + $0x348] sm:$0xff] 0.0
          %2899 = vst [vmem:[%s227 + $0x350] sm:$0xff] 0.0
          %2900 = vst [vmem:[%s227 + $0x358] sm:$0xff] 0.0
          %2901 = vst [vmem:[%s227 + $0x360] sm:$0xff] 0.0
          %2902 = vst [vmem:[%s227 + $0x368] sm:$0xff] 0.0
          %2903 = vst [vmem:[%s227 + $0x370] sm:$0xff] 0.0
          %2904 = vst [vmem:[%s227 + $0x378] sm:$0xff] 0.0
          %2905 = vst [vmem:[%s227 + $0x380] sm:$0xff] 0.0
          %2906 = vst [vmem:[%s227 + $0x388] sm:$0xff] 0.0
          %2907 = vst [vmem:[%s227 + $0x390] sm:$0xff] 0.0
          %2908 = vst [vmem:[%s227 + $0x398] sm:$0xff] 0.0
          %2909 = vst [vmem:[%s227 + $0x3a0] sm:$0xff] 0.0
          %2910 = vst [vmem:[%s227 + $0x3a8] sm:$0xff] 0.0
          %2911 = vst [vmem:[%s227 + $0x3b0] sm:$0xff] 0.0
          %2912 = vst [vmem:[%s227 + $0x3b8] sm:$0xff] 0.0
          %2913 = vst [vmem:[%s227 + $0x3c0] sm:$0xff] 0.0
          %2914 = vst [vmem:[%s227 + $0x3c8] sm:$0xff] 0.0
          %2915 = vst [vmem:[%s227 + $0x3d0] sm:$0xff] 0.0
          %2916 = vst [vmem:[%s227 + $0x3d8] sm:$0xff] 0.0
          %2917 = vst [vmem:[%s227 + $0x3e0] sm:$0xff] 0.0
          %2918 = vst [vmem:[%s227 + $0x3e8] sm:$0xff] 0.0
          %2919 = vst [vmem:[%s227 + $0x3f0] sm:$0xff] 0.0
          %2920 = vst [vmem:[%s227 + $0x3f8] sm:$0xff] 0.0
          %2921 = vst [vmem:[%s227 + $0x400] sm:$0xff] 0.0
          %2922 = vst [vmem:[%s227 + $0x408] sm:$0xff] 0.0
          %2923 = vst [vmem:[%s227 + $0x410] sm:$0xff] 0.0
          %2924 = vst [vmem:[%s227 + $0x418] sm:$0xff] 0.0
          %2925 = vst [vmem:[%s227 + $0x420] sm:$0xff] 0.0
          %2926 = vst [vmem:[%s227 + $0x428] sm:$0xff] 0.0
          %2927 = vst [vmem:[%s227 + $0x430] sm:$0xff] 0.0
          %2928 = vst [vmem:[%s227 + $0x438] sm:$0xff] 0.0
          %2929 = vst [vmem:[%s227 + $0x440] sm:$0xff] 0.0
          %2930 = vst [vmem:[%s227 + $0x448] sm:$0xff] 0.0
          %2931 = vst [vmem:[%s227 + $0x450] sm:$0xff] 0.0
          %2932 = vst [vmem:[%s227 + $0x458] sm:$0xff] 0.0
          %2933 = vst [vmem:[%s227 + $0x460] sm:$0xff] 0.0
          %2934 = vst [vmem:[%s227 + $0x468] sm:$0xff] 0.0
          %2935 = vst [vmem:[%s227 + $0x470] sm:$0xff] 0.0
          %2936 = vst [vmem:[%s227 + $0x478] sm:$0xff] 0.0
          %2937 = vst [vmem:[%s227 + $0x480] sm:$0xff] 0.0
          %2938 = vst [vmem:[%s227 + $0x488] sm:$0xff] 0.0
          %2939 = vst [vmem:[%s227 + $0x490] sm:$0xff] 0.0
          %2940 = vst [vmem:[%s227 + $0x498] sm:$0xff] 0.0
          %2941 = vst [vmem:[%s227 + $0x4a0] sm:$0xff] 0.0
          %2942 = vst [vmem:[%s227 + $0x4a8] sm:$0xff] 0.0
          %2943 = vst [vmem:[%s227 + $0x4b0] sm:$0xff] 0.0
          %2944 = vst [vmem:[%s227 + $0x4b8] sm:$0xff] 0.0
          %2945 = vst [vmem:[%s227 + $0x4c0] sm:$0xff] 0.0
          %2946 = vst [vmem:[%s227 + $0x4c8] sm:$0xff] 0.0
          %2947 = vst [vmem:[%s227 + $0x4d0] sm:$0xff] 0.0
          %2948 = vst [vmem:[%s227 + $0x4d8] sm:$0xff] 0.0
          %2949 = vst [vmem:[%s227 + $0x4e0] sm:$0xff] 0.0
          %2950 = vst [vmem:[%s227 + $0x4e8] sm:$0xff] 0.0
          %2951 = vst [vmem:[%s227 + $0x4f0] sm:$0xff] 0.0
          %2952 = vst [vmem:[%s227 + $0x4f8] sm:$0xff] 0.0
          %2953 = vst [vmem:[%s227 + $0x500] sm:$0xff] 0.0
          %2954 = vst [vmem:[%s227 + $0x508] sm:$0xff] 0.0
          %2955 = vst [vmem:[%s227 + $0x510] sm:$0xff] 0.0
          %2956 = vst [vmem:[%s227 + $0x518] sm:$0xff] 0.0
          %2957 = vst [vmem:[%s227 + $0x520] sm:$0xff] 0.0
          %2958 = vst [vmem:[%s227 + $0x528] sm:$0xff] 0.0
          %2959 = vst [vmem:[%s227 + $0x530] sm:$0xff] 0.0
          %2960 = vst [vmem:[%s227 + $0x538] sm:$0xff] 0.0
          %2961 = vst [vmem:[%s227 + $0x540] sm:$0xff] 0.0
          %2962 = vst [vmem:[%s227 + $0x548] sm:$0xff] 0.0
          %2963 = vst [vmem:[%s227 + $0x550] sm:$0xff] 0.0
          %2964 = vst [vmem:[%s227 + $0x558] sm:$0xff] 0.0
          %2965 = vst [vmem:[%s227 + $0x560] sm:$0xff] 0.0
          %2966 = vst [vmem:[%s227 + $0x568] sm:$0xff] 0.0
          %2967 = vst [vmem:[%s227 + $0x570] sm:$0xff] 0.0
          %2968 = vst [vmem:[%s227 + $0x578] sm:$0xff] 0.0
          %2969 = vst [vmem:[%s227 + $0x580] sm:$0xff] 0.0
          %2970 = vst [vmem:[%s227 + $0x588] sm:$0xff] 0.0
          %2971 = vst [vmem:[%s227 + $0x590] sm:$0xff] 0.0
          %2972 = vst [vmem:[%s227 + $0x598] sm:$0xff] 0.0
          %2973 = vst [vmem:[%s227 + $0x5a0] sm:$0xff] 0.0
          %2974 = vst [vmem:[%s227 + $0x5a8] sm:$0xff] 0.0
          %2975 = vst [vmem:[%s227 + $0x5b0] sm:$0xff] 0.0
          %2976 = vst [vmem:[%s227 + $0x5b8] sm:$0xff] 0.0
          %2977 = vst [vmem:[%s227 + $0x5c0] sm:$0xff] 0.0
          %2978 = vst [vmem:[%s227 + $0x5c8] sm:$0xff] 0.0
          %2979 = vst [vmem:[%s227 + $0x5d0] sm:$0xff] 0.0
          %2980 = vst [vmem:[%s227 + $0x5d8] sm:$0xff] 0.0
          %2981 = vst [vmem:[%s227 + $0x5e0] sm:$0xff] 0.0
          %2982 = vst [vmem:[%s227 + $0x5e8] sm:$0xff] 0.0
          %2983 = vst [vmem:[%s227 + $0x5f0] sm:$0xff] 0.0
          %2984 = vst [vmem:[%s227 + $0x5f8] sm:$0xff] 0.0
          %2985 = vst [vmem:[%s227 + $0x600] sm:$0xff] 0.0
          %2986 = vst [vmem:[%s227 + $0x608] sm:$0xff] 0.0
          %2987 = vst [vmem:[%s227 + $0x610] sm:$0xff] 0.0
          %2988 = vst [vmem:[%s227 + $0x618] sm:$0xff] 0.0
          %2989 = vst [vmem:[%s227 + $0x620] sm:$0xff] 0.0
          %2990 = vst [vmem:[%s227 + $0x628] sm:$0xff] 0.0
          %2991 = vst [vmem:[%s227 + $0x630] sm:$0xff] 0.0
          %2992 = vst [vmem:[%s227 + $0x638] sm:$0xff] 0.0
          %2993 = vst [vmem:[%s227 + $0x640] sm:$0xff] 0.0
          %2994 = vst [vmem:[%s227 + $0x648] sm:$0xff] 0.0
          %2995 = vst [vmem:[%s227 + $0x650] sm:$0xff] 0.0
          %2996 = vst [vmem:[%s227 + $0x658] sm:$0xff] 0.0
          %2997 = vst [vmem:[%s227 + $0x660] sm:$0xff] 0.0
          %2998 = vst [vmem:[%s227 + $0x668] sm:$0xff] 0.0
          %2999 = vst [vmem:[%s227 + $0x670] sm:$0xff] 0.0
          %3000 = vst [vmem:[%s227 + $0x678] sm:$0xff] 0.0
          %3001 = vst [vmem:[%s227 + $0x680] sm:$0xff] 0.0
          %3002 = vst [vmem:[%s227 + $0x688] sm:$0xff] 0.0
          %3003 = vst [vmem:[%s227 + $0x690] sm:$0xff] 0.0
          %3004 = vst [vmem:[%s227 + $0x698] sm:$0xff] 0.0
          %3005 = vst [vmem:[%s227 + $0x6a0] sm:$0xff] 0.0
          %3006 = vst [vmem:[%s227 + $0x6a8] sm:$0xff] 0.0
          %3007 = vst [vmem:[%s227 + $0x6b0] sm:$0xff] 0.0
          %3008 = vst [vmem:[%s227 + $0x6b8] sm:$0xff] 0.0
          %3009 = vst [vmem:[%s227 + $0x6c0] sm:$0xff] 0.0
          %3010 = vst [vmem:[%s227 + $0x6c8] sm:$0xff] 0.0
          %3011 = vst [vmem:[%s227 + $0x6d0] sm:$0xff] 0.0
          %3012 = vst [vmem:[%s227 + $0x6d8] sm:$0xff] 0.0
          %3013 = vst [vmem:[%s227 + $0x6e0] sm:$0xff] 0.0
          %3014 = vst [vmem:[%s227 + $0x6e8] sm:$0xff] 0.0
          %3015 = vst [vmem:[%s227 + $0x6f0] sm:$0xff] 0.0
          %3016 = vst [vmem:[%s227 + $0x6f8] sm:$0xff] 0.0
          %3017 = vst [vmem:[%s227 + $0x700] sm:$0xff] 0.0
          %3018 = vst [vmem:[%s227 + $0x708] sm:$0xff] 0.0
          %3019 = vst [vmem:[%s227 + $0x710] sm:$0xff] 0.0
          %3020 = vst [vmem:[%s227 + $0x718] sm:$0xff] 0.0
          %3021 = vst [vmem:[%s227 + $0x720] sm:$0xff] 0.0
          %3022 = vst [vmem:[%s227 + $0x728] sm:$0xff] 0.0
          %3023 = vst [vmem:[%s227 + $0x730] sm:$0xff] 0.0
          %3024 = vst [vmem:[%s227 + $0x738] sm:$0xff] 0.0
          %3025 = vst [vmem:[%s227 + $0x740] sm:$0xff] 0.0
          %3026 = vst [vmem:[%s227 + $0x748] sm:$0xff] 0.0
          %3027 = vst [vmem:[%s227 + $0x750] sm:$0xff] 0.0
          %3028 = vst [vmem:[%s227 + $0x758] sm:$0xff] 0.0
          %3029 = vst [vmem:[%s227 + $0x760] sm:$0xff] 0.0
          %3030 = vst [vmem:[%s227 + $0x768] sm:$0xff] 0.0
          %3031 = vst [vmem:[%s227 + $0x770] sm:$0xff] 0.0
          %3032 = vst [vmem:[%s227 + $0x778] sm:$0xff] 0.0
          %3033 = vst [vmem:[%s227 + $0x780] sm:$0xff] 0.0
          %3034 = vst [vmem:[%s227 + $0x788] sm:$0xff] 0.0
          %3035 = vst [vmem:[%s227 + $0x790] sm:$0xff] 0.0
          %3036 = vst [vmem:[%s227 + $0x798] sm:$0xff] 0.0
          %3037 = vst [vmem:[%s227 + $0x7a0] sm:$0xff] 0.0
          %3038 = vst [vmem:[%s227 + $0x7a8] sm:$0xff] 0.0
          %3039 = vst [vmem:[%s227 + $0x7b0] sm:$0xff] 0.0
          %3040 = vst [vmem:[%s227 + $0x7b8] sm:$0xff] 0.0
          %3041 = vst [vmem:[%s227 + $0x7c0] sm:$0xff] 0.0
          %3042 = vst [vmem:[%s227 + $0x7c8] sm:$0xff] 0.0
          %3043 = vst [vmem:[%s227 + $0x7d0] sm:$0xff] 0.0
          %3044 = vst [vmem:[%s227 + $0x7d8] sm:$0xff] 0.0
          %3045 = vst [vmem:[%s227 + $0x7e0] sm:$0xff] 0.0
          %3046 = vst [vmem:[%s227 + $0x7e8] sm:$0xff] 0.0
          %3047 = vst [vmem:[%s227 + $0x7f0] sm:$0xff] 0.0
          %3048 = vst [vmem:[%s227 + $0x7f8] sm:$0xff] 0.0
          %3049 = vst [vmem:[%s227 + $0x800] sm:$0xff] 0.0
          %3050 = vst [vmem:[%s227 + $0x808] sm:$0xff] 0.0
          %3051 = vst [vmem:[%s227 + $0x810] sm:$0xff] 0.0
          %3052 = vst [vmem:[%s227 + $0x818] sm:$0xff] 0.0
          %3053 = vst [vmem:[%s227 + $0x820] sm:$0xff] 0.0
          %3054 = vst [vmem:[%s227 + $0x828] sm:$0xff] 0.0
          %3055 = vst [vmem:[%s227 + $0x830] sm:$0xff] 0.0
          %3056 = vst [vmem:[%s227 + $0x838] sm:$0xff] 0.0
          %3057 = vst [vmem:[%s227 + $0x840] sm:$0xff] 0.0
          %3058 = vst [vmem:[%s227 + $0x848] sm:$0xff] 0.0
          %3059 = vst [vmem:[%s227 + $0x850] sm:$0xff] 0.0
          %3060 = vst [vmem:[%s227 + $0x858] sm:$0xff] 0.0
          %3061 = vst [vmem:[%s227 + $0x860] sm:$0xff] 0.0
          %3062 = vst [vmem:[%s227 + $0x868] sm:$0xff] 0.0
          %3063 = vst [vmem:[%s227 + $0x870] sm:$0xff] 0.0
          %3064 = vst [vmem:[%s227 + $0x878] sm:$0xff] 0.0
          %3065 = vst [vmem:[%s227 + $0x880] sm:$0xff] 0.0
          %3066 = vst [vmem:[%s227 + $0x888] sm:$0xff] 0.0
          %3067 = vst [vmem:[%s227 + $0x890] sm:$0xff] 0.0
          %3068 = vst [vmem:[%s227 + $0x898] sm:$0xff] 0.0
          %3069 = vst [vmem:[%s227 + $0x8a0] sm:$0xff] 0.0
          %3070 = vst [vmem:[%s227 + $0x8a8] sm:$0xff] 0.0
          %3071 = vst [vmem:[%s227 + $0x8b0] sm:$0xff] 0.0
          %3072 = vst [vmem:[%s227 + $0x8b8] sm:$0xff] 0.0
          %3073 = vst [vmem:[%s227 + $0x8c0] sm:$0xff] 0.0
          %3074 = vst [vmem:[%s227 + $0x8c8] sm:$0xff] 0.0
          %3075 = vst [vmem:[%s227 + $0x8d0] sm:$0xff] 0.0
          %3076 = vst [vmem:[%s227 + $0x8d8] sm:$0xff] 0.0
          %3077 = vst [vmem:[%s227 + $0x8e0] sm:$0xff] 0.0
          %3078 = vst [vmem:[%s227 + $0x8e8] sm:$0xff] 0.0
          %3079 = vst [vmem:[%s227 + $0x8f0] sm:$0xff] 0.0
          %3080 = vst [vmem:[%s227 + $0x8f8] sm:$0xff] 0.0
          %3081 = vst [vmem:[%s227 + $0x900] sm:$0xff] 0.0
          %3082 = vst [vmem:[%s227 + $0x908] sm:$0xff] 0.0
          %3083 = vst [vmem:[%s227 + $0x910] sm:$0xff] 0.0
          %3084 = vst [vmem:[%s227 + $0x918] sm:$0xff] 0.0
          %3085 = vst [vmem:[%s227 + $0x920] sm:$0xff] 0.0
          %3086 = vst [vmem:[%s227 + $0x928] sm:$0xff] 0.0
          %3087 = vst [vmem:[%s227 + $0x930] sm:$0xff] 0.0
          %3088 = vst [vmem:[%s227 + $0x938] sm:$0xff] 0.0
          %3089 = vst [vmem:[%s227 + $0x940] sm:$0xff] 0.0
          %3090 = vst [vmem:[%s227 + $0x948] sm:$0xff] 0.0
          %3091 = vst [vmem:[%s227 + $0x950] sm:$0xff] 0.0
          %3092 = vst [vmem:[%s227 + $0x958] sm:$0xff] 0.0
          %3093 = vst [vmem:[%s227 + $0x960] sm:$0xff] 0.0
          %3094 = vst [vmem:[%s227 + $0x968] sm:$0xff] 0.0
          %3095 = vst [vmem:[%s227 + $0x970] sm:$0xff] 0.0
          %3096 = vst [vmem:[%s227 + $0x978] sm:$0xff] 0.0
          %3097 = vst [vmem:[%s227 + $0x980] sm:$0xff] 0.0
          %3098 = vst [vmem:[%s227 + $0x988] sm:$0xff] 0.0
          %3099 = vst [vmem:[%s227 + $0x990] sm:$0xff] 0.0
          %3100 = vst [vmem:[%s227 + $0x998] sm:$0xff] 0.0
          %3101 = vst [vmem:[%s227 + $0x9a0] sm:$0xff] 0.0
          %3102 = vst [vmem:[%s227 + $0x9a8] sm:$0xff] 0.0
          %3103 = vst [vmem:[%s227 + $0x9b0] sm:$0xff] 0.0
          %3104 = vst [vmem:[%s227 + $0x9b8] sm:$0xff] 0.0
          %3105 = vst [vmem:[%s227 + $0x9c0] sm:$0xff] 0.0
          %3106 = vst [vmem:[%s227 + $0x9c8] sm:$0xff] 0.0
          %3107 = vst [vmem:[%s227 + $0x9d0] sm:$0xff] 0.0
          %3108 = vst [vmem:[%s227 + $0x9d8] sm:$0xff] 0.0
          %3109 = vst [vmem:[%s227 + $0x9e0] sm:$0xff] 0.0
          %3110 = vst [vmem:[%s227 + $0x9e8] sm:$0xff] 0.0
          %3111 = vst [vmem:[%s227 + $0x9f0] sm:$0xff] 0.0
          %3112 = vst [vmem:[%s227 + $0x9f8] sm:$0xff] 0.0
          %3113 = vst [vmem:[%s227 + $0xa00] sm:$0xff] 0.0
          %3114 = vst [vmem:[%s227 + $0xa08] sm:$0xff] 0.0
          %3115 = vst [vmem:[%s227 + $0xa10] sm:$0xff] 0.0
          %3116 = vst [vmem:[%s227 + $0xa18] sm:$0xff] 0.0
          %3117 = vst [vmem:[%s227 + $0xa20] sm:$0xff] 0.0
          %3118 = vst [vmem:[%s227 + $0xa28] sm:$0xff] 0.0
          %3119 = vst [vmem:[%s227 + $0xa30] sm:$0xff] 0.0
          %3120 = vst [vmem:[%s227 + $0xa38] sm:$0xff] 0.0
          %3121 = vst [vmem:[%s227 + $0xa40] sm:$0xff] 0.0
          %3122 = vst [vmem:[%s227 + $0xa48] sm:$0xff] 0.0
          %3123 = vst [vmem:[%s227 + $0xa50] sm:$0xff] 0.0
          %3124 = vst [vmem:[%s227 + $0xa58] sm:$0xff] 0.0
          %3125 = vst [vmem:[%s227 + $0xa60] sm:$0xff] 0.0
          %3126 = vst [vmem:[%s227 + $0xa68] sm:$0xff] 0.0
          %3127 = vst [vmem:[%s227 + $0xa70] sm:$0xff] 0.0
          %3128 = vst [vmem:[%s227 + $0xa78] sm:$0xff] 0.0
          %3129 = vst [vmem:[%s227 + $0xa80] sm:$0xff] 0.0
          %3130 = vst [vmem:[%s227 + $0xa88] sm:$0xff] 0.0
          %3131 = vst [vmem:[%s227 + $0xa90] sm:$0xff] 0.0
          %3132 = vst [vmem:[%s227 + $0xa98] sm:$0xff] 0.0
          %3133 = vst [vmem:[%s227 + $0xaa0] sm:$0xff] 0.0
          %3134 = vst [vmem:[%s227 + $0xaa8] sm:$0xff] 0.0
          %3135 = vst [vmem:[%s227 + $0xab0] sm:$0xff] 0.0
          %3136 = vst [vmem:[%s227 + $0xab8] sm:$0xff] 0.0
          %3137 = vst [vmem:[%s227 + $0xac0] sm:$0xff] 0.0
          %3138 = vst [vmem:[%s227 + $0xac8] sm:$0xff] 0.0
          %3139 = vst [vmem:[%s227 + $0xad0] sm:$0xff] 0.0
          %3140 = vst [vmem:[%s227 + $0xad8] sm:$0xff] 0.0
          %3141 = vst [vmem:[%s227 + $0xae0] sm:$0xff] 0.0
          %3142 = vst [vmem:[%s227 + $0xae8] sm:$0xff] 0.0
          %3143 = vst [vmem:[%s227 + $0xaf0] sm:$0xff] 0.0
          %3144 = vst [vmem:[%s227 + $0xaf8] sm:$0xff] 0.0
          %3145 = vst [vmem:[%s227 + $0xb00] sm:$0xff] 0.0
          %3146 = vst [vmem:[%s227 + $0xb08] sm:$0xff] 0.0
          %3147 = vst [vmem:[%s227 + $0xb10] sm:$0xff] 0.0
          %3148 = vst [vmem:[%s227 + $0xb18] sm:$0xff] 0.0
          %3149 = vst [vmem:[%s227 + $0xb20] sm:$0xff] 0.0
          %3150 = vst [vmem:[%s227 + $0xb28] sm:$0xff] 0.0
          %3151 = vst [vmem:[%s227 + $0xb30] sm:$0xff] 0.0
          %3152 = vst [vmem:[%s227 + $0xb38] sm:$0xff] 0.0
          %3153 = vst [vmem:[%s227 + $0xb40] sm:$0xff] 0.0
          %3154 = vst [vmem:[%s227 + $0xb48] sm:$0xff] 0.0
          %3155 = vst [vmem:[%s227 + $0xb50] sm:$0xff] 0.0
          %3156 = vst [vmem:[%s227 + $0xb58] sm:$0xff] 0.0
          %3157 = vst [vmem:[%s227 + $0xb60] sm:$0xff] 0.0
          %3158 = vst [vmem:[%s227 + $0xb68] sm:$0xff] 0.0
          %3159 = vst [vmem:[%s227 + $0xb70] sm:$0xff] 0.0
          %3160 = vst [vmem:[%s227 + $0xb78] sm:$0xff] 0.0
          %3161 = vst [vmem:[%s227 + $0xb80] sm:$0xff] 0.0
          %3162 = vst [vmem:[%s227 + $0xb88] sm:$0xff] 0.0
          %3163 = vst [vmem:[%s227 + $0xb90] sm:$0xff] 0.0
          %3164 = vst [vmem:[%s227 + $0xb98] sm:$0xff] 0.0
          %3165 = vst [vmem:[%s227 + $0xba0] sm:$0xff] 0.0
          %3166 = vst [vmem:[%s227 + $0xba8] sm:$0xff] 0.0
          %3167 = vst [vmem:[%s227 + $0xbb0] sm:$0xff] 0.0
          %3168 = vst [vmem:[%s227 + $0xbb8] sm:$0xff] 0.0
          %3169 = vst [vmem:[%s227 + $0xbc0] sm:$0xff] 0.0
          %3170 = vst [vmem:[%s227 + $0xbc8] sm:$0xff] 0.0
          %3171 = vst [vmem:[%s227 + $0xbd0] sm:$0xff] 0.0
          %3172 = vst [vmem:[%s227 + $0xbd8] sm:$0xff] 0.0
          %3173 = vst [vmem:[%s227 + $0xbe0] sm:$0xff] 0.0
          %3174 = vst [vmem:[%s227 + $0xbe8] sm:$0xff] 0.0
          %3175 = vst [vmem:[%s227 + $0xbf0] sm:$0xff] 0.0
          %3176 = vst [vmem:[%s227 + $0xbf8] sm:$0xff] 0.0
        $region36: #{_forward_arrays.3} parent=27 // pred_fallthru
          _
        %s3177 = sand.u32 %s95, 1
        %s3178 = scalar_lea.sflag [#allocation3], %s3177
        %s3179 = sand.u32 %s95, 1
        %s3180 = smul.addr %s3179, 3072
        %s3181 = scalar_lea.vmem [#allocation2], %s3180
        %s3182 = sand.u32 %s123, 1
        %s3183 = scalar_lea.sflag [#allocation5], %s3182
        %s3184 = sand.u32 %s123, 1
        %s3185 = smul.addr %s3184, 3072
        %s3186 = scalar_lea.vmem [#allocation4], %s3185
        // Predicated region
        $region37: #{_forward_arrays.3} parent=27 // pred_check
          %p3187 = pneg %p105
        $region38: #{_forward_arrays.3} parent=27 // pred_check_branch
          %3189 = sbr.rel (%p3187) target = $region40
        $region39: #{_forward_arrays.3} parent=27 // pred_region
          %s3190 = smul.u32 64, %s25
          %s3191 = smul.u32 6, %s26
          %s3192 = ssub.s32 88, %s3190
          %p3193 = scmp.lt.s32.totalorder %s3192, 64
          %s3194 = scalar_select %p3193, %s3192, 64
          %s3195 = smul.u32 128, %s3194
          %s3196 = smul.u32 %s3195, 6
          %s3198 = ssub.s32 49152, %s3196
          %3199 = vsyncadd %s3178, %s3198
          %p3200 = scmp.ne.s32.totalorder 0, %s3196
          %s3201 = smul.addr %s3190, 6
          %s3202 = sadd.s32 %s3191, %s3201
          %s3203 = smul.addr %s3202, 128
          %s3204 = scalar_lea.hbm %s2, %s3203
          %s3205 = smul.u32 48, %s3194
          %s3206 = sshll.u32 %s3181, 4
          %s3207 = int_to_ptr.vmem [resolvable:$true] %s3206
          %s3208 = sshll.u32 %s3205, 4
          %3212 = dma.vmem_to_hbm [thread:$0]  (%p3200), %s3207, %s3208, %s3204, %s3178, 768, 768, 48
        $region40: #{_forward_arrays.3} parent=27 // pred_fallthru
          _
        // Predicated region
        $region41: #{_forward_arrays.3} parent=27 // pred_check
          %p3213 = pneg %p133
        $region42: #{_forward_arrays.3} parent=27 // pred_check_branch
          %3215 = sbr.rel (%p3213) target = $region44
        $region43: #{_forward_arrays.3} parent=27 // pred_region
          %s3216 = smul.u32 64, %s25
          %s3217 = smul.u32 6, %s26
          %s3218 = ssub.s32 88, %s3216
          %p3219 = scmp.lt.s32.totalorder %s3218, 64
          %s3220 = scalar_select %p3219, %s3218, 64
          %s3221 = smul.u32 128, %s3220
          %s3222 = smul.u32 %s3221, 6
          %s3224 = ssub.s32 49152, %s3222
          %3225 = vsyncadd %s3183, %s3224
          %p3226 = scmp.ne.s32.totalorder 0, %s3222
          %s3227 = smul.addr %s3216, 6
          %s3228 = sadd.s32 %s3217, %s3227
          %s3229 = smul.addr %s3228, 128
          %s3230 = scalar_lea.hbm %s3, %s3229
          %s3231 = smul.u32 48, %s3220
          %s3232 = sshll.u32 %s3186, 4
          %s3233 = int_to_ptr.vmem [resolvable:$true] %s3232
          %s3234 = sshll.u32 %s3231, 4
          %3238 = dma.vmem_to_hbm [thread:$0]  (%p3226), %s3233, %s3234, %s3230, %s3183, 768, 768, 48
        $region44: #{_forward_arrays.3} parent=27 // pred_fallthru
          _
      $region28: #{_forward_arrays.3} parent=5 // pred_fallthru
        _
      %p3239 = scmp.le.s32.totalorder 2, %s16
      // Predicated region
      $region45: #{_forward_arrays.3} parent=5 // pred_check
        %p3240 = pneg %p3239
      $region46: #{_forward_arrays.3} parent=5 // pred_check_branch
        %3242 = sbr.rel (%p3240) target = $region48
      $region47: #{_forward_arrays.3} parent=5 // pred_region
        %s3243 = ssub.s32 %s16, 2
        // Predicated region
        $region49: #{_forward_arrays.3} parent=47 // pred_check
          %p3244 = pneg %p111
        $region50: #{_forward_arrays.3} parent=47 // pred_check_branch
          %3246 = sbr.rel (%p3244) target = $region52
        $region51: #{_forward_arrays.3} parent=47 // pred_region
          %s3247 = sand.u32 %s96, 1
          %s3248 = scalar_lea.sflag [#allocation3], %s3247
          %s3249 = sand.u32 %s96, 1
          %s3250 = smul.addr %s3249, 3072
          %s3251 = scalar_lea.vmem [#allocation2], %s3250
          %3252 = dma.done %s3248, 49152
        $region52: #{_forward_arrays.3} parent=47 // pred_fallthru
          _
        // Predicated region
        $region53: #{_forward_arrays.3} parent=47 // pred_check
          %p3253 = pneg %p139
        $region54: #{_forward_arrays.3} parent=47 // pred_check_branch
          %3255 = sbr.rel (%p3253) target = $region56
        $region55: #{_forward_arrays.3} parent=47 // pred_region
          %s3256 = sand.u32 %s124, 1
          %s3257 = scalar_lea.sflag [#allocation5], %s3256
          %s3258 = sand.u32 %s124, 1
          %s3259 = smul.addr %s3258, 3072
          %s3260 = scalar_lea.vmem [#allocation4], %s3259
          %3261 = dma.done %s3257, 49152
        $region56: #{_forward_arrays.3} parent=47 // pred_fallthru
          _
      $region48: #{_forward_arrays.3} parent=5 // pred_fallthru
        _
    $region6: #{_forward_arrays.3} parent=1 // loop_footer
      %s20 = sadd.s32 1, %s16
    $region7: #{_forward_arrays.3} parent=1 // loop_footer_branch
      %15 = sbr.rel target = $region3
    $region8: #{_forward_arrays.3} parent=1 // loop_exit
      _
    %3262 = vsyncpa [#allocation3], 1
    %s3263 = scalar_lea.sflag [#allocation3], 1
    %3264 = vsyncpa %s3263, 1
    %3265 = vsyncpa [#allocation5], 1
    %s3266 = scalar_lea.sflag [#allocation5], 1
    %3267 = vsyncpa %s3266, 1

</llo_original>
